<compile_context>
chip_gen: v7x
topology: tpu7x:2x2x1
jax: 0.10.0
libtpu: 0.0.40
codegen_flags: <defaults>
</compile_context>

<pallas_src>
import functools

import jax
import jax.numpy as jnp
from jax import lax
from jax.experimental import pallas as pl
from jax.experimental.pallas import tpu as pltpu


_NEG_INF = -1e30          # finite "-inf": masked scores never produce inf-inf NaNs
_MAX_SEQ_TILE = 256       # cap per-step tiles; sized to fit v7x's 32 MiB scoped VMEM
_VMEM_LIMIT = 32 * 1024 * 1024


def _round_up(x, m):
    return ((x + m - 1) // m) * m


# ---------------------------------------------------------------------------
# Linear projection kernel:  y = x @ W + b   (W pre-transposed to (Din, Hp))
# ---------------------------------------------------------------------------
def _linear_kernel(x_ref, w_ref, b_ref, o_ref):
    # x_ref: (1, T, Din)   w_ref: (Din, Hp)   b_ref: (1, Hp)   o_ref: (1, T, Hp)
    y = jnp.dot(x_ref[0], w_ref[...], preferred_element_type=jnp.float32)
    o_ref[0] = (y + b_ref[...].astype(jnp.float32)).astype(o_ref.dtype)


def _linear(x, w_t, bias, tile):
    """x: (B, N, Din) with N % tile == 0; w_t: (Din, Hp); bias: (1, Hp)."""
    B, N, Din = x.shape
    Hp = w_t.shape[1]
    itm = x.dtype.itemsize
    cost = pl.CostEstimate(
        flops=2 * B * N * Din * Hp,
        transcendentals=0,
        bytes_accessed=itm * (B * N * Din + Din * Hp + Hp + B * N * Hp),
    )
    grid_spec = pltpu.PrefetchScalarGridSpec(
        num_scalar_prefetch=0,
        grid=(B, N // tile),
        in_specs=[
            pl.BlockSpec((1, tile, Din), lambda b, i: (b, i, 0)),
            pl.BlockSpec((Din, Hp), lambda b, i: (0, 0)),    # weights resident
            pl.BlockSpec((1, Hp), lambda b, i: (0, 0)),      # bias resident
        ],
        out_specs=pl.BlockSpec((1, tile, Hp), lambda b, i: (b, i, 0)),
    )
    return pl.pallas_call(
        _linear_kernel,
        out_shape=jax.ShapeDtypeStruct((B, N, Hp), x.dtype),
        grid_spec=grid_spec,
        compiler_params=pltpu.CompilerParams(
            dimension_semantics=("parallel", "parallel"),
            vmem_limit_bytes=_VMEM_LIMIT,
        ),
        cost_estimate=cost,
    )(x, w_t, bias)


# ---------------------------------------------------------------------------
# Flash-style cross attention:  softmax(q @ k^T, -1) @ v   (per batch element)
# ---------------------------------------------------------------------------
def _flash_kernel(q_ref, k_ref, v_ref, o_ref, m_sc, l_sc, acc_sc,
                  *, kv_valid, kv_tile, kv_padded):
    ki = pl.program_id(2)

    @pl.when(ki == 0)
    def _():
        m_sc[...] = jnp.full_like(m_sc, _NEG_INF)
        l_sc[...] = jnp.zeros_like(l_sc)
        acc_sc[...] = jnp.zeros_like(acc_sc)

    q = q_ref[0]                                  # (TQ, Hp)
    k = k_ref[0]                                  # (TK, Hp)
    # scores[i, j] = <q_i, k_j>: contract H of both operands -> no transpose copy.
    s = lax.dot_general(q, k, (((1,), (1,)), ((), ())),
                        preferred_element_type=jnp.float32)   # (TQ, TK) f32

    if kv_valid != kv_padded:                     # static: mask padded key columns
        col = ki * kv_tile + lax.broadcasted_iota(jnp.int32, s.shape, 1)
        s = jnp.where(col < kv_valid, s, _NEG_INF)

    m_prev = m_sc[...]
    m_new = jnp.maximum(m_prev, jnp.max(s, axis=-1, keepdims=True))
    alpha = jnp.exp(m_prev - m_new)
    p = jnp.exp(s - m_new)
    l_sc[...] = alpha * l_sc[...] + jnp.sum(p, axis=-1, keepdims=True)
    acc_sc[...] = alpha * acc_sc[...] + jnp.dot(
        p.astype(v_ref.dtype), v_ref[0], preferred_element_type=jnp.float32)
    m_sc[...] = m_new

    @pl.when(ki == pl.num_programs(2) - 1)
    def _():
        # EUP reciprocal + one Newton step: divide off the VPU, full f32 accuracy.
        l = l_sc[...]
        inv_l = pl.reciprocal(l, approx=True)
        inv_l = inv_l * (2.0 - l * inv_l)
        o_ref[0] = (acc_sc[...] * inv_l).astype(o_ref.dtype)


def _flash_attention(q, k, v, q_tile, kv_tile, kv_valid):
    """q: (B, Nq, Hp), k: (B, Nk, Hp), v: (B, Nk, Dv); Nq % q_tile == Nk % kv_tile == 0."""
    B, Nq, Hp = q.shape
    Nk = k.shape[1]
    Dv = v.shape[-1]
    itm = v.dtype.itemsize
    cost = pl.CostEstimate(
        flops=2 * B * Nq * Nk * (Hp + Dv),
        transcendentals=B * Nq * Nk,
        bytes_accessed=itm * (B * Nq * Hp + B * Nk * Hp + B * Nk * Dv + B * Nq * Dv),
    )
    kernel = functools.partial(_flash_kernel, kv_valid=kv_valid,
                               kv_tile=kv_tile, kv_padded=Nk)
    grid_spec = pltpu.PrefetchScalarGridSpec(
        num_scalar_prefetch=0,
        grid=(B, Nq // q_tile, Nk // kv_tile),     # reduction (kv) axis last
        in_specs=[
            pl.BlockSpec((1, q_tile, Hp), lambda b, qi, ki: (b, qi, 0)),
            pl.BlockSpec((1, kv_tile, Hp), lambda b, qi, ki: (b, ki, 0)),
            pl.BlockSpec((1, kv_tile, Dv), lambda b, qi, ki: (b, ki, 0)),
        ],
        out_specs=pl.BlockSpec((1, q_tile, Dv), lambda b, qi, ki: (b, qi, 0)),
        scratch_shapes=[
            pltpu.VMEM((q_tile, 1), jnp.float32),    # running max
            pltpu.VMEM((q_tile, 1), jnp.float32),    # running sum
            pltpu.VMEM((q_tile, Dv), jnp.float32),   # accumulator
        ],
    )
    return pl.pallas_call(
        kernel,
        out_shape=jax.ShapeDtypeStruct((B, Nq, Dv), v.dtype),
        grid_spec=grid_spec,
        compiler_params=pltpu.CompilerParams(
            dimension_semantics=("parallel", "parallel", "arbitrary"),
            vmem_limit_bytes=_VMEM_LIMIT,
        ),
        cost_estimate=cost,
    )(q, k, v)


# ---------------------------------------------------------------------------
# Module forward
# ---------------------------------------------------------------------------
def cross_attention(input_a, input_b, wa, ba, wb, bb, *, max_seq_tile=_MAX_SEQ_TILE):
    """CrossAttention.forward.

    input_a: (B, Na, Da), input_b: (B, Nb, Db)
    wa: (H, Da), ba: (H,)   -- PyTorch nn.Linear convention
    wb: (H, Db), bb: (H,)
    returns (out_a: (B, Na, Db), out_b: (B, Nb, Da))
    """
    B, Na, Da = input_a.shape
    Bb, Nb, Db = input_b.shape
    assert B == Bb
    H = wa.shape[0]

    # Lane-dense padding: feature dims -> multiples of 128; sequence dims -> tile.
    Hp = _round_up(H, 128)
    Dap = _round_up(Da, 128)
    Dbp = _round_up(Db, 128)
    Ta = min(max_seq_tile, _round_up(Na, 8))
    Tb = min(max_seq_tile, _round_up(Nb, 8))
    Nap = _round_up(Na, Ta)
    Nbp = _round_up(Nb, Tb)

    a_p = jnp.pad(input_a, ((0, 0), (0, Nap - Na), (0, Dap - Da)))
    b_p = jnp.pad(input_b, ((0, 0), (0, Nbp - Nb), (0, Dbp - Db)))
    wa_p = jnp.pad(wa.T, ((0, Dap - Da), (0, Hp - H)))                     # (Dap, Hp)
    wb_p = jnp.pad(wb.T, ((0, Dbp - Db), (0, Hp - H)))                     # (Dbp, Hp)
    ba_p = jnp.pad(ba, (0, Hp - H)).reshape(1, Hp).astype(jnp.float32)
    bb_p = jnp.pad(bb, (0, Hp - H)).reshape(1, Hp).astype(jnp.float32)

    # Projections: computed once (hoisted out of the attention loops).
    mapped_a = _linear(a_p, wa_p, ba_p, Ta)    # (B, Nap, Hp); padded H columns == 0
    mapped_b = _linear(b_p, wb_p, bb_p, Tb)    # (B, Nbp, Hp)

    # out_a = softmax_j(<ma_i, mb_j>) @ input_b
    out_a = _flash_attention(mapped_a, mapped_b, b_p, Ta, Tb, kv_valid=Nb)
    # out_b = softmax_i(<mb_j, ma_i>) @ input_a   (same kernel, roles swapped)
    out_b = _flash_attention(mapped_b, mapped_a, a_p, Tb, Ta, kv_valid=Na)

    return out_a[:, :Na, :Db], out_b[:, :Nb, :Da]


def cross_attention_reference(input_a, input_b, wa, ba, wb, bb):
    """Pure-JAX reference (PyTorch semantics)."""
    hi = lax.Precision.HIGHEST
    mapped_a = jnp.einsum('bid,hd->bih', input_a, wa, precision=hi) + ba
    mapped_b = jnp.einsum('bjd,hd->bjh', input_b, wb, precision=hi) + bb
    scores = jnp.einsum('bih,bjh->bij', mapped_a, mapped_b, precision=hi)
    attn01 = jax.nn.softmax(scores, axis=-1)
    attn10 = jax.nn.softmax(jnp.swapaxes(scores, -2, -1), axis=-1)
    out_a = jnp.einsum('bij,bjd->bid', attn01, input_b, precision=hi)
    out_b = jnp.einsum('bji,bid->bjd', attn10, input_a, precision=hi)
    return out_a, out_b


if __name__ == "__main__":
    # Shapes from the module spec: input_a (16, 36, 192), input_b (16, 192, 36), H=64.
    B, Na, Da = 16, 36, 192
    Nb, Db = 192, 36
    H = 64

    key = jax.random.PRNGKey(0)
    k1, k2, k3, k4, k5, k6 = jax.random.split(key, 6)
    input_a = jax.random.normal(k1, (B, Na, Da), dtype=jnp.float32)
    input_b = jax.random.normal(k2, (B, Nb, Db), dtype=jnp.float32)
    # PyTorch Linear shapes: weight (H, in), bias (H,).
    wa = jax.random.normal(k3, (H, Da), dtype=jnp.float32) * (0.5 / jnp.sqrt(Da))
    ba = jax.random.normal(k4, (H,), dtype=jnp.float32) * 0.02
    wb = jax.random.normal(k5, (H, Db), dtype=jnp.float32) * (0.5 / jnp.sqrt(Db))
    bb = jax.random.normal(k6, (H,), dtype=jnp.float32) * 0.02

    out_a, out_b = jax.jit(cross_attention)(input_a, input_b, wa, ba, wb, bb)
    jax.block_until_ready((out_a, out_b))

    ref_a, ref_b = cross_attention_reference(input_a, input_b, wa, ba, wb, bb)
    assert out_a.shape == (B, Na, Db) and out_b.shape == (B, Nb, Da)
    assert jnp.allclose(out_a, ref_a, rtol=1e-4, atol=1e-4), \
        float(jnp.max(jnp.abs(out_a - ref_a)))
    assert jnp.allclose(out_b, ref_b, rtol=1e-4, atol=1e-4), \
        float(jnp.max(jnp.abs(out_b - ref_b)))

    print("KERNEL_OK")
</pallas_src>

<mosaic_0001>
module attributes {stable_mosaic.version = 11 : i64} {
  func.func @_linear_kernel(%arg0: i32, %arg1: i32, %arg2: memref<1x40x256xf32, #tpu.memory_space<vmem>>, %arg3: memref<256x128xf32, #tpu.memory_space<vmem>>, %arg4: memref<1x128xf32, #tpu.memory_space<vmem>>, %arg5: memref<1x40x128xf32, #tpu.memory_space<vmem>>) attributes {dimension_semantics = [#tpu.dimension_semantics<parallel>, #tpu.dimension_semantics<parallel>], iteration_bounds = array<i64: 16, 1>, scalar_prefetch = 0 : i64, scratch_operands = 0 : i64, tpu.core_type = #tpu.core_type<tc>, window_params = [{transform_indices = @transform_0, window_bounds = array<i64: 1, 40, 256>}, {pipeline_mode = #tpu.pipeline_mode<synchronous>, transform_indices = @transform_1, window_bounds = array<i64: 256, 128>}, {pipeline_mode = #tpu.pipeline_mode<synchronous>, transform_indices = @transform_2, window_bounds = array<i64: 1, 128>}, {transform_indices = @transform_3, window_bounds = array<i64: 1, 40, 128>}]} {
    %c0 = arith.constant 0 : index
    %c0_0 = arith.constant 0 : index
    %c0_1 = arith.constant 0 : index
    %0 = vector.load %arg2[%c0, %c0_0, %c0_1] : memref<1x40x256xf32, #tpu.memory_space<vmem>>, vector<1x40x256xf32>
    %1 = vector.shape_cast %0 : vector<1x40x256xf32> to vector<40x256xf32>
    %c0_2 = arith.constant 0 : index
    %c0_3 = arith.constant 0 : index
    %2 = vector.load %arg3[%c0_2, %c0_3] : memref<256x128xf32, #tpu.memory_space<vmem>>, vector<256x128xf32>
    %cst = arith.constant dense<0.000000e+00> : vector<40x128xf32>
    %3 = tpu.matmul %1, %2, %cst {dimension_numbers = #tpu.dot_dimension_numbers<[1], [0], [0], [1], [0, 0, 1, 1], [], []>} : vector<40x256xf32>, vector<256x128xf32>, vector<40x128xf32> -> vector<40x128xf32>
    %c0_4 = arith.constant 0 : index
    %c0_5 = arith.constant 0 : index
    %4 = vector.load %arg4[%c0_4, %c0_5] : memref<1x128xf32, #tpu.memory_space<vmem>>, vector<1x128xf32>
    %5 = vector.broadcast %4 : vector<1x128xf32> to vector<40x128xf32>
    %6 = arith.addf %3, %5 : vector<40x128xf32>
    %c0_6 = arith.constant 0 : index
    %c0_7 = arith.constant 0 : index
    %c0_8 = arith.constant 0 : index
    %7 = vector.load %arg5[%c0_6, %c0_7, %c0_8] : memref<1x40x128xf32, #tpu.memory_space<vmem>>, vector<1x40x128xf32>
    %8 = vector.shape_cast %7 : vector<1x40x128xf32> to vector<40x128xf32>
    %9 = vector.shape_cast %6 : vector<40x128xf32> to vector<1x40x128xf32>
    tpu.vector_store %arg5[%c0_6, %c0_7, %c0_8], %9 {strides = array<i32>} : memref<1x40x128xf32, #tpu.memory_space<vmem>>, vector<1x40x128xf32>,
    return
  }
  func.func @transform_0(%arg0: i32, %arg1: i32) -> (i32, i32, i32) {
    %c0_i32 = arith.constant 0 : i32
    %c0_i32_0 = arith.constant 0 : i32
    return %arg0, %arg1, %c0_i32 : i32, i32, i32
  }
  func.func @transform_1(%arg0: i32, %arg1: i32) -> (i32, i32) {
    %c0_i32 = arith.constant 0 : i32
    %c0_i32_0 = arith.constant 0 : i32
    %c0_i32_1 = arith.constant 0 : i32
    return %c0_i32, %c0_i32_0 : i32, i32
  }
  func.func @transform_2(%arg0: i32, %arg1: i32) -> (i32, i32) {
    %c0_i32 = arith.constant 0 : i32
    %c0_i32_0 = arith.constant 0 : i32
    %c0_i32_1 = arith.constant 0 : i32
    return %c0_i32, %c0_i32_0 : i32, i32
  }
  func.func @transform_3(%arg0: i32, %arg1: i32) -> (i32, i32, i32) {
    %c0_i32 = arith.constant 0 : i32
    %c0_i32_0 = arith.constant 0 : i32
    return %arg0, %arg1, %c0_i32 : i32, i32, i32
  }
}

module attributes {stable_mosaic.version = 11 : i64} {
  func.func @_linear_kernel(%arg0: i32, %arg1: i32, %arg2: memref<1x192x128xf32, #tpu.memory_space<vmem>>, %arg3: memref<128x128xf32, #tpu.memory_space<vmem>>, %arg4: memref<1x128xf32, #tpu.memory_space<vmem>>, %arg5: memref<1x192x128xf32, #tpu.memory_space<vmem>>) attributes {dimension_semantics = [#tpu.dimension_semantics<parallel>, #tpu.dimension_semantics<parallel>], iteration_bounds = array<i64: 16, 1>, scalar_prefetch = 0 : i64, scratch_operands = 0 : i64, tpu.core_type = #tpu.core_type<tc>, window_params = [{transform_indices = @transform_0, window_bounds = array<i64: 1, 192, 128>}, {pipeline_mode = #tpu.pipeline_mode<synchronous>, transform_indices = @transform_1, window_bounds = array<i64: 128, 128>}, {pipeline_mode = #tpu.pipeline_mode<synchronous>, transform_indices = @transform_2, window_bounds = array<i64: 1, 128>}, {transform_indices = @transform_3, window_bounds = array<i64: 1, 192, 128>}]} {
    %c0 = arith.constant 0 : index
    %c0_0 = arith.constant 0 : index
    %c0_1 = arith.constant 0 : index
    %0 = vector.load %arg2[%c0, %c0_0, %c0_1] : memref<1x192x128xf32, #tpu.memory_space<vmem>>, vector<1x192x128xf32>
    %1 = vector.shape_cast %0 : vector<1x192x128xf32> to vector<192x128xf32>
    %c0_2 = arith.constant 0 : index
    %c0_3 = arith.constant 0 : index
    %2 = vector.load %arg3[%c0_2, %c0_3] : memref<128x128xf32, #tpu.memory_space<vmem>>, vector<128x128xf32>
    %cst = arith.constant dense<0.000000e+00> : vector<192x128xf32>
    %3 = tpu.matmul %1, %2, %cst {dimension_numbers = #tpu.dot_dimension_numbers<[1], [0], [0], [1], [0, 0, 1, 1], [], []>} : vector<192x128xf32>, vector<128x128xf32>, vector<192x128xf32> -> vector<192x128xf32>
    %c0_4 = arith.constant 0 : index
    %c0_5 = arith.constant 0 : index
    %4 = vector.load %arg4[%c0_4, %c0_5] : memref<1x128xf32, #tpu.memory_space<vmem>>, vector<1x128xf32>
    %5 = vector.broadcast %4 : vector<1x128xf32> to vector<192x128xf32>
    %6 = arith.addf %3, %5 : vector<192x128xf32>
    %c0_6 = arith.constant 0 : index
    %c0_7 = arith.constant 0 : index
    %c0_8 = arith.constant 0 : index
    %7 = vector.load %arg5[%c0_6, %c0_7, %c0_8] : memref<1x192x128xf32, #tpu.memory_space<vmem>>, vector<1x192x128xf32>
    %8 = vector.shape_cast %7 : vector<1x192x128xf32> to vector<192x128xf32>
    %9 = vector.shape_cast %6 : vector<192x128xf32> to vector<1x192x128xf32>
    tpu.vector_store %arg5[%c0_6, %c0_7, %c0_8], %9 {strides = array<i32>} : memref<1x192x128xf32, #tpu.memory_space<vmem>>, vector<1x192x128xf32>,
    return
  }
  func.func @transform_0(%arg0: i32, %arg1: i32) -> (i32, i32, i32) {
    %c0_i32 = arith.constant 0 : i32
    %c0_i32_0 = arith.constant 0 : i32
    return %arg0, %arg1, %c0_i32 : i32, i32, i32
  }
  func.func @transform_1(%arg0: i32, %arg1: i32) -> (i32, i32) {
    %c0_i32 = arith.constant 0 : i32
    %c0_i32_0 = arith.constant 0 : i32
    %c0_i32_1 = arith.constant 0 : i32
    return %c0_i32, %c0_i32_0 : i32, i32
  }
  func.func @transform_2(%arg0: i32, %arg1: i32) -> (i32, i32) {
    %c0_i32 = arith.constant 0 : i32
    %c0_i32_0 = arith.constant 0 : i32
    %c0_i32_1 = arith.constant 0 : i32
    return %c0_i32, %c0_i32_0 : i32, i32
  }
  func.func @transform_3(%arg0: i32, %arg1: i32) -> (i32, i32, i32) {
    %c0_i32 = arith.constant 0 : i32
    %c0_i32_0 = arith.constant 0 : i32
    return %arg0, %arg1, %c0_i32 : i32, i32, i32
  }
}

module attributes {stable_mosaic.version = 11 : i64} {
  func.func @_flash_kernel(%arg0: i32, %arg1: i32, %arg2: i32, %arg3: memref<1x40x128xf32, #tpu.memory_space<vmem>>, %arg4: memref<1x192x128xf32, #tpu.memory_space<vmem>>, %arg5: memref<1x192x128xf32, #tpu.memory_space<vmem>>, %arg6: memref<1x40x128xf32, #tpu.memory_space<vmem>>, %arg7: memref<40x1xf32, #tpu.memory_space<vmem>>, %arg8: memref<40x1xf32, #tpu.memory_space<vmem>>, %arg9: memref<40x128xf32, #tpu.memory_space<vmem>>) attributes {dimension_semantics = [#tpu.dimension_semantics<parallel>, #tpu.dimension_semantics<parallel>, #tpu.dimension_semantics<arbitrary>], iteration_bounds = array<i64: 16, 1, 1>, scalar_prefetch = 0 : i64, scratch_operands = 3 : i64, tpu.core_type = #tpu.core_type<tc>, window_params = [{transform_indices = @transform_0, window_bounds = array<i64: 1, 40, 128>}, {transform_indices = @transform_1, window_bounds = array<i64: 1, 192, 128>}, {transform_indices = @transform_2, window_bounds = array<i64: 1, 192, 128>}, {transform_indices = @transform_3, window_bounds = array<i64: 1, 40, 128>}]} {
    %c0_i32 = arith.constant 0 : i32
    %0 = arith.cmpi eq, %arg2, %c0_i32 : i32
    %1 = arith.extui %0 : i1 to i32
    %c0_i32_0 = arith.constant 0 : i32
    %2 = arith.cmpi ne, %1, %c0_i32_0 : i32
    scf.if %2 {
      %cst_26 = arith.constant -1.000000e+30 : f32
      %35 = vector.broadcast %cst_26 : f32 to vector<40x1xf32>
      %c0_27 = arith.constant 0 : index
      %c0_28 = arith.constant 0 : index
      %36 = vector.load %arg7[%c0_27, %c0_28] : memref<40x1xf32, #tpu.memory_space<vmem>>, vector<40x1xf32>
      tpu.vector_store %arg7[%c0_27, %c0_28], %35 {strides = array<i32>} : memref<40x1xf32, #tpu.memory_space<vmem>>, vector<40x1xf32>,
      %cst_29 = arith.constant 0.000000e+00 : f32
      %37 = vector.broadcast %cst_29 : f32 to vector<40x1xf32>
      %c0_30 = arith.constant 0 : index
      %c0_31 = arith.constant 0 : index
      %38 = vector.load %arg8[%c0_30, %c0_31] : memref<40x1xf32, #tpu.memory_space<vmem>>, vector<40x1xf32>
      tpu.vector_store %arg8[%c0_30, %c0_31], %37 {strides = array<i32>} : memref<40x1xf32, #tpu.memory_space<vmem>>, vector<40x1xf32>,
      %cst_32 = arith.constant 0.000000e+00 : f32
      %39 = vector.broadcast %cst_32 : f32 to vector<40x128xf32>
      %c0_33 = arith.constant 0 : index
      %c0_34 = arith.constant 0 : index
      %40 = vector.load %arg9[%c0_33, %c0_34] : memref<40x128xf32, #tpu.memory_space<vmem>>, vector<40x128xf32>
      tpu.vector_store %arg9[%c0_33, %c0_34], %39 {strides = array<i32>} : memref<40x128xf32, #tpu.memory_space<vmem>>, vector<40x128xf32>,
    } else {
    }
    %c0 = arith.constant 0 : index
    %c0_1 = arith.constant 0 : index
    %c0_2 = arith.constant 0 : index
    %3 = vector.load %arg3[%c0, %c0_1, %c0_2] : memref<1x40x128xf32, #tpu.memory_space<vmem>>, vector<1x40x128xf32>
    %4 = vector.shape_cast %3 : vector<1x40x128xf32> to vector<40x128xf32>
    %c0_3 = arith.constant 0 : index
    %c0_4 = arith.constant 0 : index
    %c0_5 = arith.constant 0 : index
    %5 = vector.load %arg4[%c0_3, %c0_4, %c0_5] : memref<1x192x128xf32, #tpu.memory_space<vmem>>, vector<1x192x128xf32>
    %6 = vector.shape_cast %5 : vector<1x192x128xf32> to vector<192x128xf32>
    %cst = arith.constant dense<0.000000e+00> : vector<40x192xf32>
    %7 = tpu.matmul %4, %6, %cst {dimension_numbers = #tpu.dot_dimension_numbers<[1], [1], [0], [0], [0, 0, 1, 0], [], []>} : vector<40x128xf32>, vector<192x128xf32>, vector<40x192xf32> -> vector<40x192xf32>
    %c0_6 = arith.constant 0 : index
    %c0_7 = arith.constant 0 : index
    %8 = vector.load %arg7[%c0_6, %c0_7] : memref<40x1xf32, #tpu.memory_space<vmem>>, vector<40x1xf32>
    %cst_8 = arith.constant dense<0xFF800000> : vector<40xf32>
    %9 = vector.multi_reduction <maximumf>, %7, %cst_8 [1] : vector<40x192xf32> to vector<40xf32>
    %10 = vector.shape_cast %9 : vector<40xf32> to vector<40x1xf32>
    %11 = arith.maximumf %8, %10 : vector<40x1xf32>
    %12 = arith.subf %8, %11 : vector<40x1xf32>
    %13 = math.exp %12 : vector<40x1xf32>
    %14 = vector.broadcast %11 : vector<40x1xf32> to vector<40x192xf32>
    %15 = arith.subf %7, %14 : vector<40x192xf32>
    %16 = math.exp %15 : vector<40x192xf32>
    %c0_9 = arith.constant 0 : index
    %c0_10 = arith.constant 0 : index
    %17 = vector.load %arg8[%c0_9, %c0_10] : memref<40x1xf32, #tpu.memory_space<vmem>>, vector<40x1xf32>
    %18 = arith.mulf %13, %17 : vector<40x1xf32>
    %cst_11 = arith.constant dense<0.000000e+00> : vector<40xf32>
    %19 = vector.multi_reduction <add>, %16, %cst_11 [1] : vector<40x192xf32> to vector<40xf32>
    %20 = vector.shape_cast %19 : vector<40xf32> to vector<40x1xf32>
    %21 = arith.addf %18, %20 : vector<40x1xf32>
    %c0_12 = arith.constant 0 : index
    %c0_13 = arith.constant 0 : index
    %22 = vector.load %arg8[%c0_12, %c0_13] : memref<40x1xf32, #tpu.memory_space<vmem>>, vector<40x1xf32>
    tpu.vector_store %arg8[%c0_12, %c0_13], %21 {strides = array<i32>} : memref<40x1xf32, #tpu.memory_space<vmem>>, vector<40x1xf32>,
    %c0_14 = arith.constant 0 : index
    %c0_15 = arith.constant 0 : index
    %23 = vector.load %arg9[%c0_14, %c0_15] : memref<40x128xf32, #tpu.memory_space<vmem>>, vector<40x128xf32>
    %24 = vector.broadcast %13 : vector<40x1xf32> to vector<40x128xf32>
    %25 = arith.mulf %24, %23 : vector<40x128xf32>
    %c0_16 = arith.constant 0 : index
    %c0_17 = arith.constant 0 : index
    %c0_18 = arith.constant 0 : index
    %26 = vector.load %arg5[%c0_16, %c0_17, %c0_18] : memref<1x192x128xf32, #tpu.memory_space<vmem>>, vector<1x192x128xf32>
    %27 = vector.shape_cast %26 : vector<1x192x128xf32> to vector<192x128xf32>
    %cst_19 = arith.constant dense<0.000000e+00> : vector<40x128xf32>
    %28 = tpu.matmul %16, %27, %cst_19 {dimension_numbers = #tpu.dot_dimension_numbers<[1], [0], [0], [1], [0, 0, 1, 1], [], []>} : vector<40x192xf32>, vector<192x128xf32>, vector<40x128xf32> -> vector<40x128xf32>
    %29 = arith.addf %25, %28 : vector<40x128xf32>
    %c0_20 = arith.constant 0 : index
    %c0_21 = arith.constant 0 : index
    %30 = vector.load %arg9[%c0_20, %c0_21] : memref<40x128xf32, #tpu.memory_space<vmem>>, vector<40x128xf32>
    tpu.vector_store %arg9[%c0_20, %c0_21], %29 {strides = array<i32>} : memref<40x128xf32, #tpu.memory_space<vmem>>, vector<40x128xf32>,
    %c0_22 = arith.constant 0 : index
    %c0_23 = arith.constant 0 : index
    %31 = vector.load %arg7[%c0_22, %c0_23] : memref<40x1xf32, #tpu.memory_space<vmem>>, vector<40x1xf32>
    tpu.vector_store %arg7[%c0_22, %c0_23], %11 {strides = array<i32>} : memref<40x1xf32, #tpu.memory_space<vmem>>, vector<40x1xf32>,
    %c0_i32_24 = arith.constant 0 : i32
    %32 = arith.cmpi eq, %arg2, %c0_i32_24 : i32
    %33 = arith.extui %32 : i1 to i32
    %c0_i32_25 = arith.constant 0 : i32
    %34 = arith.cmpi ne, %33, %c0_i32_25 : i32
    scf.if %34 {
      %c0_26 = arith.constant 0 : index
      %c0_27 = arith.constant 0 : index
      %35 = vector.load %arg8[%c0_26, %c0_27] : memref<40x1xf32, #tpu.memory_space<vmem>>, vector<40x1xf32>
      %36 = tpu.reciprocal %35 {approx = true} : vector<40x1xf32> -> vector<40x1xf32>
      %37 = arith.mulf %35, %36 : vector<40x1xf32>
      %cst_28 = arith.constant 2.000000e+00 : f32
      %38 = vector.broadcast %cst_28 : f32 to vector<40x1xf32>
      %39 = arith.subf %38, %37 : vector<40x1xf32>
      %40 = arith.mulf %36, %39 : vector<40x1xf32>
      %c0_29 = arith.constant 0 : index
      %c0_30 = arith.constant 0 : index
      %41 = vector.load %arg9[%c0_29, %c0_30] : memref<40x128xf32, #tpu.memory_space<vmem>>, vector<40x128xf32>
      %42 = vector.broadcast %40 : vector<40x1xf32> to vector<40x128xf32>
      %43 = arith.mulf %41, %42 : vector<40x128xf32>
      %c0_31 = arith.constant 0 : index
      %c0_32 = arith.constant 0 : index
      %c0_33 = arith.constant 0 : index
      %44 = vector.load %arg6[%c0_31, %c0_32, %c0_33] : memref<1x40x128xf32, #tpu.memory_space<vmem>>, vector<1x40x128xf32>
      %45 = vector.shape_cast %44 : vector<1x40x128xf32> to vector<40x128xf32>
      %46 = vector.shape_cast %43 : vector<40x128xf32> to vector<1x40x128xf32>
      tpu.vector_store %arg6[%c0_31, %c0_32, %c0_33], %46 {strides = array<i32>} : memref<1x40x128xf32, #tpu.memory_space<vmem>>, vector<1x40x128xf32>,
    } else {
    }
    return
  }
  func.func @transform_0(%arg0: i32, %arg1: i32, %arg2: i32) -> (i32, i32, i32) {
    %c0_i32 = arith.constant 0 : i32
    %c0_i32_0 = arith.constant 0 : i32
    return %arg0, %arg1, %c0_i32 : i32, i32, i32
  }
  func.func @transform_1(%arg0: i32, %arg1: i32, %arg2: i32) -> (i32, i32, i32) {
    %c0_i32 = arith.constant 0 : i32
    %c0_i32_0 = arith.constant 0 : i32
    return %arg0, %arg2, %c0_i32 : i32, i32, i32
  }
  func.func @transform_2(%arg0: i32, %arg1: i32, %arg2: i32) -> (i32, i32, i32) {
    %c0_i32 = arith.constant 0 : i32
    %c0_i32_0 = arith.constant 0 : i32
    return %arg0, %arg2, %c0_i32 : i32, i32, i32
  }
  func.func @transform_3(%arg0: i32, %arg1: i32, %arg2: i32) -> (i32, i32, i32) {
    %c0_i32 = arith.constant 0 : i32
    %c0_i32_0 = arith.constant 0 : i32
    return %arg0, %arg1, %c0_i32 : i32, i32, i32
  }
}

module attributes {stable_mosaic.version = 11 : i64} {
  func.func @_flash_kernel(%arg0: i32, %arg1: i32, %arg2: i32, %arg3: memref<1x192x128xf32, #tpu.memory_space<vmem>>, %arg4: memref<1x40x128xf32, #tpu.memory_space<vmem>>, %arg5: memref<1x40x256xf32, #tpu.memory_space<vmem>>, %arg6: memref<1x192x256xf32, #tpu.memory_space<vmem>>, %arg7: memref<192x1xf32, #tpu.memory_space<vmem>>, %arg8: memref<192x1xf32, #tpu.memory_space<vmem>>, %arg9: memref<192x256xf32, #tpu.memory_space<vmem>>) attributes {dimension_semantics = [#tpu.dimension_semantics<parallel>, #tpu.dimension_semantics<parallel>, #tpu.dimension_semantics<arbitrary>], iteration_bounds = array<i64: 16, 1, 1>, scalar_prefetch = 0 : i64, scratch_operands = 3 : i64, tpu.core_type = #tpu.core_type<tc>, window_params = [{transform_indices = @transform_0, window_bounds = array<i64: 1, 192, 128>}, {transform_indices = @transform_1, window_bounds = array<i64: 1, 40, 128>}, {transform_indices = @transform_2, window_bounds = array<i64: 1, 40, 256>}, {transform_indices = @transform_3, window_bounds = array<i64: 1, 192, 256>}]} {
    %c0_i32 = arith.constant 0 : i32
    %0 = arith.cmpi eq, %arg2, %c0_i32 : i32
    %1 = arith.extui %0 : i1 to i32
    %c0_i32_0 = arith.constant 0 : i32
    %2 = arith.cmpi ne, %1, %c0_i32_0 : i32
    scf.if %2 {
      %cst_27 = arith.constant -1.000000e+30 : f32
      %43 = vector.broadcast %cst_27 : f32 to vector<192x1xf32>
      %c0_28 = arith.constant 0 : index
      %c0_29 = arith.constant 0 : index
      %44 = vector.load %arg7[%c0_28, %c0_29] : memref<192x1xf32, #tpu.memory_space<vmem>>, vector<192x1xf32>
      tpu.vector_store %arg7[%c0_28, %c0_29], %43 {strides = array<i32>} : memref<192x1xf32, #tpu.memory_space<vmem>>, vector<192x1xf32>,
      %cst_30 = arith.constant 0.000000e+00 : f32
      %45 = vector.broadcast %cst_30 : f32 to vector<192x1xf32>
      %c0_31 = arith.constant 0 : index
      %c0_32 = arith.constant 0 : index
      %46 = vector.load %arg8[%c0_31, %c0_32] : memref<192x1xf32, #tpu.memory_space<vmem>>, vector<192x1xf32>
      tpu.vector_store %arg8[%c0_31, %c0_32], %45 {strides = array<i32>} : memref<192x1xf32, #tpu.memory_space<vmem>>, vector<192x1xf32>,
      %cst_33 = arith.constant 0.000000e+00 : f32
      %47 = vector.broadcast %cst_33 : f32 to vector<192x256xf32>
      %c0_34 = arith.constant 0 : index
      %c0_35 = arith.constant 0 : index
      %48 = vector.load %arg9[%c0_34, %c0_35] : memref<192x256xf32, #tpu.memory_space<vmem>>, vector<192x256xf32>
      tpu.vector_store %arg9[%c0_34, %c0_35], %47 {strides = array<i32>} : memref<192x256xf32, #tpu.memory_space<vmem>>, vector<192x256xf32>,
    } else {
    }
    %c0 = arith.constant 0 : index
    %c0_1 = arith.constant 0 : index
    %c0_2 = arith.constant 0 : index
    %3 = vector.load %arg3[%c0, %c0_1, %c0_2] : memref<1x192x128xf32, #tpu.memory_space<vmem>>, vector<1x192x128xf32>
    %4 = vector.shape_cast %3 : vector<1x192x128xf32> to vector<192x128xf32>
    %c0_3 = arith.constant 0 : index
    %c0_4 = arith.constant 0 : index
    %c0_5 = arith.constant 0 : index
    %5 = vector.load %arg4[%c0_3, %c0_4, %c0_5] : memref<1x40x128xf32, #tpu.memory_space<vmem>>, vector<1x40x128xf32>
    %6 = vector.shape_cast %5 : vector<1x40x128xf32> to vector<40x128xf32>
    %cst = arith.constant dense<0.000000e+00> : vector<192x40xf32>
    %7 = tpu.matmul %4, %6, %cst {dimension_numbers = #tpu.dot_dimension_numbers<[1], [1], [0], [0], [0, 0, 1, 0], [], []>} : vector<192x128xf32>, vector<40x128xf32>, vector<192x40xf32> -> vector<192x40xf32>
    %c40_i32 = arith.constant 40 : i32
    %8 = arith.muli %arg2, %c40_i32 : i32
    %9 = tpu.iota {dimensions = array<i32: 1>} : vector<192x40xi32>
    %10 = vector.broadcast %8 : i32 to vector<192x40xi32>
    %11 = arith.addi %10, %9 : vector<192x40xi32>
    %c36_i32 = arith.constant 36 : i32
    %12 = vector.broadcast %c36_i32 : i32 to vector<192x40xi32>
    %13 = arith.cmpi slt, %11, %12 : vector<192x40xi32>
    %cst_6 = arith.constant -1.000000e+30 : f32
    %14 = vector.broadcast %cst_6 : f32 to vector<192x40xf32>
    %15 = arith.select %13, %7, %14 : vector<192x40xi1>, vector<192x40xf32>
    %c0_7 = arith.constant 0 : index
    %c0_8 = arith.constant 0 : index
    %16 = vector.load %arg7[%c0_7, %c0_8] : memref<192x1xf32, #tpu.memory_space<vmem>>, vector<192x1xf32>
    %cst_9 = arith.constant dense<0xFF800000> : vector<192xf32>
    %17 = vector.multi_reduction <maximumf>, %15, %cst_9 [1] : vector<192x40xf32> to vector<192xf32>
    %18 = vector.shape_cast %17 : vector<192xf32> to vector<192x1xf32>
    %19 = arith.maximumf %16, %18 : vector<192x1xf32>
    %20 = arith.subf %16, %19 : vector<192x1xf32>
    %21 = math.exp %20 : vector<192x1xf32>
    %22 = vector.broadcast %19 : vector<192x1xf32> to vector<192x40xf32>
    %23 = arith.subf %15, %22 : vector<192x40xf32>
    %24 = math.exp %23 : vector<192x40xf32>
    %c0_10 = arith.constant 0 : index
    %c0_11 = arith.constant 0 : index
    %25 = vector.load %arg8[%c0_10, %c0_11] : memref<192x1xf32, #tpu.memory_space<vmem>>, vector<192x1xf32>
    %26 = arith.mulf %21, %25 : vector<192x1xf32>
    %cst_12 = arith.constant dense<0.000000e+00> : vector<192xf32>
    %27 = vector.multi_reduction <add>, %24, %cst_12 [1] : vector<192x40xf32> to vector<192xf32>
    %28 = vector.shape_cast %27 : vector<192xf32> to vector<192x1xf32>
    %29 = arith.addf %26, %28 : vector<192x1xf32>
    %c0_13 = arith.constant 0 : index
    %c0_14 = arith.constant 0 : index
    %30 = vector.load %arg8[%c0_13, %c0_14] : memref<192x1xf32, #tpu.memory_space<vmem>>, vector<192x1xf32>
    tpu.vector_store %arg8[%c0_13, %c0_14], %29 {strides = array<i32>} : memref<192x1xf32, #tpu.memory_space<vmem>>, vector<192x1xf32>,
    %c0_15 = arith.constant 0 : index
    %c0_16 = arith.constant 0 : index
    %31 = vector.load %arg9[%c0_15, %c0_16] : memref<192x256xf32, #tpu.memory_space<vmem>>, vector<192x256xf32>
    %32 = vector.broadcast %21 : vector<192x1xf32> to vector<192x256xf32>
    %33 = arith.mulf %32, %31 : vector<192x256xf32>
    %c0_17 = arith.constant 0 : index
    %c0_18 = arith.constant 0 : index
    %c0_19 = arith.constant 0 : index
    %34 = vector.load %arg5[%c0_17, %c0_18, %c0_19] : memref<1x40x256xf32, #tpu.memory_space<vmem>>, vector<1x40x256xf32>
    %35 = vector.shape_cast %34 : vector<1x40x256xf32> to vector<40x256xf32>
    %cst_20 = arith.constant dense<0.000000e+00> : vector<192x256xf32>
    %36 = tpu.matmul %24, %35, %cst_20 {dimension_numbers = #tpu.dot_dimension_numbers<[1], [0], [0], [1], [0, 0, 1, 1], [], []>} : vector<192x40xf32>, vector<40x256xf32>, vector<192x256xf32> -> vector<192x256xf32>
    %37 = arith.addf %33, %36 : vector<192x256xf32>
    %c0_21 = arith.constant 0 : index
    %c0_22 = arith.constant 0 : index
    %38 = vector.load %arg9[%c0_21, %c0_22] : memref<192x256xf32, #tpu.memory_space<vmem>>, vector<192x256xf32>
    tpu.vector_store %arg9[%c0_21, %c0_22], %37 {strides = array<i32>} : memref<192x256xf32, #tpu.memory_space<vmem>>, vector<192x256xf32>,
    %c0_23 = arith.constant 0 : index
    %c0_24 = arith.constant 0 : index
    %39 = vector.load %arg7[%c0_23, %c0_24] : memref<192x1xf32, #tpu.memory_space<vmem>>, vector<192x1xf32>
    tpu.vector_store %arg7[%c0_23, %c0_24], %19 {strides = array<i32>} : memref<192x1xf32, #tpu.memory_space<vmem>>, vector<192x1xf32>,
    %c0_i32_25 = arith.constant 0 : i32
    %40 = arith.cmpi eq, %arg2, %c0_i32_25 : i32
    %41 = arith.extui %40 : i1 to i32
    %c0_i32_26 = arith.constant 0 : i32
    %42 = arith.cmpi ne, %41, %c0_i32_26 : i32
    scf.if %42 {
      %c0_27 = arith.constant 0 : index
      %c0_28 = arith.constant 0 : index
      %43 = vector.load %arg8[%c0_27, %c0_28] : memref<192x1xf32, #tpu.memory_space<vmem>>, vector<192x1xf32>
      %44 = tpu.reciprocal %43 {approx = true} : vector<192x1xf32> -> vector<192x1xf32>
      %45 = arith.mulf %43, %44 : vector<192x1xf32>
      %cst_29 = arith.constant 2.000000e+00 : f32
      %46 = vector.broadcast %cst_29 : f32 to vector<192x1xf32>
      %47 = arith.subf %46, %45 : vector<192x1xf32>
      %48 = arith.mulf %44, %47 : vector<192x1xf32>
      %c0_30 = arith.constant 0 : index
      %c0_31 = arith.constant 0 : index
      %49 = vector.load %arg9[%c0_30, %c0_31] : memref<192x256xf32, #tpu.memory_space<vmem>>, vector<192x256xf32>
      %50 = vector.broadcast %48 : vector<192x1xf32> to vector<192x256xf32>
      %51 = arith.mulf %49, %50 : vector<192x256xf32>
      %c0_32 = arith.constant 0 : index
      %c0_33 = arith.constant 0 : index
      %c0_34 = arith.constant 0 : index
      %52 = vector.load %arg6[%c0_32, %c0_33, %c0_34] : memref<1x192x256xf32, #tpu.memory_space<vmem>>, vector<1x192x256xf32>
      %53 = vector.shape_cast %52 : vector<1x192x256xf32> to vector<192x256xf32>
      %54 = vector.shape_cast %51 : vector<192x256xf32> to vector<1x192x256xf32>
      tpu.vector_store %arg6[%c0_32, %c0_33, %c0_34], %54 {strides = array<i32>} : memref<1x192x256xf32, #tpu.memory_space<vmem>>, vector<1x192x256xf32>,
    } else {
    }
    return
  }
  func.func @transform_0(%arg0: i32, %arg1: i32, %arg2: i32) -> (i32, i32, i32) {
    %c0_i32 = arith.constant 0 : i32
    %c0_i32_0 = arith.constant 0 : i32
    return %arg0, %arg1, %c0_i32 : i32, i32, i32
  }
  func.func @transform_1(%arg0: i32, %arg1: i32, %arg2: i32) -> (i32, i32, i32) {
    %c0_i32 = arith.constant 0 : i32
    %c0_i32_0 = arith.constant 0 : i32
    return %arg0, %arg2, %c0_i32 : i32, i32, i32
  }
  func.func @transform_2(%arg0: i32, %arg1: i32, %arg2: i32) -> (i32, i32, i32) {
    %c0_i32 = arith.constant 0 : i32
    %c0_i32_0 = arith.constant 0 : i32
    return %arg0, %arg2, %c0_i32 : i32, i32, i32
  }
  func.func @transform_3(%arg0: i32, %arg1: i32, %arg2: i32) -> (i32, i32, i32) {
    %c0_i32 = arith.constant 0 : i32
    %c0_i32_0 = arith.constant 0 : i32
    return %arg0, %arg1, %c0_i32 : i32, i32, i32
  }
}

</mosaic_0001>

<llo_original>
// kernel: cross_attention.4
$region0: #{cross_attention.4}
  #allocation0 [shape = 'u32[]', space=smem, size = 0x4, offset = 0x4, fixed_abs, tag = 'smem constant byte address 0x4 - core index']
  #allocation1 [shape = 'u32[144,128]{1,0:T(1,128)}', space=vmem, size = 0x12000, scoped, tag = 'internal scratch']
  %s0 = inlined_call_operand.vmem [shape: f32[16,40,256], index: 0, kind: input, shape index: {}]
  %s1 = inlined_call_operand.vmem [shape: f32[256,128], index: 1, kind: input, shape index: {}]
  %s2 = inlined_call_operand.vmem [shape: f32[1,128], index: 2, kind: input, shape index: {}]
  %s3 = inlined_call_operand.vmem [shape: f32[16,40,128], index: 3, kind: output, shape index: {}]
  %s4 = sld [smem:[#allocation0]]
  $region45: #{cross_attention.4} parent=0
    _
  %s6 = ssub.s32 1, %s4
  %s7 = scalar_select 0, %s6, %s4
  loop: start=0, step=1, limit=18
  $region2: #{cross_attention.4} parent=0 // loop_pre_header
    _
  $region3: #{cross_attention.4} parent=0 // loop_header
    %s9 = sphi 0, %s13
    %p10 = scmp.ge.s32.totalorder %s9, 18
    %s16 = sphi 0, %s28
    %s17 = sphi 0, %s24
    %s18 = sphi 0, %s16
    %s19 = sphi 0, %s17
    %s20 = sphi 0, %s18
    %s21 = sphi 0, %s19
    %s33 = sphi 0, %s35
    %s36 = sphi 0, %s33
    %s37 = sphi 0, %s36
    %s53 = sphi 0, %s37
    %s57 = sphi 0, %s57
    %s59 = sphi 0, %s57
    %s60 = sphi 0, %s59
    %s74 = sphi 0, %s60
    %s78 = sphi 0, %s78
    %s80 = sphi 0, %s78
    %s81 = sphi 0, %s80
    %s95 = sphi 0, %s81
    %s103 = sphi 0, %s105
    %s106 = sphi 0, %s103
    %s107 = sphi 0, %s106
    %s123 = sphi 0, %s107
  $region4: #{cross_attention.4} parent=0 // loop_header_branch
    %12 = sbr.rel (%p10) target = $region8
  $region5: #{cross_attention.4} parent=0 // loop_body
    %s14 = ssub.s32 %s9, 1
    %s15 = ssub.s32 %s9, 2
    %s22 = sadd.s32 1, %s17
    %p23 = scmp.ge.s32.totalorder %s22, 1
    %s24 = scalar_select %p23, 0, %s22
    %s25 = sadd.s32 1, %s16
    %s26 = scalar_select %p23, %s25, %s16
    %p27 = scmp.ge.s32.totalorder %s26, 16
    %s28 = scalar_select %p27, 0, %s26
    %s29 = ssub.s32 %s16, %s28
    %s30 = ssub.s32 %s17, %s24
    %s31 = sor.u32 %s29, %s30
    %p32 = scmp.eq.s32.totalorder %s31, 0
    %s34 = sadd.s32 %s33, 1
    %s35 = scalar_select %p32, %s33, %s34
    %p38 = pneg %p32
    %p39 = scmp.eq.s32.totalorder %s9, 15
    %p40 = por %p38, %p39
    %p41 = scmp.ne.s32.totalorder %s33, %s36
    %p42 = scmp.eq.s32.totalorder %s9, 0
    %p43 = por %p41, %p42
    %p44 = scmp.ne.s32.totalorder %s33, %s36
    %p45 = scmp.eq.s32.totalorder %s14, 15
    %p46 = por %p44, %p45
    %p47 = scmp.ne.s32.totalorder %s36, %s37
    %p48 = scmp.eq.s32.totalorder %s14, 0
    %p49 = por %p47, %p48
    %p50 = scmp.ne.s32.totalorder %s36, %s37
    %p51 = scmp.eq.s32.totalorder %s15, 15
    %p52 = por %p50, %p51
    %p54 = scmp.ne.s32.totalorder %s37, %s53
    %p55 = scmp.eq.s32.totalorder %s15, 0
    %p56 = por %p54, %p55
    %s58 = sadd.s32 %s57, 1
    %p61 = scmp.eq.s32.totalorder %s9, 15
    %p62 = scmp.ne.s32.totalorder %s57, %s59
    %p63 = scmp.eq.s32.totalorder %s9, 0
    %p64 = por %p62, %p63
    %p65 = scmp.ne.s32.totalorder %s57, %s59
    %p66 = scmp.eq.s32.totalorder %s14, 15
    %p67 = por %p65, %p66
    %p68 = scmp.ne.s32.totalorder %s59, %s60
    %p69 = scmp.eq.s32.totalorder %s14, 0
    %p70 = por %p68, %p69
    %p71 = scmp.ne.s32.totalorder %s59, %s60
    %p72 = scmp.eq.s32.totalorder %s15, 15
    %p73 = por %p71, %p72
    %p75 = scmp.ne.s32.totalorder %s60, %s74
    %p76 = scmp.eq.s32.totalorder %s15, 0
    %p77 = por %p75, %p76
    %s79 = sadd.s32 %s78, 1
    %p82 = scmp.eq.s32.totalorder %s9, 15
    %p83 = scmp.ne.s32.totalorder %s78, %s80
    %p84 = scmp.eq.s32.totalorder %s9, 0
    %p85 = por %p83, %p84
    %p86 = scmp.ne.s32.totalorder %s78, %s80
    %p87 = scmp.eq.s32.totalorder %s14, 15
    %p88 = por %p86, %p87
    %p89 = scmp.ne.s32.totalorder %s80, %s81
    %p90 = scmp.eq.s32.totalorder %s14, 0
    %p91 = por %p89, %p90
    %p92 = scmp.ne.s32.totalorder %s80, %s81
    %p93 = scmp.eq.s32.totalorder %s15, 15
    %p94 = por %p92, %p93
    %p96 = scmp.ne.s32.totalorder %s81, %s95
    %p97 = scmp.eq.s32.totalorder %s15, 0
    %p98 = por %p96, %p97
    %s99 = ssub.s32 %s16, %s28
    %s100 = ssub.s32 %s17, %s24
    %s101 = sor.u32 %s99, %s100
    %p102 = scmp.eq.s32.totalorder %s101, 0
    %s104 = sadd.s32 %s103, 1
    %s105 = scalar_select %p102, %s103, %s104
    %p108 = pneg %p102
    %p109 = scmp.eq.s32.totalorder %s9, 15
    %p110 = por %p108, %p109
    %p111 = scmp.ne.s32.totalorder %s103, %s106
    %p112 = scmp.eq.s32.totalorder %s9, 0
    %p113 = por %p111, %p112
    %p114 = scmp.ne.s32.totalorder %s103, %s106
    %p115 = scmp.eq.s32.totalorder %s14, 15
    %p116 = por %p114, %p115
    %p117 = scmp.ne.s32.totalorder %s106, %s107
    %p118 = scmp.eq.s32.totalorder %s14, 0
    %p119 = por %p117, %p118
    %p120 = scmp.ne.s32.totalorder %s106, %s107
    %p121 = scmp.eq.s32.totalorder %s15, 15
    %p122 = por %p120, %p121
    %p124 = scmp.ne.s32.totalorder %s107, %s123
    %p125 = scmp.eq.s32.totalorder %s15, 0
    %p126 = por %p124, %p125
    %p127 = scmp.le.s32.totalorder 1, %s9
    %p128 = scmp.lt.s32.totalorder %s9, 17
    %p129 = pnand %p127, %p128
    %p130 = pneg %p129
    // Predicated region
    $region9: #{cross_attention.4} parent=5 // pred_check
      _
    $region10: #{cross_attention.4} parent=5 // pred_check_branch
      %132 = sbr.rel (%p129) target = $region12
    $region11: #{cross_attention.4} parent=5 // pred_region
      %s133 = ssub.s32 %s9, 1
      // Predicated region
      $region13: #{cross_attention.4} parent=11 // pred_check
        %p134 = pneg %p70
      $region14: #{cross_attention.4} parent=11 // pred_check_branch
        %136 = sbr.rel (%p134) target = $region16
      $region15: #{cross_attention.4} parent=11 // pred_region
        _
      $region16: #{cross_attention.4} parent=11 // pred_fallthru
        _
      // Predicated region
      $region17: #{cross_attention.4} parent=11 // pred_check
        %p137 = pneg %p91
      $region18: #{cross_attention.4} parent=11 // pred_check_branch
        %139 = sbr.rel (%p137) target = $region20
      $region19: #{cross_attention.4} parent=11 // pred_region
        _
      $region20: #{cross_attention.4} parent=11 // pred_fallthru
        _
    $region12: #{cross_attention.4} parent=5 // pred_fallthru
      _
    %p140 = scmp.lt.s32.totalorder %s9, 16
    // Predicated region
    $region21: #{cross_attention.4} parent=5 // pred_check
      %p141 = pneg %p140
    $region22: #{cross_attention.4} parent=5 // pred_check_branch
      %143 = sbr.rel (%p141) target = $region24
    $region23: #{cross_attention.4} parent=5 // pred_region
      // Predicated region
      $region25: #{cross_attention.4} parent=23 // pred_check
        %p144 = pneg %p43
      $region26: #{cross_attention.4} parent=23 // pred_check_branch
        %146 = sbr.rel (%p144) target = $region28
      $region27: #{cross_attention.4} parent=23 // pred_region
        %s147 = smul.u32 5, %s17
        %p148 = scmp.lt.s32.totalorder %s16, 15
        %s149 = scalar_select %p148, %s16, 15
        %p150 = scmp.lt.s32.totalorder %s147, 4
        %s151 = scalar_select %p150, %s147, 4
        %s152 = smul.addr %s151, 2
        %s153 = smul.addr %s149, 10
        %s154 = sadd.s32 %s152, %s153
        %s155 = smul.addr %s154, 8
        %s156 = scalar_lea.vmem %s0, %s155
        %s157 = smul.u32 5, %s17
      $region28: #{cross_attention.4} parent=23 // pred_fallthru
        _
    $region24: #{cross_attention.4} parent=5 // pred_fallthru
      _
    %p158 = scmp.le.s32.totalorder 1, %s9
    %p159 = scmp.lt.s32.totalorder %s9, 17
    %p160 = pnand %p158, %p159
    %p161 = pneg %p160
    // Predicated region
    $region29: #{cross_attention.4} parent=5 // pred_check
      _
    $region30: #{cross_attention.4} parent=5 // pred_check_branch
      %163 = sbr.rel (%p160) target = $region32
    $region31: #{cross_attention.4} parent=5 // pred_region
      %s164 = ssub.s32 %s9, 1
      %s165 = smul.u32 5, %s19
      %p166 = scmp.lt.s32.totalorder %s18, 15
      %s167 = scalar_select %p166, %s18, 15
      %p168 = scmp.lt.s32.totalorder %s165, 4
      %s169 = scalar_select %p168, %s165, 4
      %s170 = smul.addr %s169, 2
      %s171 = smul.addr %s167, 10
      %s172 = sadd.s32 %s170, %s171
      %s173 = smul.addr %s172, 8
      %s174 = scalar_lea.vmem %s0, %s173
      %p175 = pneg %p49
      %p176 = pneg %p46
      %p177 = pneg %p70
      %p178 = pneg %p67
      %p179 = pneg %p91
      %p180 = pneg %p88
      %p181 = pneg %p119
      %p182 = pneg %p116
      %s183 = smul.u32 5, %s19
      %p184 = scmp.lt.s32.totalorder %s18, 15
      %s185 = scalar_select %p184, %s18, 15
      %p186 = scmp.lt.s32.totalorder %s183, 4
      %s187 = scalar_select %p186, %s183, 4
      %s188 = smul.addr %s185, 5
      %s189 = sadd.s32 %s187, %s188
      %s190 = smul.addr %s189, 8
      %s191 = scalar_lea.vmem %s3, %s190
      %s192 = smul.u32 5, %s19
      %p193 = scmp.lt.s32.totalorder %s18, 15
      %s194 = scalar_select %p193, %s18, 15
      %p195 = scmp.lt.s32.totalorder %s192, 4
      %s196 = scalar_select %p195, %s192, 4
      %s197 = smul.addr %s196, 2
      %s198 = smul.addr %s194, 10
      %s199 = sadd.s32 %s197, %s198
      %s200 = smul.addr %s199, 8
      %s201 = scalar_lea.vmem %s0, %s200
      %s202 = smul.u32 5, %s19
      %s203 = smul.u32 5, %s19
      %p204 = scmp.lt.s32.totalorder %s18, 15
      %s205 = scalar_select %p204, %s18, 15
      %p206 = scmp.lt.s32.totalorder %s203, 4
      %s207 = scalar_select %p206, %s203, 4
      %s208 = smul.addr %s205, 5
      %s209 = sadd.s32 %s207, %s208
      %s210 = smul.addr %s209, 8
      %s211 = scalar_lea.vmem %s3, %s210
      %s212 = smul.u32 5, %s19
      %v213 = vld [vmem:[%s201] sm:$0xff]
      %v214 = vld [vmem:[%s201 + $0x8] sm:$0xff]
      %v215 = vld [vmem:[%s201 + $0x10] sm:$0xff]
      %v216 = vld [vmem:[%s201 + $0x18] sm:$0xff]
      %v217 = vld [vmem:[%s201 + $0x20] sm:$0xff]
      %v218 = vld [vmem:[%s201 + $0x28] sm:$0xff]
      %v219 = vld [vmem:[%s201 + $0x30] sm:$0xff]
      %v220 = vld [vmem:[%s201 + $0x38] sm:$0xff]
      %v221 = vld [vmem:[%s201 + $0x40] sm:$0xff]
      %v222 = vld [vmem:[%s201 + $0x48] sm:$0xff]
      %v223 = vld [vmem:[%s1] sm:$0xff]
      %v224 = vld [vmem:[%s1 + $0x8] sm:$0xff]
      %v225 = vld [vmem:[%s1 + $0x10] sm:$0xff]
      %v226 = vld [vmem:[%s1 + $0x18] sm:$0xff]
      %v227 = vld [vmem:[%s1 + $0x20] sm:$0xff]
      %v228 = vld [vmem:[%s1 + $0x28] sm:$0xff]
      %v229 = vld [vmem:[%s1 + $0x30] sm:$0xff]
      %v230 = vld [vmem:[%s1 + $0x38] sm:$0xff]
      %v231 = vld [vmem:[%s1 + $0x40] sm:$0xff]
      %v232 = vld [vmem:[%s1 + $0x48] sm:$0xff]
      %v233 = vld [vmem:[%s1 + $0x50] sm:$0xff]
      %v234 = vld [vmem:[%s1 + $0x58] sm:$0xff]
      %v235 = vld [vmem:[%s1 + $0x60] sm:$0xff]
      %v236 = vld [vmem:[%s1 + $0x68] sm:$0xff]
      %v237 = vld [vmem:[%s1 + $0x70] sm:$0xff]
      %v238 = vld [vmem:[%s1 + $0x78] sm:$0xff]
      %v239 = vld [vmem:[%s1 + $0x80] sm:$0xff]
      %v240 = vld [vmem:[%s1 + $0x88] sm:$0xff]
      %v241 = vld [vmem:[%s1 + $0x90] sm:$0xff]
      %v242 = vld [vmem:[%s1 + $0x98] sm:$0xff]
      %v243 = vld [vmem:[%s1 + $0xa0] sm:$0xff]
      %v244 = vld [vmem:[%s1 + $0xa8] sm:$0xff]
      %v245 = vld [vmem:[%s1 + $0xb0] sm:$0xff]
      %v246 = vld [vmem:[%s1 + $0xb8] sm:$0xff]
      %v247 = vld [vmem:[%s1 + $0xc0] sm:$0xff]
      %v248 = vld [vmem:[%s1 + $0xc8] sm:$0xff]
      %v249 = vld [vmem:[%s1 + $0xd0] sm:$0xff]
      %v250 = vld [vmem:[%s1 + $0xd8] sm:$0xff]
      %v251 = vld [vmem:[%s1 + $0xe0] sm:$0xff]
      %v252 = vld [vmem:[%s1 + $0xe8] sm:$0xff]
      %v253 = vld [vmem:[%s1 + $0xf0] sm:$0xff]
      %v254 = vld [vmem:[%s1 + $0xf8] sm:$0xff]
      %v255 = vld [vmem:[%s2] sm:$0x1]
      %v257 = vlaneseq
      %v258 = vshrl.u32 %v257, 7
      %v259 = vsub.s32 0, %v258
      %v260 = vrot.slane %v255, %v259
      %262 = vmatprep.subr.mxu0 0.0
      %263 = vmatpush1.msra.mxu0 %v223
      %264 = vmatprep.subr.mxu0 0.0
      %265 = vmatpush1.msra.mxu0 %v224
      %266 = vmatprep.subr.mxu0 0.0
      %267 = vmatpush1.msra.mxu0 %v225
      %268 = vmatprep.subr.mxu0 0.0
      %269 = vmatpush1.msra.mxu0 %v226
      %270 = vmatprep.subr.mxu0 0.0
      %271 = vmatpush1.msra.mxu0 %v227
      %272 = vmatprep.subr.mxu0 0.0
      %273 = vmatpush1.msra.mxu0 %v228
      %274 = vmatprep.subr.mxu0 0.0
      %275 = vmatpush1.msra.mxu0 %v229
      %276 = vmatprep.subr.mxu0 0.0
      %277 = vmatpush1.msra.mxu0 %v230
      %278 = vmatprep.subr.mxu0 0.0
      %279 = vmatpush1.msra.mxu0 %v231
      %280 = vmatprep.subr.mxu0 0.0
      %281 = vmatpush1.msra.mxu0 %v232
      %282 = vmatprep.subr.mxu0 0.0
      %283 = vmatpush1.msra.mxu0 %v233
      %284 = vmatprep.subr.mxu0 0.0
      %285 = vmatpush1.msra.mxu0 %v234
      %286 = vmatprep.subr.mxu0 0.0
      %287 = vmatpush1.msra.mxu0 %v235
      %288 = vmatprep.subr.mxu0 0.0
      %289 = vmatpush1.msra.mxu0 %v236
      %290 = vmatprep.subr.mxu0 0.0
      %291 = vmatpush1.msra.mxu0 %v237
      %292 = vmatprep.subr.mxu0 0.0
      %293 = vmatpush1.msra.mxu0 %v238
      %294 = vmatprep.subr.mxu0 0.0
      %295 = vmatpush1.msra.mxu0 %v239
      %296 = vmatprep.subr.mxu0 0.0
      %297 = vmatpush1.msra.mxu0 %v240
      %298 = vmatprep.subr.mxu0 0.0
      %299 = vmatpush1.msra.mxu0 %v241
      %300 = vmatprep.subr.mxu0 0.0
      %301 = vmatpush1.msra.mxu0 %v242
      %302 = vmatprep.subr.mxu0 0.0
      %303 = vmatpush1.msra.mxu0 %v243
      %304 = vmatprep.subr.mxu0 0.0
      %305 = vmatpush1.msra.mxu0 %v244
      %306 = vmatprep.subr.mxu0 0.0
      %307 = vmatpush1.msra.mxu0 %v245
      %308 = vmatprep.subr.mxu0 0.0
      %309 = vmatpush1.msra.mxu0 %v246
      %310 = vmatprep.subr.mxu0 0.0
      %311 = vmatpush1.msra.mxu0 %v247
      %312 = vmatprep.subr.mxu0 0.0
      %313 = vmatpush1.msra.mxu0 %v248
      %314 = vmatprep.subr.mxu0 0.0
      %315 = vmatpush1.msra.mxu0 %v249
      %316 = vmatprep.subr.mxu0 0.0
      %317 = vmatpush1.msra.mxu0 %v250
      %318 = vmatprep.subr.mxu0 0.0
      %319 = vmatpush1.msra.mxu0 %v251
      %320 = vmatprep.subr.mxu0 0.0
      %321 = vmatpush1.msra.mxu0 %v252
      %322 = vmatprep.subr.mxu0 0.0
      %323 = vmatpush1.msra.mxu0 %v253
      %324 = vmatprep.subr.mxu0 0.0
      %325 = vmatpush1.msra.mxu0 %v254
      %326 = vmatprep.mubr.f32.mxu0 %v214
      %327 = vmatmul.mubr.f32.gmra.mrb[0].mxu0 %v213
      %v328 = vpop.f32.mrb[0].mxu0
      %v329 = vadd.f32 %v260, %v328
      %v330 = vpop.f32.mrb[0].mxu0
      %331 = vmatprep.mubr.f32.mxu0 %v216
      %332 = vmatmul.mubr.f32.gmra.mrb[0].mxu0 %v215
      %v333 = vpop.f32.mrb[0].mxu0
      %v334 = vadd.f32 %v260, %v333
      %v335 = vpop.f32.mrb[0].mxu0
      %336 = vmatprep.mubr.f32.mxu0 %v218
      %337 = vmatmul.mubr.f32.gmra.mrb[0].mxu0 %v217
      %v338 = vpop.f32.mrb[0].mxu0
      %v339 = vadd.f32 %v260, %v338
      %v340 = vpop.f32.mrb[0].mxu0
      %341 = vmatprep.mubr.f32.mxu0 %v220
      %342 = vmatmul.mubr.f32.gmra.mrb[0].mxu0 %v219
      %v343 = vpop.f32.mrb[0].mxu0
      %v344 = vadd.f32 %v260, %v343
      %v345 = vpop.f32.mrb[0].mxu0
      %346 = vmatprep.mubr.f32.mxu0 %v222
      %347 = vmatmul.mubr.f32.gmra.mrb[0].mxu0 %v221
      %v348 = vpop.f32.mrb[0].mxu0
      %v349 = vadd.f32 %v260, %v348
      %v350 = vpop.f32.mrb[0].mxu0
      %351 = vdwg.mxu0
      %352 = vst [vmem:[%s211] sm:$0xff] %v329
      %353 = vst [vmem:[%s211 + $0x8] sm:$0xff] %v334
      %354 = vst [vmem:[%s211 + $0x10] sm:$0xff] %v339
      %355 = vst [vmem:[%s211 + $0x18] sm:$0xff] %v344
      %356 = vst [vmem:[%s211 + $0x20] sm:$0xff] %v349
      %s357 = smul.u32 5, %s19
      %p358 = scmp.lt.s32.totalorder %s18, 15
      %s359 = scalar_select %p358, %s18, 15
      %p360 = scmp.lt.s32.totalorder %s357, 4
      %s361 = scalar_select %p360, %s357, 4
      %s362 = smul.addr %s359, 5
      %s363 = sadd.s32 %s361, %s362
      %s364 = smul.addr %s363, 8
      %s365 = scalar_lea.vmem %s3, %s364
      // Predicated region
      $region33: #{cross_attention.4} parent=31 // pred_check
        %p366 = pneg %p116
      $region34: #{cross_attention.4} parent=31 // pred_check_branch
        %368 = sbr.rel (%p366) target = $region36
      $region35: #{cross_attention.4} parent=31 // pred_region
        %s369 = smul.u32 5, %s19
      $region36: #{cross_attention.4} parent=31 // pred_fallthru
        _
    $region32: #{cross_attention.4} parent=5 // pred_fallthru
      _
    %p370 = scmp.le.s32.totalorder 2, %s9
    // Predicated region
    $region37: #{cross_attention.4} parent=5 // pred_check
      %p371 = pneg %p370
    $region38: #{cross_attention.4} parent=5 // pred_check_branch
      %373 = sbr.rel (%p371) target = $region40
    $region39: #{cross_attention.4} parent=5 // pred_region
      %s374 = ssub.s32 %s9, 2
      // Predicated region
      $region41: #{cross_attention.4} parent=39 // pred_check
        %p375 = pneg %p122
      $region42: #{cross_attention.4} parent=39 // pred_check_branch
        %377 = sbr.rel (%p375) target = $region44
      $region43: #{cross_attention.4} parent=39 // pred_region
        %s378 = smul.u32 5, %s21
        %p379 = scmp.lt.s32.totalorder %s20, 15
        %s380 = scalar_select %p379, %s20, 15
        %p381 = scmp.lt.s32.totalorder %s378, 4
        %s382 = scalar_select %p381, %s378, 4
        %s383 = smul.addr %s380, 5
        %s384 = sadd.s32 %s382, %s383
        %s385 = smul.addr %s384, 8
        %s386 = scalar_lea.vmem %s3, %s385
      $region44: #{cross_attention.4} parent=39 // pred_fallthru
        _
    $region40: #{cross_attention.4} parent=5 // pred_fallthru
      _
  $region6: #{cross_attention.4} parent=0 // loop_footer
    %s13 = sadd.s32 1, %s9
  $region7: #{cross_attention.4} parent=0 // loop_footer_branch
    %8 = sbr.rel target = $region3
  $region8: #{cross_attention.4} parent=0 // loop_exit
    _

// kernel: cross_attention.5
$region0: #{cross_attention.5}
  #allocation0 [shape = 'u32[]', space=smem, size = 0x4, offset = 0x4, fixed_abs, tag = 'smem constant byte address 0x4 - core index']
  #allocation1 [shape = 'u32[144,128]{1,0:T(1,128)}', space=vmem, size = 0x12000, scoped, tag = 'internal scratch']
  %s0 = inlined_call_operand.vmem [shape: f32[16,192,128], index: 0, kind: input, shape index: {}]
  %s1 = inlined_call_operand.vmem [shape: f32[128,128], index: 1, kind: input, shape index: {}]
  %s2 = inlined_call_operand.vmem [shape: f32[1,128], index: 2, kind: input, shape index: {}]
  %s3 = inlined_call_operand.vmem [shape: f32[16,192,128], index: 3, kind: output, shape index: {}]
  %s4 = sld [smem:[#allocation0]]
  $region45: #{cross_attention.5} parent=0
    _
  %s6 = ssub.s32 1, %s4
  %s7 = scalar_select 0, %s6, %s4
  loop: start=0, step=1, limit=18
  $region2: #{cross_attention.5} parent=0 // loop_pre_header
    _
  $region3: #{cross_attention.5} parent=0 // loop_header
    %s9 = sphi 0, %s13
    %p10 = scmp.ge.s32.totalorder %s9, 18
    %s16 = sphi 0, %s28
    %s17 = sphi 0, %s24
    %s18 = sphi 0, %s16
    %s19 = sphi 0, %s17
    %s20 = sphi 0, %s18
    %s21 = sphi 0, %s19
    %s33 = sphi 0, %s35
    %s36 = sphi 0, %s33
    %s37 = sphi 0, %s36
    %s53 = sphi 0, %s37
    %s57 = sphi 0, %s57
    %s59 = sphi 0, %s57
    %s60 = sphi 0, %s59
    %s74 = sphi 0, %s60
    %s78 = sphi 0, %s78
    %s80 = sphi 0, %s78
    %s81 = sphi 0, %s80
    %s95 = sphi 0, %s81
    %s103 = sphi 0, %s105
    %s106 = sphi 0, %s103
    %s107 = sphi 0, %s106
    %s123 = sphi 0, %s107
  $region4: #{cross_attention.5} parent=0 // loop_header_branch
    %12 = sbr.rel (%p10) target = $region8
  $region5: #{cross_attention.5} parent=0 // loop_body
    %s14 = ssub.s32 %s9, 1
    %s15 = ssub.s32 %s9, 2
    %s22 = sadd.s32 1, %s17
    %p23 = scmp.ge.s32.totalorder %s22, 1
    %s24 = scalar_select %p23, 0, %s22
    %s25 = sadd.s32 1, %s16
    %s26 = scalar_select %p23, %s25, %s16
    %p27 = scmp.ge.s32.totalorder %s26, 16
    %s28 = scalar_select %p27, 0, %s26
    %s29 = ssub.s32 %s16, %s28
    %s30 = ssub.s32 %s17, %s24
    %s31 = sor.u32 %s29, %s30
    %p32 = scmp.eq.s32.totalorder %s31, 0
    %s34 = sadd.s32 %s33, 1
    %s35 = scalar_select %p32, %s33, %s34
    %p38 = pneg %p32
    %p39 = scmp.eq.s32.totalorder %s9, 15
    %p40 = por %p38, %p39
    %p41 = scmp.ne.s32.totalorder %s33, %s36
    %p42 = scmp.eq.s32.totalorder %s9, 0
    %p43 = por %p41, %p42
    %p44 = scmp.ne.s32.totalorder %s33, %s36
    %p45 = scmp.eq.s32.totalorder %s14, 15
    %p46 = por %p44, %p45
    %p47 = scmp.ne.s32.totalorder %s36, %s37
    %p48 = scmp.eq.s32.totalorder %s14, 0
    %p49 = por %p47, %p48
    %p50 = scmp.ne.s32.totalorder %s36, %s37
    %p51 = scmp.eq.s32.totalorder %s15, 15
    %p52 = por %p50, %p51
    %p54 = scmp.ne.s32.totalorder %s37, %s53
    %p55 = scmp.eq.s32.totalorder %s15, 0
    %p56 = por %p54, %p55
    %s58 = sadd.s32 %s57, 1
    %p61 = scmp.eq.s32.totalorder %s9, 15
    %p62 = scmp.ne.s32.totalorder %s57, %s59
    %p63 = scmp.eq.s32.totalorder %s9, 0
    %p64 = por %p62, %p63
    %p65 = scmp.ne.s32.totalorder %s57, %s59
    %p66 = scmp.eq.s32.totalorder %s14, 15
    %p67 = por %p65, %p66
    %p68 = scmp.ne.s32.totalorder %s59, %s60
    %p69 = scmp.eq.s32.totalorder %s14, 0
    %p70 = por %p68, %p69
    %p71 = scmp.ne.s32.totalorder %s59, %s60
    %p72 = scmp.eq.s32.totalorder %s15, 15
    %p73 = por %p71, %p72
    %p75 = scmp.ne.s32.totalorder %s60, %s74
    %p76 = scmp.eq.s32.totalorder %s15, 0
    %p77 = por %p75, %p76
    %s79 = sadd.s32 %s78, 1
    %p82 = scmp.eq.s32.totalorder %s9, 15
    %p83 = scmp.ne.s32.totalorder %s78, %s80
    %p84 = scmp.eq.s32.totalorder %s9, 0
    %p85 = por %p83, %p84
    %p86 = scmp.ne.s32.totalorder %s78, %s80
    %p87 = scmp.eq.s32.totalorder %s14, 15
    %p88 = por %p86, %p87
    %p89 = scmp.ne.s32.totalorder %s80, %s81
    %p90 = scmp.eq.s32.totalorder %s14, 0
    %p91 = por %p89, %p90
    %p92 = scmp.ne.s32.totalorder %s80, %s81
    %p93 = scmp.eq.s32.totalorder %s15, 15
    %p94 = por %p92, %p93
    %p96 = scmp.ne.s32.totalorder %s81, %s95
    %p97 = scmp.eq.s32.totalorder %s15, 0
    %p98 = por %p96, %p97
    %s99 = ssub.s32 %s16, %s28
    %s100 = ssub.s32 %s17, %s24
    %s101 = sor.u32 %s99, %s100
    %p102 = scmp.eq.s32.totalorder %s101, 0
    %s104 = sadd.s32 %s103, 1
    %s105 = scalar_select %p102, %s103, %s104
    %p108 = pneg %p102
    %p109 = scmp.eq.s32.totalorder %s9, 15
    %p110 = por %p108, %p109
    %p111 = scmp.ne.s32.totalorder %s103, %s106
    %p112 = scmp.eq.s32.totalorder %s9, 0
    %p113 = por %p111, %p112
    %p114 = scmp.ne.s32.totalorder %s103, %s106
    %p115 = scmp.eq.s32.totalorder %s14, 15
    %p116 = por %p114, %p115
    %p117 = scmp.ne.s32.totalorder %s106, %s107
    %p118 = scmp.eq.s32.totalorder %s14, 0
    %p119 = por %p117, %p118
    %p120 = scmp.ne.s32.totalorder %s106, %s107
    %p121 = scmp.eq.s32.totalorder %s15, 15
    %p122 = por %p120, %p121
    %p124 = scmp.ne.s32.totalorder %s107, %s123
    %p125 = scmp.eq.s32.totalorder %s15, 0
    %p126 = por %p124, %p125
    %p127 = scmp.le.s32.totalorder 1, %s9
    %p128 = scmp.lt.s32.totalorder %s9, 17
    %p129 = pnand %p127, %p128
    %p130 = pneg %p129
    // Predicated region
    $region9: #{cross_attention.5} parent=5 // pred_check
      _
    $region10: #{cross_attention.5} parent=5 // pred_check_branch
      %132 = sbr.rel (%p129) target = $region12
    $region11: #{cross_attention.5} parent=5 // pred_region
      %s133 = ssub.s32 %s9, 1
      // Predicated region
      $region13: #{cross_attention.5} parent=11 // pred_check
        %p134 = pneg %p70
      $region14: #{cross_attention.5} parent=11 // pred_check_branch
        %136 = sbr.rel (%p134) target = $region16
      $region15: #{cross_attention.5} parent=11 // pred_region
        _
      $region16: #{cross_attention.5} parent=11 // pred_fallthru
        _
      // Predicated region
      $region17: #{cross_attention.5} parent=11 // pred_check
        %p137 = pneg %p91
      $region18: #{cross_attention.5} parent=11 // pred_check_branch
        %139 = sbr.rel (%p137) target = $region20
      $region19: #{cross_attention.5} parent=11 // pred_region
        _
      $region20: #{cross_attention.5} parent=11 // pred_fallthru
        _
    $region12: #{cross_attention.5} parent=5 // pred_fallthru
      _
    %p140 = scmp.lt.s32.totalorder %s9, 16
    // Predicated region
    $region21: #{cross_attention.5} parent=5 // pred_check
      %p141 = pneg %p140
    $region22: #{cross_attention.5} parent=5 // pred_check_branch
      %143 = sbr.rel (%p141) target = $region24
    $region23: #{cross_attention.5} parent=5 // pred_region
      // Predicated region
      $region25: #{cross_attention.5} parent=23 // pred_check
        %p144 = pneg %p43
      $region26: #{cross_attention.5} parent=23 // pred_check_branch
        %146 = sbr.rel (%p144) target = $region28
      $region27: #{cross_attention.5} parent=23 // pred_region
        %s147 = smul.u32 24, %s17
        %p148 = scmp.lt.s32.totalorder %s16, 15
        %s149 = scalar_select %p148, %s16, 15
        %p150 = scmp.lt.s32.totalorder %s147, 23
        %s151 = scalar_select %p150, %s147, 23
        %s152 = smul.addr %s149, 24
        %s153 = sadd.s32 %s151, %s152
        %s154 = smul.addr %s153, 8
        %s155 = scalar_lea.vmem %s0, %s154
        %s156 = smul.u32 24, %s17
      $region28: #{cross_attention.5} parent=23 // pred_fallthru
        _
    $region24: #{cross_attention.5} parent=5 // pred_fallthru
      _
    %p157 = scmp.le.s32.totalorder 1, %s9
    %p158 = scmp.lt.s32.totalorder %s9, 17
    %p159 = pnand %p157, %p158
    %p160 = pneg %p159
    // Predicated region
    $region29: #{cross_attention.5} parent=5 // pred_check
      _
    $region30: #{cross_attention.5} parent=5 // pred_check_branch
      %162 = sbr.rel (%p159) target = $region32
    $region31: #{cross_attention.5} parent=5 // pred_region
      %s163 = ssub.s32 %s9, 1
      %s164 = smul.u32 24, %s19
      %p165 = scmp.lt.s32.totalorder %s18, 15
      %s166 = scalar_select %p165, %s18, 15
      %p167 = scmp.lt.s32.totalorder %s164, 23
      %s168 = scalar_select %p167, %s164, 23
      %s169 = smul.addr %s166, 24
      %s170 = sadd.s32 %s168, %s169
      %s171 = smul.addr %s170, 8
      %s172 = scalar_lea.vmem %s0, %s171
      %p173 = pneg %p49
      %p174 = pneg %p46
      %p175 = pneg %p70
      %p176 = pneg %p67
      %p177 = pneg %p91
      %p178 = pneg %p88
      %p179 = pneg %p119
      %p180 = pneg %p116
      %s181 = smul.u32 24, %s19
      %p182 = scmp.lt.s32.totalorder %s18, 15
      %s183 = scalar_select %p182, %s18, 15
      %p184 = scmp.lt.s32.totalorder %s181, 23
      %s185 = scalar_select %p184, %s181, 23
      %s186 = smul.addr %s183, 24
      %s187 = sadd.s32 %s185, %s186
      %s188 = smul.addr %s187, 8
      %s189 = scalar_lea.vmem %s3, %s188
      %s190 = smul.u32 24, %s19
      %p191 = scmp.lt.s32.totalorder %s18, 15
      %s192 = scalar_select %p191, %s18, 15
      %p193 = scmp.lt.s32.totalorder %s190, 23
      %s194 = scalar_select %p193, %s190, 23
      %s195 = smul.addr %s192, 24
      %s196 = sadd.s32 %s194, %s195
      %s197 = smul.addr %s196, 8
      %s198 = scalar_lea.vmem %s0, %s197
      %s199 = smul.u32 24, %s19
      %s200 = smul.u32 24, %s19
      %p201 = scmp.lt.s32.totalorder %s18, 15
      %s202 = scalar_select %p201, %s18, 15
      %p203 = scmp.lt.s32.totalorder %s200, 23
      %s204 = scalar_select %p203, %s200, 23
      %s205 = smul.addr %s202, 24
      %s206 = sadd.s32 %s204, %s205
      %s207 = smul.addr %s206, 8
      %s208 = scalar_lea.vmem %s3, %s207
      %s209 = smul.u32 24, %s19
      %v210 = vld [vmem:[%s198] sm:$0xff]
      %v211 = vld [vmem:[%s198 + $0x8] sm:$0xff]
      %v212 = vld [vmem:[%s198 + $0x10] sm:$0xff]
      %v213 = vld [vmem:[%s198 + $0x18] sm:$0xff]
      %v214 = vld [vmem:[%s198 + $0x20] sm:$0xff]
      %v215 = vld [vmem:[%s198 + $0x28] sm:$0xff]
      %v216 = vld [vmem:[%s198 + $0x30] sm:$0xff]
      %v217 = vld [vmem:[%s198 + $0x38] sm:$0xff]
      %v218 = vld [vmem:[%s198 + $0x40] sm:$0xff]
      %v219 = vld [vmem:[%s198 + $0x48] sm:$0xff]
      %v220 = vld [vmem:[%s198 + $0x50] sm:$0xff]
      %v221 = vld [vmem:[%s198 + $0x58] sm:$0xff]
      %v222 = vld [vmem:[%s198 + $0x60] sm:$0xff]
      %v223 = vld [vmem:[%s198 + $0x68] sm:$0xff]
      %v224 = vld [vmem:[%s198 + $0x70] sm:$0xff]
      %v225 = vld [vmem:[%s198 + $0x78] sm:$0xff]
      %v226 = vld [vmem:[%s198 + $0x80] sm:$0xff]
      %v227 = vld [vmem:[%s198 + $0x88] sm:$0xff]
      %v228 = vld [vmem:[%s198 + $0x90] sm:$0xff]
      %v229 = vld [vmem:[%s198 + $0x98] sm:$0xff]
      %v230 = vld [vmem:[%s198 + $0xa0] sm:$0xff]
      %v231 = vld [vmem:[%s198 + $0xa8] sm:$0xff]
      %v232 = vld [vmem:[%s198 + $0xb0] sm:$0xff]
      %v233 = vld [vmem:[%s198 + $0xb8] sm:$0xff]
      %v234 = vld [vmem:[%s1] sm:$0xff]
      %v235 = vld [vmem:[%s1 + $0x8] sm:$0xff]
      %v236 = vld [vmem:[%s1 + $0x10] sm:$0xff]
      %v237 = vld [vmem:[%s1 + $0x18] sm:$0xff]
      %v238 = vld [vmem:[%s1 + $0x20] sm:$0xff]
      %v239 = vld [vmem:[%s1 + $0x28] sm:$0xff]
      %v240 = vld [vmem:[%s1 + $0x30] sm:$0xff]
      %v241 = vld [vmem:[%s1 + $0x38] sm:$0xff]
      %v242 = vld [vmem:[%s1 + $0x40] sm:$0xff]
      %v243 = vld [vmem:[%s1 + $0x48] sm:$0xff]
      %v244 = vld [vmem:[%s1 + $0x50] sm:$0xff]
      %v245 = vld [vmem:[%s1 + $0x58] sm:$0xff]
      %v246 = vld [vmem:[%s1 + $0x60] sm:$0xff]
      %v247 = vld [vmem:[%s1 + $0x68] sm:$0xff]
      %v248 = vld [vmem:[%s1 + $0x70] sm:$0xff]
      %v249 = vld [vmem:[%s1 + $0x78] sm:$0xff]
      %v250 = vld [vmem:[%s2] sm:$0x1]
      %v252 = vlaneseq
      %v253 = vshrl.u32 %v252, 7
      %v254 = vsub.s32 0, %v253
      %v255 = vrot.slane %v250, %v254
      %257 = vmatprep.subr.mxu0 0.0
      %258 = vmatpush1.msra.mxu0 %v234
      %259 = vmatprep.subr.mxu0 0.0
      %260 = vmatpush1.msra.mxu0 %v235
      %261 = vmatprep.subr.mxu0 0.0
      %262 = vmatpush1.msra.mxu0 %v236
      %263 = vmatprep.subr.mxu0 0.0
      %264 = vmatpush1.msra.mxu0 %v237
      %265 = vmatprep.subr.mxu0 0.0
      %266 = vmatpush1.msra.mxu0 %v238
      %267 = vmatprep.subr.mxu0 0.0
      %268 = vmatpush1.msra.mxu0 %v239
      %269 = vmatprep.subr.mxu0 0.0
      %270 = vmatpush1.msra.mxu0 %v240
      %271 = vmatprep.subr.mxu0 0.0
      %272 = vmatpush1.msra.mxu0 %v241
      %273 = vmatprep.subr.mxu0 0.0
      %274 = vmatpush1.msra.mxu0 %v242
      %275 = vmatprep.subr.mxu0 0.0
      %276 = vmatpush1.msra.mxu0 %v243
      %277 = vmatprep.subr.mxu0 0.0
      %278 = vmatpush1.msra.mxu0 %v244
      %279 = vmatprep.subr.mxu0 0.0
      %280 = vmatpush1.msra.mxu0 %v245
      %281 = vmatprep.subr.mxu0 0.0
      %282 = vmatpush1.msra.mxu0 %v246
      %283 = vmatprep.subr.mxu0 0.0
      %284 = vmatpush1.msra.mxu0 %v247
      %285 = vmatprep.subr.mxu0 0.0
      %286 = vmatpush1.msra.mxu0 %v248
      %287 = vmatprep.subr.mxu0 0.0
      %288 = vmatpush1.msra.mxu0 %v249
      %289 = vmatprep.subr.mxu0 0.0
      %290 = vmatpush1.msra.mxu0 0.0
      %291 = vmatprep.subr.mxu0 0.0
      %292 = vmatpush1.msra.mxu0 0.0
      %293 = vmatprep.subr.mxu0 0.0
      %294 = vmatpush1.msra.mxu0 0.0
      %295 = vmatprep.subr.mxu0 0.0
      %296 = vmatpush1.msra.mxu0 0.0
      %297 = vmatprep.subr.mxu0 0.0
      %298 = vmatpush1.msra.mxu0 0.0
      %299 = vmatprep.subr.mxu0 0.0
      %300 = vmatpush1.msra.mxu0 0.0
      %301 = vmatprep.subr.mxu0 0.0
      %302 = vmatpush1.msra.mxu0 0.0
      %303 = vmatprep.subr.mxu0 0.0
      %304 = vmatpush1.msra.mxu0 0.0
      %305 = vmatprep.subr.mxu0 0.0
      %306 = vmatpush1.msra.mxu0 0.0
      %307 = vmatprep.subr.mxu0 0.0
      %308 = vmatpush1.msra.mxu0 0.0
      %309 = vmatprep.subr.mxu0 0.0
      %310 = vmatpush1.msra.mxu0 0.0
      %311 = vmatprep.subr.mxu0 0.0
      %312 = vmatpush1.msra.mxu0 0.0
      %313 = vmatprep.subr.mxu0 0.0
      %314 = vmatpush1.msra.mxu0 0.0
      %315 = vmatprep.subr.mxu0 0.0
      %316 = vmatpush1.msra.mxu0 0.0
      %317 = vmatprep.subr.mxu0 0.0
      %318 = vmatpush1.msra.mxu0 0.0
      %319 = vmatprep.subr.mxu0 0.0
      %320 = vmatpush1.msra.mxu0 0.0
      %321 = vmatprep.mubr.f32.mxu0 0.0
      %322 = vmatmul.mubr.f32.gmra.mrb[0].mxu0 %v210
      %v323 = vpop.f32.mrb[0].mxu0
      %v324 = vadd.f32 %v255, %v323
      %v325 = vpop.f32.mrb[0].mxu0
      %326 = vmatprep.mubr.f32.mxu0 0.0
      %327 = vmatmul.mubr.f32.gmra.mrb[0].mxu0 %v211
      %v328 = vpop.f32.mrb[0].mxu0
      %v329 = vadd.f32 %v255, %v328
      %v330 = vpop.f32.mrb[0].mxu0
      %331 = vmatprep.mubr.f32.mxu0 0.0
      %332 = vmatmul.mubr.f32.gmra.mrb[0].mxu0 %v212
      %v333 = vpop.f32.mrb[0].mxu0
      %v334 = vadd.f32 %v255, %v333
      %v335 = vpop.f32.mrb[0].mxu0
      %336 = vmatprep.mubr.f32.mxu0 0.0
      %337 = vmatmul.mubr.f32.gmra.mrb[0].mxu0 %v213
      %v338 = vpop.f32.mrb[0].mxu0
      %v339 = vadd.f32 %v255, %v338
      %v340 = vpop.f32.mrb[0].mxu0
      %341 = vmatprep.mubr.f32.mxu0 0.0
      %342 = vmatmul.mubr.f32.gmra.mrb[0].mxu0 %v214
      %v343 = vpop.f32.mrb[0].mxu0
      %v344 = vadd.f32 %v255, %v343
      %v345 = vpop.f32.mrb[0].mxu0
      %346 = vmatprep.mubr.f32.mxu0 0.0
      %347 = vmatmul.mubr.f32.gmra.mrb[0].mxu0 %v215
      %v348 = vpop.f32.mrb[0].mxu0
      %v349 = vadd.f32 %v255, %v348
      %v350 = vpop.f32.mrb[0].mxu0
      %351 = vmatprep.mubr.f32.mxu0 0.0
      %352 = vmatmul.mubr.f32.gmra.mrb[0].mxu0 %v216
      %v353 = vpop.f32.mrb[0].mxu0
      %v354 = vadd.f32 %v255, %v353
      %v355 = vpop.f32.mrb[0].mxu0
      %356 = vmatprep.mubr.f32.mxu0 0.0
      %357 = vmatmul.mubr.f32.gmra.mrb[0].mxu0 %v217
      %v358 = vpop.f32.mrb[0].mxu0
      %v359 = vadd.f32 %v255, %v358
      %v360 = vpop.f32.mrb[0].mxu0
      %361 = vmatprep.mubr.f32.mxu0 0.0
      %362 = vmatmul.mubr.f32.gmra.mrb[0].mxu0 %v218
      %v363 = vpop.f32.mrb[0].mxu0
      %v364 = vadd.f32 %v255, %v363
      %v365 = vpop.f32.mrb[0].mxu0
      %366 = vmatprep.mubr.f32.mxu0 0.0
      %367 = vmatmul.mubr.f32.gmra.mrb[0].mxu0 %v219
      %v368 = vpop.f32.mrb[0].mxu0
      %v369 = vadd.f32 %v255, %v368
      %v370 = vpop.f32.mrb[0].mxu0
      %371 = vmatprep.mubr.f32.mxu0 0.0
      %372 = vmatmul.mubr.f32.gmra.mrb[0].mxu0 %v220
      %v373 = vpop.f32.mrb[0].mxu0
      %v374 = vadd.f32 %v255, %v373
      %v375 = vpop.f32.mrb[0].mxu0
      %376 = vmatprep.mubr.f32.mxu0 0.0
      %377 = vmatmul.mubr.f32.gmra.mrb[0].mxu0 %v221
      %v378 = vpop.f32.mrb[0].mxu0
      %v379 = vadd.f32 %v255, %v378
      %v380 = vpop.f32.mrb[0].mxu0
      %381 = vmatprep.mubr.f32.mxu0 0.0
      %382 = vmatmul.mubr.f32.gmra.mrb[0].mxu0 %v222
      %v383 = vpop.f32.mrb[0].mxu0
      %v384 = vadd.f32 %v255, %v383
      %v385 = vpop.f32.mrb[0].mxu0
      %386 = vmatprep.mubr.f32.mxu0 0.0
      %387 = vmatmul.mubr.f32.gmra.mrb[0].mxu0 %v223
      %v388 = vpop.f32.mrb[0].mxu0
      %v389 = vadd.f32 %v255, %v388
      %v390 = vpop.f32.mrb[0].mxu0
      %391 = vmatprep.mubr.f32.mxu0 0.0
      %392 = vmatmul.mubr.f32.gmra.mrb[0].mxu0 %v224
      %v393 = vpop.f32.mrb[0].mxu0
      %v394 = vadd.f32 %v255, %v393
      %v395 = vpop.f32.mrb[0].mxu0
      %396 = vmatprep.mubr.f32.mxu0 0.0
      %397 = vmatmul.mubr.f32.gmra.mrb[0].mxu0 %v225
      %v398 = vpop.f32.mrb[0].mxu0
      %v399 = vadd.f32 %v255, %v398
      %v400 = vpop.f32.mrb[0].mxu0
      %401 = vmatprep.mubr.f32.mxu0 0.0
      %402 = vmatmul.mubr.f32.gmra.mrb[0].mxu0 %v226
      %v403 = vpop.f32.mrb[0].mxu0
      %v404 = vadd.f32 %v255, %v403
      %v405 = vpop.f32.mrb[0].mxu0
      %406 = vmatprep.mubr.f32.mxu0 0.0
      %407 = vmatmul.mubr.f32.gmra.mrb[0].mxu0 %v227
      %v408 = vpop.f32.mrb[0].mxu0
      %v409 = vadd.f32 %v255, %v408
      %v410 = vpop.f32.mrb[0].mxu0
      %411 = vmatprep.mubr.f32.mxu0 0.0
      %412 = vmatmul.mubr.f32.gmra.mrb[0].mxu0 %v228
      %v413 = vpop.f32.mrb[0].mxu0
      %v414 = vadd.f32 %v255, %v413
      %v415 = vpop.f32.mrb[0].mxu0
      %416 = vmatprep.mubr.f32.mxu0 0.0
      %417 = vmatmul.mubr.f32.gmra.mrb[0].mxu0 %v229
      %v418 = vpop.f32.mrb[0].mxu0
      %v419 = vadd.f32 %v255, %v418
      %v420 = vpop.f32.mrb[0].mxu0
      %421 = vmatprep.mubr.f32.mxu0 0.0
      %422 = vmatmul.mubr.f32.gmra.mrb[0].mxu0 %v230
      %v423 = vpop.f32.mrb[0].mxu0
      %v424 = vadd.f32 %v255, %v423
      %v425 = vpop.f32.mrb[0].mxu0
      %426 = vmatprep.mubr.f32.mxu0 0.0
      %427 = vmatmul.mubr.f32.gmra.mrb[0].mxu0 %v231
      %v428 = vpop.f32.mrb[0].mxu0
      %v429 = vadd.f32 %v255, %v428
      %v430 = vpop.f32.mrb[0].mxu0
      %431 = vmatprep.mubr.f32.mxu0 0.0
      %432 = vmatmul.mubr.f32.gmra.mrb[0].mxu0 %v232
      %v433 = vpop.f32.mrb[0].mxu0
      %v434 = vadd.f32 %v255, %v433
      %v435 = vpop.f32.mrb[0].mxu0
      %436 = vmatprep.mubr.f32.mxu0 0.0
      %437 = vmatmul.mubr.f32.gmra.mrb[0].mxu0 %v233
      %v438 = vpop.f32.mrb[0].mxu0
      %v439 = vadd.f32 %v255, %v438
      %v440 = vpop.f32.mrb[0].mxu0
      %441 = vdwg.mxu0
      %442 = vst [vmem:[%s208] sm:$0xff] %v324
      %443 = vst [vmem:[%s208 + $0x8] sm:$0xff] %v329
      %444 = vst [vmem:[%s208 + $0x10] sm:$0xff] %v334
      %445 = vst [vmem:[%s208 + $0x18] sm:$0xff] %v339
      %446 = vst [vmem:[%s208 + $0x20] sm:$0xff] %v344
      %447 = vst [vmem:[%s208 + $0x28] sm:$0xff] %v349
      %448 = vst [vmem:[%s208 + $0x30] sm:$0xff] %v354
      %449 = vst [vmem:[%s208 + $0x38] sm:$0xff] %v359
      %450 = vst [vmem:[%s208 + $0x40] sm:$0xff] %v364
      %451 = vst [vmem:[%s208 + $0x48] sm:$0xff] %v369
      %452 = vst [vmem:[%s208 + $0x50] sm:$0xff] %v374
      %453 = vst [vmem:[%s208 + $0x58] sm:$0xff] %v379
      %454 = vst [vmem:[%s208 + $0x60] sm:$0xff] %v384
      %455 = vst [vmem:[%s208 + $0x68] sm:$0xff] %v389
      %456 = vst [vmem:[%s208 + $0x70] sm:$0xff] %v394
      %457 = vst [vmem:[%s208 + $0x78] sm:$0xff] %v399
      %458 = vst [vmem:[%s208 + $0x80] sm:$0xff] %v404
      %459 = vst [vmem:[%s208 + $0x88] sm:$0xff] %v409
      %460 = vst [vmem:[%s208 + $0x90] sm:$0xff] %v414
      %461 = vst [vmem:[%s208 + $0x98] sm:$0xff] %v419
      %462 = vst [vmem:[%s208 + $0xa0] sm:$0xff] %v424
      %463 = vst [vmem:[%s208 + $0xa8] sm:$0xff] %v429
      %464 = vst [vmem:[%s208 + $0xb0] sm:$0xff] %v434
      %465 = vst [vmem:[%s208 + $0xb8] sm:$0xff] %v439
      %s466 = smul.u32 24, %s19
      %p467 = scmp.lt.s32.totalorder %s18, 15
      %s468 = scalar_select %p467, %s18, 15
      %p469 = scmp.lt.s32.totalorder %s466, 23
      %s470 = scalar_select %p469, %s466, 23
      %s471 = smul.addr %s468, 24
      %s472 = sadd.s32 %s470, %s471
      %s473 = smul.addr %s472, 8
      %s474 = scalar_lea.vmem %s3, %s473
      // Predicated region
      $region33: #{cross_attention.5} parent=31 // pred_check
        %p475 = pneg %p116
      $region34: #{cross_attention.5} parent=31 // pred_check_branch
        %477 = sbr.rel (%p475) target = $region36
      $region35: #{cross_attention.5} parent=31 // pred_region
        %s478 = smul.u32 24, %s19
      $region36: #{cross_attention.5} parent=31 // pred_fallthru
        _
    $region32: #{cross_attention.5} parent=5 // pred_fallthru
      _
    %p479 = scmp.le.s32.totalorder 2, %s9
    // Predicated region
    $region37: #{cross_attention.5} parent=5 // pred_check
      %p480 = pneg %p479
    $region38: #{cross_attention.5} parent=5 // pred_check_branch
      %482 = sbr.rel (%p480) target = $region40
    $region39: #{cross_attention.5} parent=5 // pred_region
      %s483 = ssub.s32 %s9, 2
      // Predicated region
      $region41: #{cross_attention.5} parent=39 // pred_check
        %p484 = pneg %p122
      $region42: #{cross_attention.5} parent=39 // pred_check_branch
        %486 = sbr.rel (%p484) target = $region44
      $region43: #{cross_attention.5} parent=39 // pred_region
        %s487 = smul.u32 24, %s21
        %p488 = scmp.lt.s32.totalorder %s20, 15
        %s489 = scalar_select %p488, %s20, 15
        %p490 = scmp.lt.s32.totalorder %s487, 23
        %s491 = scalar_select %p490, %s487, 23
        %s492 = smul.addr %s489, 24
        %s493 = sadd.s32 %s491, %s492
        %s494 = smul.addr %s493, 8
        %s495 = scalar_lea.vmem %s3, %s494
      $region44: #{cross_attention.5} parent=39 // pred_fallthru
        _
    $region40: #{cross_attention.5} parent=5 // pred_fallthru
      _
  $region6: #{cross_attention.5} parent=0 // loop_footer
    %s13 = sadd.s32 1, %s9
  $region7: #{cross_attention.5} parent=0 // loop_footer_branch
    %8 = sbr.rel target = $region3
  $region8: #{cross_attention.5} parent=0 // loop_exit
    _

// kernel: cross_attention.6
$region0: #{cross_attention.6}
  #allocation0 [shape = 'u32[]', space=smem, size = 0x4, offset = 0x4, fixed_abs, tag = 'smem constant byte address 0x4 - core index']
  #allocation1 [shape = 'u32[144,128]{1,0:T(1,128)}', space=vmem, size = 0x12000, scoped, tag = 'internal scratch']
  #allocation2 [shape = 'f32[40,1]{1,0:T(8,128)}', space=vmem, size = 0x5000, scoped, tag = 'scratch operand']
  #allocation3 [shape = 'f32[40,1]{1,0:T(8,128)}', space=vmem, size = 0x5000, scoped, tag = 'scratch operand']
  #allocation4 [shape = 'f32[40,128]{1,0:T(8,128)}', space=vmem, size = 0x5000, scoped, tag = 'scratch operand']
  %s0 = inlined_call_operand.vmem [shape: f32[16,40,128], index: 0, kind: input, shape index: {}]
  %s1 = inlined_call_operand.vmem [shape: f32[16,192,128], index: 1, kind: input, shape index: {}]
  %s2 = inlined_call_operand.vmem [shape: f32[16,192,128], index: 2, kind: input, shape index: {}]
  %s3 = inlined_call_operand.vmem [shape: f32[16,40,128], index: 3, kind: output, shape index: {}]
  %s4 = sld [smem:[#allocation0]]
  $region53: #{cross_attention.6} parent=0
    _
  %s6 = ssub.s32 1, %s4
  %s7 = scalar_select 0, %s6, %s4
  loop: start=0, step=1, limit=18
  $region2: #{cross_attention.6} parent=0 // loop_pre_header
    _
  $region3: #{cross_attention.6} parent=0 // loop_header
    %s9 = sphi 0, %s13
    %p10 = scmp.ge.s32.totalorder %s9, 18
    %s16 = sphi 0, %s35
    %s17 = sphi 0, %s31
    %s18 = sphi 0, %s27
    %s19 = sphi 0, %s16
    %s20 = sphi 0, %s17
    %s21 = sphi 0, %s18
    %s22 = sphi 0, %s19
    %s23 = sphi 0, %s20
    %s24 = sphi 0, %s21
    %s40 = sphi 0, %s42
    %s43 = sphi 0, %s40
    %s44 = sphi 0, %s43
    %s60 = sphi 0, %s44
    %s68 = sphi 0, %s70
    %s71 = sphi 0, %s68
    %s72 = sphi 0, %s71
    %s88 = sphi 0, %s72
    %s96 = sphi 0, %s98
    %s99 = sphi 0, %s96
    %s100 = sphi 0, %s99
    %s116 = sphi 0, %s100
    %s124 = sphi 0, %s126
    %s127 = sphi 0, %s124
    %s128 = sphi 0, %s127
    %s144 = sphi 0, %s128
  $region4: #{cross_attention.6} parent=0 // loop_header_branch
    %12 = sbr.rel (%p10) target = $region8
  $region5: #{cross_attention.6} parent=0 // loop_body
    %s14 = ssub.s32 %s9, 1
    %s15 = ssub.s32 %s9, 2
    %s25 = sadd.s32 1, %s18
    %p26 = scmp.ge.s32.totalorder %s25, 1
    %s27 = scalar_select %p26, 0, %s25
    %s28 = sadd.s32 1, %s17
    %s29 = scalar_select %p26, %s28, %s17
    %p30 = scmp.ge.s32.totalorder %s29, 1
    %s31 = scalar_select %p30, 0, %s29
    %s32 = sadd.s32 1, %s16
    %s33 = scalar_select %p30, %s32, %s16
    %p34 = scmp.ge.s32.totalorder %s33, 16
    %s35 = scalar_select %p34, 0, %s33
    %s36 = ssub.s32 %s16, %s35
    %s37 = ssub.s32 %s17, %s31
    %s38 = sor.u32 %s36, %s37
    %p39 = scmp.eq.s32.totalorder %s38, 0
    %s41 = sadd.s32 %s40, 1
    %s42 = scalar_select %p39, %s40, %s41
    %p45 = pneg %p39
    %p46 = scmp.eq.s32.totalorder %s9, 15
    %p47 = por %p45, %p46
    %p48 = scmp.ne.s32.totalorder %s40, %s43
    %p49 = scmp.eq.s32.totalorder %s9, 0
    %p50 = por %p48, %p49
    %p51 = scmp.ne.s32.totalorder %s40, %s43
    %p52 = scmp.eq.s32.totalorder %s14, 15
    %p53 = por %p51, %p52
    %p54 = scmp.ne.s32.totalorder %s43, %s44
    %p55 = scmp.eq.s32.totalorder %s14, 0
    %p56 = por %p54, %p55
    %p57 = scmp.ne.s32.totalorder %s43, %s44
    %p58 = scmp.eq.s32.totalorder %s15, 15
    %p59 = por %p57, %p58
    %p61 = scmp.ne.s32.totalorder %s44, %s60
    %p62 = scmp.eq.s32.totalorder %s15, 0
    %p63 = por %p61, %p62
    %s64 = ssub.s32 %s16, %s35
    %s65 = ssub.s32 %s18, %s27
    %s66 = sor.u32 %s64, %s65
    %p67 = scmp.eq.s32.totalorder %s66, 0
    %s69 = sadd.s32 %s68, 1
    %s70 = scalar_select %p67, %s68, %s69
    %p73 = pneg %p67
    %p74 = scmp.eq.s32.totalorder %s9, 15
    %p75 = por %p73, %p74
    %p76 = scmp.ne.s32.totalorder %s68, %s71
    %p77 = scmp.eq.s32.totalorder %s9, 0
    %p78 = por %p76, %p77
    %p79 = scmp.ne.s32.totalorder %s68, %s71
    %p80 = scmp.eq.s32.totalorder %s14, 15
    %p81 = por %p79, %p80
    %p82 = scmp.ne.s32.totalorder %s71, %s72
    %p83 = scmp.eq.s32.totalorder %s14, 0
    %p84 = por %p82, %p83
    %p85 = scmp.ne.s32.totalorder %s71, %s72
    %p86 = scmp.eq.s32.totalorder %s15, 15
    %p87 = por %p85, %p86
    %p89 = scmp.ne.s32.totalorder %s72, %s88
    %p90 = scmp.eq.s32.totalorder %s15, 0
    %p91 = por %p89, %p90
    %s92 = ssub.s32 %s16, %s35
    %s93 = ssub.s32 %s18, %s27
    %s94 = sor.u32 %s92, %s93
    %p95 = scmp.eq.s32.totalorder %s94, 0
    %s97 = sadd.s32 %s96, 1
    %s98 = scalar_select %p95, %s96, %s97
    %p101 = pneg %p95
    %p102 = scmp.eq.s32.totalorder %s9, 15
    %p103 = por %p101, %p102
    %p104 = scmp.ne.s32.totalorder %s96, %s99
    %p105 = scmp.eq.s32.totalorder %s9, 0
    %p106 = por %p104, %p105
    %p107 = scmp.ne.s32.totalorder %s96, %s99
    %p108 = scmp.eq.s32.totalorder %s14, 15
    %p109 = por %p107, %p108
    %p110 = scmp.ne.s32.totalorder %s99, %s100
    %p111 = scmp.eq.s32.totalorder %s14, 0
    %p112 = por %p110, %p111
    %p113 = scmp.ne.s32.totalorder %s99, %s100
    %p114 = scmp.eq.s32.totalorder %s15, 15
    %p115 = por %p113, %p114
    %p117 = scmp.ne.s32.totalorder %s100, %s116
    %p118 = scmp.eq.s32.totalorder %s15, 0
    %p119 = por %p117, %p118
    %s120 = ssub.s32 %s16, %s35
    %s121 = ssub.s32 %s17, %s31
    %s122 = sor.u32 %s120, %s121
    %p123 = scmp.eq.s32.totalorder %s122, 0
    %s125 = sadd.s32 %s124, 1
    %s126 = scalar_select %p123, %s124, %s125
    %p129 = pneg %p123
    %p130 = scmp.eq.s32.totalorder %s9, 15
    %p131 = por %p129, %p130
    %p132 = scmp.ne.s32.totalorder %s124, %s127
    %p133 = scmp.eq.s32.totalorder %s9, 0
    %p134 = por %p132, %p133
    %p135 = scmp.ne.s32.totalorder %s124, %s127
    %p136 = scmp.eq.s32.totalorder %s14, 15
    %p137 = por %p135, %p136
    %p138 = scmp.ne.s32.totalorder %s127, %s128
    %p139 = scmp.eq.s32.totalorder %s14, 0
    %p140 = por %p138, %p139
    %p141 = scmp.ne.s32.totalorder %s127, %s128
    %p142 = scmp.eq.s32.totalorder %s15, 15
    %p143 = por %p141, %p142
    %p145 = scmp.ne.s32.totalorder %s128, %s144
    %p146 = scmp.eq.s32.totalorder %s15, 0
    %p147 = por %p145, %p146
    %p148 = scmp.le.s32.totalorder 1, %s9
    %p149 = scmp.lt.s32.totalorder %s9, 17
    %p150 = pnand %p148, %p149
    %p151 = pneg %p150
    // Predicated region
    $region9: #{cross_attention.6} parent=5 // pred_check
      _
    $region10: #{cross_attention.6} parent=5 // pred_check_branch
      %153 = sbr.rel (%p150) target = $region12
    $region11: #{cross_attention.6} parent=5 // pred_region
      %s154 = ssub.s32 %s9, 1
    $region12: #{cross_attention.6} parent=5 // pred_fallthru
      _
    %p155 = scmp.lt.s32.totalorder %s9, 16
    // Predicated region
    $region13: #{cross_attention.6} parent=5 // pred_check
      %p156 = pneg %p155
    $region14: #{cross_attention.6} parent=5 // pred_check_branch
      %158 = sbr.rel (%p156) target = $region16
    $region15: #{cross_attention.6} parent=5 // pred_region
      // Predicated region
      $region17: #{cross_attention.6} parent=15 // pred_check
        %p159 = pneg %p50
      $region18: #{cross_attention.6} parent=15 // pred_check_branch
        %161 = sbr.rel (%p159) target = $region20
      $region19: #{cross_attention.6} parent=15 // pred_region
        %s162 = smul.u32 5, %s17
        %p163 = scmp.lt.s32.totalorder %s16, 15
        %s164 = scalar_select %p163, %s16, 15
        %p165 = scmp.lt.s32.totalorder %s162, 4
        %s166 = scalar_select %p165, %s162, 4
        %s167 = smul.addr %s164, 5
        %s168 = sadd.s32 %s166, %s167
        %s169 = smul.addr %s168, 8
        %s170 = scalar_lea.vmem %s0, %s169
        %s171 = smul.u32 5, %s17
      $region20: #{cross_attention.6} parent=15 // pred_fallthru
        _
      // Predicated region
      $region21: #{cross_attention.6} parent=15 // pred_check
        %p172 = pneg %p78
      $region22: #{cross_attention.6} parent=15 // pred_check_branch
        %174 = sbr.rel (%p172) target = $region24
      $region23: #{cross_attention.6} parent=15 // pred_region
        %s175 = smul.u32 24, %s18
        %p176 = scmp.lt.s32.totalorder %s16, 15
        %s177 = scalar_select %p176, %s16, 15
        %p178 = scmp.lt.s32.totalorder %s175, 23
        %s179 = scalar_select %p178, %s175, 23
        %s180 = smul.addr %s177, 24
        %s181 = sadd.s32 %s179, %s180
        %s182 = smul.addr %s181, 8
        %s183 = scalar_lea.vmem %s1, %s182
        %s184 = smul.u32 24, %s18
      $region24: #{cross_attention.6} parent=15 // pred_fallthru
        _
      // Predicated region
      $region25: #{cross_attention.6} parent=15 // pred_check
        %p185 = pneg %p106
      $region26: #{cross_attention.6} parent=15 // pred_check_branch
        %187 = sbr.rel (%p185) target = $region28
      $region27: #{cross_attention.6} parent=15 // pred_region
        %s188 = smul.u32 24, %s18
        %p189 = scmp.lt.s32.totalorder %s16, 15
        %s190 = scalar_select %p189, %s16, 15
        %p191 = scmp.lt.s32.totalorder %s188, 23
        %s192 = scalar_select %p191, %s188, 23
        %s193 = smul.addr %s190, 24
        %s194 = sadd.s32 %s192, %s193
        %s195 = smul.addr %s194, 8
        %s196 = scalar_lea.vmem %s2, %s195
        %s197 = smul.u32 24, %s18
      $region28: #{cross_attention.6} parent=15 // pred_fallthru
        _
    $region16: #{cross_attention.6} parent=5 // pred_fallthru
      _
    %p198 = scmp.le.s32.totalorder 1, %s9
    %p199 = scmp.lt.s32.totalorder %s9, 17
    %p200 = pnand %p198, %p199
    %p201 = pneg %p200
    // Predicated region
    $region29: #{cross_attention.6} parent=5 // pred_check
      _
    $region30: #{cross_attention.6} parent=5 // pred_check_branch
      %203 = sbr.rel (%p200) target = $region32
    $region31: #{cross_attention.6} parent=5 // pred_region
      %s204 = ssub.s32 %s9, 1
      %s205 = smul.u32 5, %s20
      %p206 = scmp.lt.s32.totalorder %s19, 15
      %s207 = scalar_select %p206, %s19, 15
      %p208 = scmp.lt.s32.totalorder %s205, 4
      %s209 = scalar_select %p208, %s205, 4
      %s210 = smul.addr %s207, 5
      %s211 = sadd.s32 %s209, %s210
      %s212 = smul.addr %s211, 8
      %s213 = scalar_lea.vmem %s0, %s212
      %p214 = pneg %p56
      %p215 = pneg %p53
      %s216 = smul.u32 24, %s21
      %p217 = scmp.lt.s32.totalorder %s19, 15
      %s218 = scalar_select %p217, %s19, 15
      %p219 = scmp.lt.s32.totalorder %s216, 23
      %s220 = scalar_select %p219, %s216, 23
      %s221 = smul.addr %s218, 24
      %s222 = sadd.s32 %s220, %s221
      %s223 = smul.addr %s222, 8
      %s224 = scalar_lea.vmem %s1, %s223
      %p225 = pneg %p84
      %p226 = pneg %p81
      %s227 = smul.u32 24, %s21
      %p228 = scmp.lt.s32.totalorder %s19, 15
      %s229 = scalar_select %p228, %s19, 15
      %p230 = scmp.lt.s32.totalorder %s227, 23
      %s231 = scalar_select %p230, %s227, 23
      %s232 = smul.addr %s229, 24
      %s233 = sadd.s32 %s231, %s232
      %s234 = smul.addr %s233, 8
      %s235 = scalar_lea.vmem %s2, %s234
      %p236 = pneg %p112
      %p237 = pneg %p109
      %p238 = pneg %p140
      %p239 = pneg %p137
      %s240 = smul.u32 5, %s20
      %p241 = scmp.lt.s32.totalorder %s19, 15
      %s242 = scalar_select %p241, %s19, 15
      %p243 = scmp.lt.s32.totalorder %s240, 4
      %s244 = scalar_select %p243, %s240, 4
      %s245 = smul.addr %s242, 5
      %s246 = sadd.s32 %s244, %s245
      %s247 = smul.addr %s246, 8
      %s248 = scalar_lea.vmem %s3, %s247
      %s249 = smul.u32 5, %s20
      %p250 = scmp.lt.s32.totalorder %s19, 15
      %s251 = scalar_select %p250, %s19, 15
      %p252 = scmp.lt.s32.totalorder %s249, 4
      %s253 = scalar_select %p252, %s249, 4
      %s254 = smul.addr %s251, 5
      %s255 = sadd.s32 %s253, %s254
      %s256 = smul.addr %s255, 8
      %s257 = scalar_lea.vmem %s0, %s256
      %s258 = smul.u32 5, %s20
      %s259 = smul.u32 24, %s21
      %p260 = scmp.lt.s32.totalorder %s19, 15
      %s261 = scalar_select %p260, %s19, 15
      %p262 = scmp.lt.s32.totalorder %s259, 23
      %s263 = scalar_select %p262, %s259, 23
      %s264 = smul.addr %s261, 24
      %s265 = sadd.s32 %s263, %s264
      %s266 = smul.addr %s265, 8
      %s267 = scalar_lea.vmem %s1, %s266
      %s268 = smul.u32 24, %s21
      %s269 = smul.u32 24, %s21
      %p270 = scmp.lt.s32.totalorder %s19, 15
      %s271 = scalar_select %p270, %s19, 15
      %p272 = scmp.lt.s32.totalorder %s269, 23
      %s273 = scalar_select %p272, %s269, 23
      %s274 = smul.addr %s271, 24
      %s275 = sadd.s32 %s273, %s274
      %s276 = smul.addr %s275, 8
      %s277 = scalar_lea.vmem %s2, %s276
      %s278 = smul.u32 24, %s21
      %s279 = smul.u32 5, %s20
      %p280 = scmp.lt.s32.totalorder %s19, 15
      %s281 = scalar_select %p280, %s19, 15
      %p282 = scmp.lt.s32.totalorder %s279, 4
      %s283 = scalar_select %p282, %s279, 4
      %s284 = smul.addr %s281, 5
      %s285 = sadd.s32 %s283, %s284
      %s286 = smul.addr %s285, 8
      %s287 = scalar_lea.vmem %s3, %s286
      %s288 = smul.u32 5, %s20
      %p289 = scmp.eq.s32.totalorder %s21, 0
      // Predicated region
      $region33: #{cross_attention.6} parent=31 // pred_check
        %p290 = pneg %p289
      $region34: #{cross_attention.6} parent=31 // pred_check_branch
        %292 = sbr.rel (%p290) target = $region36
      $region35: #{cross_attention.6} parent=31 // pred_region
        %vm293 = vcmask 7168
        %294 = vst.msk [vmem:[#allocation2] sm:$0xff] %vm293, -1e+30
        %295 = vst.msk [vmem:[#allocation2 + $0x8] sm:$0xff] %vm293, -1e+30
        %296 = vst.msk [vmem:[#allocation2 + $0x10] sm:$0xff] %vm293, -1e+30
        %297 = vst.msk [vmem:[#allocation2 + $0x18] sm:$0xff] %vm293, -1e+30
        %298 = vst.msk [vmem:[#allocation2 + $0x20] sm:$0xff] %vm293, -1e+30
        %299 = vst.msk [vmem:[#allocation3] sm:$0xff] %vm293, 0.0
        %300 = vst.msk [vmem:[#allocation3 + $0x8] sm:$0xff] %vm293, 0.0
        %301 = vst.msk [vmem:[#allocation3 + $0x10] sm:$0xff] %vm293, 0.0
        %302 = vst.msk [vmem:[#allocation3 + $0x18] sm:$0xff] %vm293, 0.0
        %303 = vst.msk [vmem:[#allocation3 + $0x20] sm:$0xff] %vm293, 0.0
        %304 = vst [vmem:[#allocation4] sm:$0xff] 0.0
        %305 = vst [vmem:[#allocation4 + $0x8] sm:$0xff] 0.0
        %306 = vst [vmem:[#allocation4 + $0x10] sm:$0xff] 0.0
        %307 = vst [vmem:[#allocation4 + $0x18] sm:$0xff] 0.0
        %308 = vst [vmem:[#allocation4 + $0x20] sm:$0xff] 0.0
      $region36: #{cross_attention.6} parent=31 // pred_fallthru
        _
      %v309 = vld [vmem:[%s257] sm:$0xff]
      %v310 = vld [vmem:[%s257 + $0x8] sm:$0xff]
      %v311 = vld [vmem:[%s257 + $0x10] sm:$0xff]
      %v312 = vld [vmem:[%s257 + $0x18] sm:$0xff]
      %v313 = vld [vmem:[%s257 + $0x20] sm:$0xff]
      %v314 = vld [vmem:[%s267] sm:$0xff]
      %v315 = vld [vmem:[%s267 + $0x8] sm:$0xff]
      %v316 = vld [vmem:[%s267 + $0x10] sm:$0xff]
      %v317 = vld [vmem:[%s267 + $0x18] sm:$0xff]
      %v318 = vld [vmem:[%s267 + $0x20] sm:$0xff]
      %v319 = vld [vmem:[%s267 + $0x28] sm:$0xff]
      %v320 = vld [vmem:[%s267 + $0x30] sm:$0xff]
      %v321 = vld [vmem:[%s267 + $0x38] sm:$0xff]
      %v322 = vld [vmem:[%s267 + $0x40] sm:$0xff]
      %v323 = vld [vmem:[%s267 + $0x48] sm:$0xff]
      %v324 = vld [vmem:[%s267 + $0x50] sm:$0xff]
      %v325 = vld [vmem:[%s267 + $0x58] sm:$0xff]
      %v326 = vld [vmem:[%s267 + $0x60] sm:$0xff]
      %v327 = vld [vmem:[%s267 + $0x68] sm:$0xff]
      %v328 = vld [vmem:[%s267 + $0x70] sm:$0xff]
      %v329 = vld [vmem:[%s267 + $0x78] sm:$0xff]
      %v330 = vld [vmem:[%s267 + $0x80] sm:$0xff]
      %v331 = vld [vmem:[%s267 + $0x88] sm:$0xff]
      %v332 = vld [vmem:[%s267 + $0x90] sm:$0xff]
      %v333 = vld [vmem:[%s267 + $0x98] sm:$0xff]
      %v334 = vld [vmem:[%s267 + $0xa0] sm:$0xff]
      %v335 = vld [vmem:[%s267 + $0xa8] sm:$0xff]
      %v336 = vld [vmem:[%s267 + $0xb0] sm:$0xff]
      %v337 = vld [vmem:[%s267 + $0xb8] sm:$0xff]
      %338 = vmatprep.subr.mxu0 0.0
      %339 = vmatpush1.xpose.msra.mxu0 %v314
      %340 = vmatprep.subr.mxu0 0.0
      %341 = vmatpush1.xpose.msra.mxu0 %v315
      %342 = vmatprep.subr.mxu0 0.0
      %343 = vmatpush1.xpose.msra.mxu0 %v316
      %344 = vmatprep.subr.mxu0 0.0
      %345 = vmatpush1.xpose.msra.mxu0 %v317
      %346 = vmatprep.subr.mxu0 0.0
      %347 = vmatpush1.xpose.msra.mxu0 %v318
      %348 = vmatprep.subr.mxu0 0.0
      %349 = vmatpush1.xpose.msra.mxu0 %v319
      %350 = vmatprep.subr.mxu0 0.0
      %351 = vmatpush1.xpose.msra.mxu0 %v320
      %352 = vmatprep.subr.mxu0 0.0
      %353 = vmatpush1.xpose.msra.mxu0 %v321
      %354 = vmatprep.subr.mxu0 0.0
      %355 = vmatpush1.xpose.msra.mxu0 %v322
      %356 = vmatprep.subr.mxu0 0.0
      %357 = vmatpush1.xpose.msra.mxu0 %v323
      %358 = vmatprep.subr.mxu0 0.0
      %359 = vmatpush1.xpose.msra.mxu0 %v324
      %360 = vmatprep.subr.mxu0 0.0
      %361 = vmatpush1.xpose.msra.mxu0 %v325
      %362 = vmatprep.subr.mxu0 0.0
      %363 = vmatpush1.xpose.msra.mxu0 %v326
      %364 = vmatprep.subr.mxu0 0.0
      %365 = vmatpush1.xpose.msra.mxu0 %v327
      %366 = vmatprep.subr.mxu0 0.0
      %367 = vmatpush1.xpose.msra.mxu0 %v328
      %368 = vmatprep.subr.mxu0 0.0
      %369 = vmatpush1.xpose.msra.mxu0 %v329
      %370 = vmatprep.subr.mxu0 0.0
      %371 = vmatpush1.xpose.msra.mxu0 %v330
      %372 = vmatprep.subr.mxu0 0.0
      %373 = vmatpush1.xpose.msra.mxu0 %v331
      %374 = vmatprep.subr.mxu0 0.0
      %375 = vmatpush1.xpose.msra.mxu0 %v332
      %376 = vmatprep.subr.mxu0 0.0
      %377 = vmatpush1.xpose.msra.mxu0 %v333
      %378 = vmatprep.subr.mxu0 0.0
      %379 = vmatpush1.xpose.msra.mxu0 %v334
      %380 = vmatprep.subr.mxu0 0.0
      %381 = vmatpush1.xpose.msra.mxu0 %v335
      %382 = vmatprep.subr.mxu0 0.0
      %383 = vmatpush1.xpose.msra.mxu0 %v336
      %384 = vmatprep.subr.mxu0 0.0
      %385 = vmatpush1.xpose.msra.mxu0 %v337
      %386 = vmatprep.subr.mxu0 0.0
      %387 = vmatpush1.xpose.msra.mxu0 0.0
      %388 = vmatprep.subr.mxu0 0.0
      %389 = vmatpush1.xpose.msra.mxu0 0.0
      %390 = vmatprep.subr.mxu0 0.0
      %391 = vmatpush1.xpose.msra.mxu0 0.0
      %392 = vmatprep.subr.mxu0 0.0
      %393 = vmatpush1.xpose.msra.mxu0 0.0
      %394 = vmatprep.subr.mxu0 0.0
      %395 = vmatpush1.xpose.msra.mxu0 0.0
      %396 = vmatprep.subr.mxu0 0.0
      %397 = vmatpush1.xpose.msra.mxu0 0.0
      %398 = vmatprep.subr.mxu0 0.0
      %399 = vmatpush1.xpose.msra.mxu0 0.0
      %400 = vmatprep.subr.mxu0 0.0
      %401 = vmatpush1.xpose.msra.mxu0 0.0
      %402 = vmatprep.mubr.f32.mxu0 0.0
      %403 = vmatmul.mubr.f32.gmra.mrb[0].mxu0 %v309
      %v404 = vpop.f32.mrb[0].mxu0
      %v405 = vadd.f32 0.0, %v404
      %v406 = vpop.f32.mrb[0].mxu0
      %v407 = vadd.f32 0.0, %v406
      %408 = vmatprep.mubr.f32.mxu0 0.0
      %409 = vmatmul.mubr.f32.gmra.mrb[0].mxu0 %v310
      %v410 = vpop.f32.mrb[0].mxu0
      %v411 = vadd.f32 0.0, %v410
      %v412 = vpop.f32.mrb[0].mxu0
      %v413 = vadd.f32 0.0, %v412
      %414 = vmatprep.mubr.f32.mxu0 0.0
      %415 = vmatmul.mubr.f32.gmra.mrb[0].mxu0 %v311
      %v416 = vpop.f32.mrb[0].mxu0
      %v417 = vadd.f32 0.0, %v416
      %v418 = vpop.f32.mrb[0].mxu0
      %v419 = vadd.f32 0.0, %v418
      %420 = vmatprep.mubr.f32.mxu0 0.0
      %421 = vmatmul.mubr.f32.gmra.mrb[0].mxu0 %v312
      %v422 = vpop.f32.mrb[0].mxu0
      %v423 = vadd.f32 0.0, %v422
      %v424 = vpop.f32.mrb[0].mxu0
      %v425 = vadd.f32 0.0, %v424
      %426 = vmatprep.mubr.f32.mxu0 0.0
      %427 = vmatmul.mubr.f32.gmra.mrb[0].mxu0 %v313
      %v428 = vpop.f32.mrb[0].mxu0
      %v429 = vadd.f32 0.0, %v428
      %v430 = vpop.f32.mrb[0].mxu0
      %v431 = vadd.f32 0.0, %v430
      %432 = vdwg.mxu0
      %v433 = vld [vmem:[#allocation2] sm:$0xff]
      %v434 = vld [vmem:[#allocation2 + $0x8] sm:$0xff]
      %v435 = vld [vmem:[#allocation2 + $0x10] sm:$0xff]
      %v436 = vld [vmem:[#allocation2 + $0x18] sm:$0xff]
      %v437 = vld [vmem:[#allocation2 + $0x20] sm:$0xff]
      %vm438 = vcmask 523264
      %v439 = vsel %vm438, %v407, -inf
      %v440 = vmax.f32 %v405, %v439
      %441 = vmax.xlane.f32.xlu0 %v440
      %v442 = vpop.xlane.xlu0 %441
      %v443 = vsel %vm438, %v413, -inf
      %v444 = vmax.f32 %v411, %v443
      %445 = vmax.xlane.f32.xlu0 %v444
      %v446 = vpop.xlane.xlu0 %445
      %v447 = vsel %vm438, %v419, -inf
      %v448 = vmax.f32 %v417, %v447
      %449 = vmax.xlane.f32.xlu0 %v448
      %v450 = vpop.xlane.xlu0 %449
      %v451 = vsel %vm438, %v425, -inf
      %v452 = vmax.f32 %v423, %v451
      %453 = vmax.xlane.f32.xlu0 %v452
      %v454 = vpop.xlane.xlu0 %453
      %v455 = vsel %vm438, %v431, -inf
      %v456 = vmax.f32 %v429, %v455
      %457 = vmax.xlane.f32.xlu0 %v456
      %v458 = vpop.xlane.xlu0 %457
      %v459 = vmax.f32 %v433, %v442
      %v460 = vmax.f32 %v434, %v446
      %v461 = vmax.f32 %v435, %v450
      %v462 = vmax.f32 %v436, %v454
      %v463 = vmax.f32 %v437, %v458
      %v464 = vsub.f32 %v433, %v459
      %v465 = vsub.f32 %v434, %v460
      %v466 = vsub.f32 %v435, %v461
      %v467 = vsub.f32 %v436, %v462
      %v468 = vsub.f32 %v437, %v463
      %v469 = vmul.f32 %v464, 1.442695
      %v470 = vpow.pop %v469
      %v471 = vmul.f32 %v465, 1.442695
      %v472 = vpow.pop %v471
      %v473 = vmul.f32 %v466, 1.442695
      %v474 = vpow.pop %v473
      %v475 = vmul.f32 %v467, 1.442695
      %v476 = vpow.pop %v475
      %v477 = vmul.f32 %v468, 1.442695
      %v478 = vpow.pop %v477
      %480 = vset.pattern.permute.xlu0 0
      %481 = vperm.xlu0 %480, %v459
      %v482 = vpop.permute.xlu0 %481
      %485 = vset.pattern.permute.xlu0 0
      %486 = vperm.xlu0 %485, %v460
      %v487 = vpop.permute.xlu0 %486
      %490 = vset.pattern.permute.xlu0 0
      %491 = vperm.xlu0 %490, %v461
      %v492 = vpop.permute.xlu0 %491
      %495 = vset.pattern.permute.xlu0 0
      %496 = vperm.xlu0 %495, %v462
      %v497 = vpop.permute.xlu0 %496
      %500 = vset.pattern.permute.xlu0 0
      %501 = vperm.xlu0 %500, %v463
      %v502 = vpop.permute.xlu0 %501
      %v504 = vsub.f32 %v405, %v482
      %v505 = vsub.f32 %v407, %v482
      %v506 = vsub.f32 %v411, %v487
      %v507 = vsub.f32 %v413, %v487
      %v508 = vsub.f32 %v417, %v492
      %v509 = vsub.f32 %v419, %v492
      %v510 = vsub.f32 %v423, %v497
      %v511 = vsub.f32 %v425, %v497
      %v512 = vsub.f32 %v429, %v502
      %v513 = vsub.f32 %v431, %v502
      %v514 = vmul.f32 %v504, 1.442695
      %v515 = vpow.pop %v514
      %v516 = vmul.f32 %v505, 1.442695
      %v517 = vpow.pop %v516
      %v518 = vmul.f32 %v506, 1.442695
      %v519 = vpow.pop %v518
      %v520 = vmul.f32 %v507, 1.442695
      %v521 = vpow.pop %v520
      %v522 = vmul.f32 %v508, 1.442695
      %v523 = vpow.pop %v522
      %v524 = vmul.f32 %v509, 1.442695
      %v525 = vpow.pop %v524
      %v526 = vmul.f32 %v510, 1.442695
      %v527 = vpow.pop %v526
      %v528 = vmul.f32 %v511, 1.442695
      %v529 = vpow.pop %v528
      %v530 = vmul.f32 %v512, 1.442695
      %v531 = vpow.pop %v530
      %v532 = vmul.f32 %v513, 1.442695
      %v533 = vpow.pop %v532
      %v534 = vld [vmem:[#allocation3] sm:$0xff]
      %v535 = vld [vmem:[#allocation3 + $0x8] sm:$0xff]
      %v536 = vld [vmem:[#allocation3 + $0x10] sm:$0xff]
      %v537 = vld [vmem:[#allocation3 + $0x18] sm:$0xff]
      %v538 = vld [vmem:[#allocation3 + $0x20] sm:$0xff]
      %v539 = vmul.f32 %v470, %v534
      %v540 = vmul.f32 %v472, %v535
      %v541 = vmul.f32 %v474, %v536
      %v542 = vmul.f32 %v476, %v537
      %v543 = vmul.f32 %v478, %v538
      %v544 = vsel %vm438, %v517, 0.0
      %v545 = vadd.f32 %v515, %v544
      %546 = vadd.xlane.f32.xlu0 %v545
      %v547 = vpop.xlane.xlu0 %546
      %v548 = vsel %vm438, %v521, 0.0
      %v549 = vadd.f32 %v519, %v548
      %550 = vadd.xlane.f32.xlu0 %v549
      %v551 = vpop.xlane.xlu0 %550
      %v552 = vsel %vm438, %v525, 0.0
      %v553 = vadd.f32 %v523, %v552
      %554 = vadd.xlane.f32.xlu0 %v553
      %v555 = vpop.xlane.xlu0 %554
      %v556 = vsel %vm438, %v529, 0.0
      %v557 = vadd.f32 %v527, %v556
      %558 = vadd.xlane.f32.xlu0 %v557
      %v559 = vpop.xlane.xlu0 %558
      %v560 = vsel %vm438, %v533, 0.0
      %v561 = vadd.f32 %v531, %v560
      %562 = vadd.xlane.f32.xlu0 %v561
      %v563 = vpop.xlane.xlu0 %562
      %v564 = vadd.f32 %v539, %v547
      %v565 = vadd.f32 %v540, %v551
      %v566 = vadd.f32 %v541, %v555
      %v567 = vadd.f32 %v542, %v559
      %v568 = vadd.f32 %v543, %v563
      %vm569 = vcmask 7168
      %570 = vst.msk [vmem:[#allocation3] sm:$0xff] %vm569, %v564
      %571 = vst.msk [vmem:[#allocation3 + $0x8] sm:$0xff] %vm569, %v565
      %572 = vst.msk [vmem:[#allocation3 + $0x10] sm:$0xff] %vm569, %v566
      %573 = vst.msk [vmem:[#allocation3 + $0x18] sm:$0xff] %vm569, %v567
      %574 = vst.msk [vmem:[#allocation3 + $0x20] sm:$0xff] %vm569, %v568
      %v575 = vld [vmem:[#allocation4] sm:$0xff]
      %v576 = vld [vmem:[#allocation4 + $0x8] sm:$0xff]
      %v577 = vld [vmem:[#allocation4 + $0x10] sm:$0xff]
      %v578 = vld [vmem:[#allocation4 + $0x18] sm:$0xff]
      %v579 = vld [vmem:[#allocation4 + $0x20] sm:$0xff]
      %581 = vset.pattern.permute.xlu0 0
      %582 = vperm.xlu0 %581, %v470
      %v583 = vpop.permute.xlu0 %582
      %586 = vset.pattern.permute.xlu0 0
      %587 = vperm.xlu0 %586, %v472
      %v588 = vpop.permute.xlu0 %587
      %591 = vset.pattern.permute.xlu0 0
      %592 = vperm.xlu0 %591, %v474
      %v593 = vpop.permute.xlu0 %592
      %596 = vset.pattern.permute.xlu0 0
      %597 = vperm.xlu0 %596, %v476
      %v598 = vpop.permute.xlu0 %597
      %601 = vset.pattern.permute.xlu0 0
      %602 = vperm.xlu0 %601, %v478
      %v603 = vpop.permute.xlu0 %602
      %v605 = vmul.f32 %v583, %v575
      %v606 = vmul.f32 %v588, %v576
      %v607 = vmul.f32 %v593, %v577
      %v608 = vmul.f32 %v598, %v578
      %v609 = vmul.f32 %v603, %v579
      %v610 = vld [vmem:[%s277] sm:$0xff]
      %v611 = vld [vmem:[%s277 + $0x8] sm:$0xff]
      %v612 = vld [vmem:[%s277 + $0x10] sm:$0xff]
      %v613 = vld [vmem:[%s277 + $0x18] sm:$0xff]
      %v614 = vld [vmem:[%s277 + $0x20] sm:$0xff]
      %v615 = vld [vmem:[%s277 + $0x28] sm:$0xff]
      %v616 = vld [vmem:[%s277 + $0x30] sm:$0xff]
      %v617 = vld [vmem:[%s277 + $0x38] sm:$0xff]
      %v618 = vld [vmem:[%s277 + $0x40] sm:$0xff]
      %v619 = vld [vmem:[%s277 + $0x48] sm:$0xff]
      %v620 = vld [vmem:[%s277 + $0x50] sm:$0xff]
      %v621 = vld [vmem:[%s277 + $0x58] sm:$0xff]
      %v622 = vld [vmem:[%s277 + $0x60] sm:$0xff]
      %v623 = vld [vmem:[%s277 + $0x68] sm:$0xff]
      %v624 = vld [vmem:[%s277 + $0x70] sm:$0xff]
      %v625 = vld [vmem:[%s277 + $0x78] sm:$0xff]
      %v626 = vld [vmem:[%s277 + $0x80] sm:$0xff]
      %v627 = vld [vmem:[%s277 + $0x88] sm:$0xff]
      %v628 = vld [vmem:[%s277 + $0x90] sm:$0xff]
      %v629 = vld [vmem:[%s277 + $0x98] sm:$0xff]
      %v630 = vld [vmem:[%s277 + $0xa0] sm:$0xff]
      %v631 = vld [vmem:[%s277 + $0xa8] sm:$0xff]
      %v632 = vld [vmem:[%s277 + $0xb0] sm:$0xff]
      %v633 = vld [vmem:[%s277 + $0xb8] sm:$0xff]
      %v635 = vsel %vm438, %v517, 0
      %v638 = vsel %vm438, %v521, 0
      %v641 = vsel %vm438, %v525, 0
      %v644 = vsel %vm438, %v529, 0
      %v647 = vsel %vm438, %v533, 0
      %649 = vmatprep.subr.mxu0 0.0
      %650 = vmatpush1.msra.mxu0 %v610
      %651 = vmatprep.subr.mxu0 0.0
      %652 = vmatpush1.msra.mxu0 %v611
      %653 = vmatprep.subr.mxu0 0.0
      %654 = vmatpush1.msra.mxu0 %v612
      %655 = vmatprep.subr.mxu0 0.0
      %656 = vmatpush1.msra.mxu0 %v613
      %657 = vmatprep.subr.mxu0 0.0
      %658 = vmatpush1.msra.mxu0 %v614
      %659 = vmatprep.subr.mxu0 0.0
      %660 = vmatpush1.msra.mxu0 %v615
      %661 = vmatprep.subr.mxu0 0.0
      %662 = vmatpush1.msra.mxu0 %v616
      %663 = vmatprep.subr.mxu0 0.0
      %664 = vmatpush1.msra.mxu0 %v617
      %665 = vmatprep.subr.mxu0 0.0
      %666 = vmatpush1.msra.mxu0 %v618
      %667 = vmatprep.subr.mxu0 0.0
      %668 = vmatpush1.msra.mxu0 %v619
      %669 = vmatprep.subr.mxu0 0.0
      %670 = vmatpush1.msra.mxu0 %v620
      %671 = vmatprep.subr.mxu0 0.0
      %672 = vmatpush1.msra.mxu0 %v621
      %673 = vmatprep.subr.mxu0 0.0
      %674 = vmatpush1.msra.mxu0 %v622
      %675 = vmatprep.subr.mxu0 0.0
      %676 = vmatpush1.msra.mxu0 %v623
      %677 = vmatprep.subr.mxu0 0.0
      %678 = vmatpush1.msra.mxu0 %v624
      %679 = vmatprep.subr.mxu0 0.0
      %680 = vmatpush1.msra.mxu0 %v625
      %681 = vmatprep.subr.mxu0 0.0
      %682 = vmatpush1.msra.mxu0 %v626
      %683 = vmatprep.subr.mxu0 0.0
      %684 = vmatpush1.msra.mxu0 %v627
      %685 = vmatprep.subr.mxu0 0.0
      %686 = vmatpush1.msra.mxu0 %v628
      %687 = vmatprep.subr.mxu0 0.0
      %688 = vmatpush1.msra.mxu0 %v629
      %689 = vmatprep.subr.mxu0 0.0
      %690 = vmatpush1.msra.mxu0 %v630
      %691 = vmatprep.subr.mxu0 0.0
      %692 = vmatpush1.msra.mxu0 %v631
      %693 = vmatprep.subr.mxu0 0.0
      %694 = vmatpush1.msra.mxu0 %v632
      %695 = vmatprep.subr.mxu0 0.0
      %696 = vmatpush1.msra.mxu0 %v633
      %697 = vmatprep.subr.mxu0 0.0
      %698 = vmatpush1.msra.mxu0 0.0
      %699 = vmatprep.subr.mxu0 0.0
      %700 = vmatpush1.msra.mxu0 0.0
      %701 = vmatprep.subr.mxu0 0.0
      %702 = vmatpush1.msra.mxu0 0.0
      %703 = vmatprep.subr.mxu0 0.0
      %704 = vmatpush1.msra.mxu0 0.0
      %705 = vmatprep.subr.mxu0 0.0
      %706 = vmatpush1.msra.mxu0 0.0
      %707 = vmatprep.subr.mxu0 0.0
      %708 = vmatpush1.msra.mxu0 0.0
      %709 = vmatprep.subr.mxu0 0.0
      %710 = vmatpush1.msra.mxu0 0.0
      %711 = vmatprep.subr.mxu0 0.0
      %712 = vmatpush1.msra.mxu0 0.0
      %713 = vmatprep.mubr.f32.mxu0 %v635
      %714 = vmatmul.mubr.f32.gmra.mrb[0].mxu0 %v515
      %v715 = vpop.f32.mrb[0].mxu0
      %v716 = vadd.f32 0.0, %v715
      %v717 = vpop.f32.mrb[0].mxu0
      %718 = vmatprep.mubr.f32.mxu0 %v638
      %719 = vmatmul.mubr.f32.gmra.mrb[0].mxu0 %v519
      %v720 = vpop.f32.mrb[0].mxu0
      %v721 = vadd.f32 0.0, %v720
      %v722 = vpop.f32.mrb[0].mxu0
      %723 = vmatprep.mubr.f32.mxu0 %v641
      %724 = vmatmul.mubr.f32.gmra.mrb[0].mxu0 %v523
      %v725 = vpop.f32.mrb[0].mxu0
      %v726 = vadd.f32 0.0, %v725
      %v727 = vpop.f32.mrb[0].mxu0
      %728 = vmatprep.mubr.f32.mxu0 %v644
      %729 = vmatmul.mubr.f32.gmra.mrb[0].mxu0 %v527
      %v730 = vpop.f32.mrb[0].mxu0
      %v731 = vadd.f32 0.0, %v730
      %v732 = vpop.f32.mrb[0].mxu0
      %733 = vmatprep.mubr.f32.mxu0 %v647
      %734 = vmatmul.mubr.f32.gmra.mrb[0].mxu0 %v531
      %v735 = vpop.f32.mrb[0].mxu0
      %v736 = vadd.f32 0.0, %v735
      %v737 = vpop.f32.mrb[0].mxu0
      %738 = vdwg.mxu0
      %v739 = vadd.f32 %v605, %v716
      %v740 = vadd.f32 %v606, %v721
      %v741 = vadd.f32 %v607, %v726
      %v742 = vadd.f32 %v608, %v731
      %v743 = vadd.f32 %v609, %v736
      %744 = vst [vmem:[#allocation4] sm:$0xff] %v739
      %745 = vst [vmem:[#allocation4 + $0x8] sm:$0xff] %v740
      %746 = vst [vmem:[#allocation4 + $0x10] sm:$0xff] %v741
      %747 = vst [vmem:[#allocation4 + $0x18] sm:$0xff] %v742
      %748 = vst [vmem:[#allocation4 + $0x20] sm:$0xff] %v743
      %749 = vst.msk [vmem:[#allocation2] sm:$0xff] %vm569, %v459
      %750 = vst.msk [vmem:[#allocation2 + $0x8] sm:$0xff] %vm569, %v460
      %751 = vst.msk [vmem:[#allocation2 + $0x10] sm:$0xff] %vm569, %v461
      %752 = vst.msk [vmem:[#allocation2 + $0x18] sm:$0xff] %vm569, %v462
      %753 = vst.msk [vmem:[#allocation2 + $0x20] sm:$0xff] %vm569, %v463
      // Predicated region
      $region37: #{cross_attention.6} parent=31 // pred_check
        %p754 = pneg %p289
      $region38: #{cross_attention.6} parent=31 // pred_check_branch
        %756 = sbr.rel (%p754) target = $region40
      $region39: #{cross_attention.6} parent=31 // pred_region
        %v757 = vld [vmem:[#allocation3] sm:$0xff]
        %v758 = vld [vmem:[#allocation3 + $0x8] sm:$0xff]
        %v759 = vld [vmem:[#allocation3 + $0x10] sm:$0xff]
        %v760 = vld [vmem:[#allocation3 + $0x18] sm:$0xff]
        %v761 = vld [vmem:[#allocation3 + $0x20] sm:$0xff]
        %v762 = vrcp.pop %v757
        %v763 = vrcp.pop %v758
        %v764 = vrcp.pop %v759
        %v765 = vrcp.pop %v760
        %v766 = vrcp.pop %v761
        %v767 = vmul.f32 %v757, %v762
        %v768 = vmul.f32 %v758, %v763
        %v769 = vmul.f32 %v759, %v764
        %v770 = vmul.f32 %v760, %v765
        %v771 = vmul.f32 %v761, %v766
        %v772 = vsub.f32 2.0, %v767
        %v773 = vsub.f32 2.0, %v768
        %v774 = vsub.f32 2.0, %v769
        %v775 = vsub.f32 2.0, %v770
        %v776 = vsub.f32 2.0, %v771
        %v777 = vmul.f32 %v762, %v772
        %v778 = vmul.f32 %v763, %v773
        %v779 = vmul.f32 %v764, %v774
        %v780 = vmul.f32 %v765, %v775
        %v781 = vmul.f32 %v766, %v776
        %v782 = vld [vmem:[#allocation4] sm:$0xff]
        %v783 = vld [vmem:[#allocation4 + $0x8] sm:$0xff]
        %v784 = vld [vmem:[#allocation4 + $0x10] sm:$0xff]
        %v785 = vld [vmem:[#allocation4 + $0x18] sm:$0xff]
        %v786 = vld [vmem:[#allocation4 + $0x20] sm:$0xff]
        %788 = vset.pattern.permute.xlu0 0
        %789 = vperm.xlu0 %788, %v777
        %v790 = vpop.permute.xlu0 %789
        %793 = vset.pattern.permute.xlu0 0
        %794 = vperm.xlu0 %793, %v778
        %v795 = vpop.permute.xlu0 %794
        %798 = vset.pattern.permute.xlu0 0
        %799 = vperm.xlu0 %798, %v779
        %v800 = vpop.permute.xlu0 %799
        %803 = vset.pattern.permute.xlu0 0
        %804 = vperm.xlu0 %803, %v780
        %v805 = vpop.permute.xlu0 %804
        %808 = vset.pattern.permute.xlu0 0
        %809 = vperm.xlu0 %808, %v781
        %v810 = vpop.permute.xlu0 %809
        %v812 = vmul.f32 %v782, %v790
        %v813 = vmul.f32 %v783, %v795
        %v814 = vmul.f32 %v784, %v800
        %v815 = vmul.f32 %v785, %v805
        %v816 = vmul.f32 %v786, %v810
        %817 = vst [vmem:[%s287] sm:$0xff] %v812
        %818 = vst [vmem:[%s287 + $0x8] sm:$0xff] %v813
        %819 = vst [vmem:[%s287 + $0x10] sm:$0xff] %v814
        %820 = vst [vmem:[%s287 + $0x18] sm:$0xff] %v815
        %821 = vst [vmem:[%s287 + $0x20] sm:$0xff] %v816
      $region40: #{cross_attention.6} parent=31 // pred_fallthru
        _
      %s822 = smul.u32 5, %s20
      %p823 = scmp.lt.s32.totalorder %s19, 15
      %s824 = scalar_select %p823, %s19, 15
      %p825 = scmp.lt.s32.totalorder %s822, 4
      %s826 = scalar_select %p825, %s822, 4
      %s827 = smul.addr %s824, 5
      %s828 = sadd.s32 %s826, %s827
      %s829 = smul.addr %s828, 8
      %s830 = scalar_lea.vmem %s3, %s829
      // Predicated region
      $region41: #{cross_attention.6} parent=31 // pred_check
        %p831 = pneg %p137
      $region42: #{cross_attention.6} parent=31 // pred_check_branch
        %833 = sbr.rel (%p831) target = $region44
      $region43: #{cross_attention.6} parent=31 // pred_region
        %s834 = smul.u32 5, %s20
      $region44: #{cross_attention.6} parent=31 // pred_fallthru
        _
    $region32: #{cross_attention.6} parent=5 // pred_fallthru
      _
    %p835 = scmp.le.s32.totalorder 2, %s9
    // Predicated region
    $region45: #{cross_attention.6} parent=5 // pred_check
      %p836 = pneg %p835
    $region46: #{cross_attention.6} parent=5 // pred_check_branch
      %838 = sbr.rel (%p836) target = $region48
    $region47: #{cross_attention.6} parent=5 // pred_region
      %s839 = ssub.s32 %s9, 2
      // Predicated region
      $region49: #{cross_attention.6} parent=47 // pred_check
        %p840 = pneg %p143
      $region50: #{cross_attention.6} parent=47 // pred_check_branch
        %842 = sbr.rel (%p840) target = $region52
      $region51: #{cross_attention.6} parent=47 // pred_region
        %s843 = smul.u32 5, %s23
        %p844 = scmp.lt.s32.totalorder %s22, 15
        %s845 = scalar_select %p844, %s22, 15
        %p846 = scmp.lt.s32.totalorder %s843, 4
        %s847 = scalar_select %p846, %s843, 4
        %s848 = smul.addr %s845, 5
        %s849 = sadd.s32 %s847, %s848
        %s850 = smul.addr %s849, 8
        %s851 = scalar_lea.vmem %s3, %s850
      $region52: #{cross_attention.6} parent=47 // pred_fallthru
        _
    $region48: #{cross_attention.6} parent=5 // pred_fallthru
      _
  $region6: #{cross_attention.6} parent=0 // loop_footer
    %s13 = sadd.s32 1, %s9
  $region7: #{cross_attention.6} parent=0 // loop_footer_branch
    %8 = sbr.rel target = $region3
  $region8: #{cross_attention.6} parent=0 // loop_exit
    _

// kernel: cross_attention.7
$region0: #{cross_attention.7}
  #allocation0 [shape = 'u32[]', space=smem, size = 0x4, offset = 0x4, fixed_abs, tag = 'smem constant byte address 0x4 - core index']
  #allocation1 [shape = 'u32[144,128]{1,0:T(1,128)}', space=vmem, size = 0x12000, scoped, tag = 'internal scratch']
  #allocation2 [shape = 'f32[192,1]{1,0:T(8,128)}', space=vmem, size = 0x18000, scoped, tag = 'scratch operand']
  #allocation3 [shape = 'f32[192,1]{1,0:T(8,128)}', space=vmem, size = 0x18000, scoped, tag = 'scratch operand']
  #allocation4 [shape = 'f32[192,256]{1,0:T(8,128)}', space=vmem, size = 0x30000, scoped, tag = 'scratch operand']
  %s0 = inlined_call_operand.vmem [shape: f32[16,192,128], index: 0, kind: input, shape index: {}]
  %s1 = inlined_call_operand.vmem [shape: f32[16,40,128], index: 1, kind: input, shape index: {}]
  %s2 = inlined_call_operand.vmem [shape: f32[16,40,256], index: 2, kind: input, shape index: {}]
  %s3 = inlined_call_operand.hbm [shape: f32[16,192,256], index: 3, kind: output, shape index: {}]
  %s4 = sld [smem:[#allocation0]]
  $region53: #{cross_attention.7} parent=0
    _
  %s6 = ssub.s32 1, %s4
  %s7 = scalar_select 0, %s6, %s4
  $region1: #{cross_attention.7} parent=0
    #allocation5 [shape = 'u8[393216]{0}', space=vmem, size = 0x60000, scoped, tag = 'output window, operand 0']
    #allocation6 [shape = 's32[2]{0}', space=sflag, size = 0x8, scoped, tag = 'scoped memory for cross_attention.7']
    %8 = vsyncpa [#allocation6], 0
    %s9 = scalar_lea.sflag [#allocation6], 1
    %10 = vsyncpa %s9, 0
    loop: start=0, step=1, limit=18
    $region2: #{cross_attention.7} parent=1 // loop_pre_header
      _
    $region3: #{cross_attention.7} parent=1 // loop_header
      %s12 = sphi 0, %s16
      %p13 = scmp.ge.s32.totalorder %s12, 18
      %s19 = sphi 0, %s38
      %s20 = sphi 0, %s34
      %s21 = sphi 0, %s30
      %s22 = sphi 0, %s19
      %s23 = sphi 0, %s20
      %s24 = sphi 0, %s21
      %s25 = sphi 0, %s22
      %s26 = sphi 0, %s23
      %s27 = sphi 0, %s24
      %s43 = sphi 0, %s45
      %s46 = sphi 0, %s43
      %s47 = sphi 0, %s46
      %s63 = sphi 0, %s47
      %s71 = sphi 0, %s73
      %s74 = sphi 0, %s71
      %s75 = sphi 0, %s74
      %s91 = sphi 0, %s75
      %s99 = sphi 0, %s101
      %s102 = sphi 0, %s99
      %s103 = sphi 0, %s102
      %s119 = sphi 0, %s103
      %s127 = sphi 0, %s129
      %s130 = sphi 0, %s127
      %s131 = sphi 0, %s130
      %s147 = sphi 0, %s131
    $region4: #{cross_attention.7} parent=1 // loop_header_branch
      %15 = sbr.rel (%p13) target = $region8
    $region5: #{cross_attention.7} parent=1 // loop_body
      %s17 = ssub.s32 %s12, 1
      %s18 = ssub.s32 %s12, 2
      %s28 = sadd.s32 1, %s21
      %p29 = scmp.ge.s32.totalorder %s28, 1
      %s30 = scalar_select %p29, 0, %s28
      %s31 = sadd.s32 1, %s20
      %s32 = scalar_select %p29, %s31, %s20
      %p33 = scmp.ge.s32.totalorder %s32, 1
      %s34 = scalar_select %p33, 0, %s32
      %s35 = sadd.s32 1, %s19
      %s36 = scalar_select %p33, %s35, %s19
      %p37 = scmp.ge.s32.totalorder %s36, 16
      %s38 = scalar_select %p37, 0, %s36
      %s39 = ssub.s32 %s19, %s38
      %s40 = ssub.s32 %s20, %s34
      %s41 = sor.u32 %s39, %s40
      %p42 = scmp.eq.s32.totalorder %s41, 0
      %s44 = sadd.s32 %s43, 1
      %s45 = scalar_select %p42, %s43, %s44
      %p48 = pneg %p42
      %p49 = scmp.eq.s32.totalorder %s12, 15
      %p50 = por %p48, %p49
      %p51 = scmp.ne.s32.totalorder %s43, %s46
      %p52 = scmp.eq.s32.totalorder %s12, 0
      %p53 = por %p51, %p52
      %p54 = scmp.ne.s32.totalorder %s43, %s46
      %p55 = scmp.eq.s32.totalorder %s17, 15
      %p56 = por %p54, %p55
      %p57 = scmp.ne.s32.totalorder %s46, %s47
      %p58 = scmp.eq.s32.totalorder %s17, 0
      %p59 = por %p57, %p58
      %p60 = scmp.ne.s32.totalorder %s46, %s47
      %p61 = scmp.eq.s32.totalorder %s18, 15
      %p62 = por %p60, %p61
      %p64 = scmp.ne.s32.totalorder %s47, %s63
      %p65 = scmp.eq.s32.totalorder %s18, 0
      %p66 = por %p64, %p65
      %s67 = ssub.s32 %s19, %s38
      %s68 = ssub.s32 %s21, %s30
      %s69 = sor.u32 %s67, %s68
      %p70 = scmp.eq.s32.totalorder %s69, 0
      %s72 = sadd.s32 %s71, 1
      %s73 = scalar_select %p70, %s71, %s72
      %p76 = pneg %p70
      %p77 = scmp.eq.s32.totalorder %s12, 15
      %p78 = por %p76, %p77
      %p79 = scmp.ne.s32.totalorder %s71, %s74
      %p80 = scmp.eq.s32.totalorder %s12, 0
      %p81 = por %p79, %p80
      %p82 = scmp.ne.s32.totalorder %s71, %s74
      %p83 = scmp.eq.s32.totalorder %s17, 15
      %p84 = por %p82, %p83
      %p85 = scmp.ne.s32.totalorder %s74, %s75
      %p86 = scmp.eq.s32.totalorder %s17, 0
      %p87 = por %p85, %p86
      %p88 = scmp.ne.s32.totalorder %s74, %s75
      %p89 = scmp.eq.s32.totalorder %s18, 15
      %p90 = por %p88, %p89
      %p92 = scmp.ne.s32.totalorder %s75, %s91
      %p93 = scmp.eq.s32.totalorder %s18, 0
      %p94 = por %p92, %p93
      %s95 = ssub.s32 %s19, %s38
      %s96 = ssub.s32 %s21, %s30
      %s97 = sor.u32 %s95, %s96
      %p98 = scmp.eq.s32.totalorder %s97, 0
      %s100 = sadd.s32 %s99, 1
      %s101 = scalar_select %p98, %s99, %s100
      %p104 = pneg %p98
      %p105 = scmp.eq.s32.totalorder %s12, 15
      %p106 = por %p104, %p105
      %p107 = scmp.ne.s32.totalorder %s99, %s102
      %p108 = scmp.eq.s32.totalorder %s12, 0
      %p109 = por %p107, %p108
      %p110 = scmp.ne.s32.totalorder %s99, %s102
      %p111 = scmp.eq.s32.totalorder %s17, 15
      %p112 = por %p110, %p111
      %p113 = scmp.ne.s32.totalorder %s102, %s103
      %p114 = scmp.eq.s32.totalorder %s17, 0
      %p115 = por %p113, %p114
      %p116 = scmp.ne.s32.totalorder %s102, %s103
      %p117 = scmp.eq.s32.totalorder %s18, 15
      %p118 = por %p116, %p117
      %p120 = scmp.ne.s32.totalorder %s103, %s119
      %p121 = scmp.eq.s32.totalorder %s18, 0
      %p122 = por %p120, %p121
      %s123 = ssub.s32 %s19, %s38
      %s124 = ssub.s32 %s20, %s34
      %s125 = sor.u32 %s123, %s124
      %p126 = scmp.eq.s32.totalorder %s125, 0
      %s128 = sadd.s32 %s127, 1
      %s129 = scalar_select %p126, %s127, %s128
      %p132 = pneg %p126
      %p133 = scmp.eq.s32.totalorder %s12, 15
      %p134 = por %p132, %p133
      %p135 = scmp.ne.s32.totalorder %s127, %s130
      %p136 = scmp.eq.s32.totalorder %s12, 0
      %p137 = por %p135, %p136
      %p138 = scmp.ne.s32.totalorder %s127, %s130
      %p139 = scmp.eq.s32.totalorder %s17, 15
      %p140 = por %p138, %p139
      %p141 = scmp.ne.s32.totalorder %s130, %s131
      %p142 = scmp.eq.s32.totalorder %s17, 0
      %p143 = por %p141, %p142
      %p144 = scmp.ne.s32.totalorder %s130, %s131
      %p145 = scmp.eq.s32.totalorder %s18, 15
      %p146 = por %p144, %p145
      %p148 = scmp.ne.s32.totalorder %s131, %s147
      %p149 = scmp.eq.s32.totalorder %s18, 0
      %p150 = por %p148, %p149
      %p151 = scmp.le.s32.totalorder 1, %s12
      %p152 = scmp.lt.s32.totalorder %s12, 17
      %p153 = pnand %p151, %p152
      %p154 = pneg %p153
      // Predicated region
      $region9: #{cross_attention.7} parent=5 // pred_check
        _
      $region10: #{cross_attention.7} parent=5 // pred_check_branch
        %156 = sbr.rel (%p153) target = $region12
      $region11: #{cross_attention.7} parent=5 // pred_region
        %s157 = ssub.s32 %s12, 1
      $region12: #{cross_attention.7} parent=5 // pred_fallthru
        _
      %p158 = scmp.lt.s32.totalorder %s12, 16
      // Predicated region
      $region13: #{cross_attention.7} parent=5 // pred_check
        %p159 = pneg %p158
      $region14: #{cross_attention.7} parent=5 // pred_check_branch
        %161 = sbr.rel (%p159) target = $region16
      $region15: #{cross_attention.7} parent=5 // pred_region
        // Predicated region
        $region17: #{cross_attention.7} parent=15 // pred_check
          %p162 = pneg %p53
        $region18: #{cross_attention.7} parent=15 // pred_check_branch
          %164 = sbr.rel (%p162) target = $region20
        $region19: #{cross_attention.7} parent=15 // pred_region
          %s165 = smul.u32 24, %s20
          %p166 = scmp.lt.s32.totalorder %s19, 15
          %s167 = scalar_select %p166, %s19, 15
          %p168 = scmp.lt.s32.totalorder %s165, 23
          %s169 = scalar_select %p168, %s165, 23
          %s170 = smul.addr %s167, 24
          %s171 = sadd.s32 %s169, %s170
          %s172 = smul.addr %s171, 8
          %s173 = scalar_lea.vmem %s0, %s172
          %s174 = smul.u32 24, %s20
        $region20: #{cross_attention.7} parent=15 // pred_fallthru
          _
        // Predicated region
        $region21: #{cross_attention.7} parent=15 // pred_check
          %p175 = pneg %p81
        $region22: #{cross_attention.7} parent=15 // pred_check_branch
          %177 = sbr.rel (%p175) target = $region24
        $region23: #{cross_attention.7} parent=15 // pred_region
          %s178 = smul.u32 5, %s21
          %p179 = scmp.lt.s32.totalorder %s19, 15
          %s180 = scalar_select %p179, %s19, 15
          %p181 = scmp.lt.s32.totalorder %s178, 4
          %s182 = scalar_select %p181, %s178, 4
          %s183 = smul.addr %s180, 5
          %s184 = sadd.s32 %s182, %s183
          %s185 = smul.addr %s184, 8
          %s186 = scalar_lea.vmem %s1, %s185
          %s187 = smul.u32 5, %s21
        $region24: #{cross_attention.7} parent=15 // pred_fallthru
          _
        // Predicated region
        $region25: #{cross_attention.7} parent=15 // pred_check
          %p188 = pneg %p109
        $region26: #{cross_attention.7} parent=15 // pred_check_branch
          %190 = sbr.rel (%p188) target = $region28
        $region27: #{cross_attention.7} parent=15 // pred_region
          %s191 = smul.u32 5, %s21
          %p192 = scmp.lt.s32.totalorder %s19, 15
          %s193 = scalar_select %p192, %s19, 15
          %p194 = scmp.lt.s32.totalorder %s191, 4
          %s195 = scalar_select %p194, %s191, 4
          %s196 = smul.addr %s195, 2
          %s197 = smul.addr %s193, 10
          %s198 = sadd.s32 %s196, %s197
          %s199 = smul.addr %s198, 8
          %s200 = scalar_lea.vmem %s2, %s199
          %s201 = smul.u32 5, %s21
        $region28: #{cross_attention.7} parent=15 // pred_fallthru
          _
      $region16: #{cross_attention.7} parent=5 // pred_fallthru
        _
      %p202 = scmp.le.s32.totalorder 1, %s12
      %p203 = scmp.lt.s32.totalorder %s12, 17
      %p204 = pnand %p202, %p203
      %p205 = pneg %p204
      // Predicated region
      $region29: #{cross_attention.7} parent=5 // pred_check
        _
      $region30: #{cross_attention.7} parent=5 // pred_check_branch
        %207 = sbr.rel (%p204) target = $region32
      $region31: #{cross_attention.7} parent=5 // pred_region
        %s208 = ssub.s32 %s12, 1
        %s209 = smul.u32 24, %s23
        %p210 = scmp.lt.s32.totalorder %s22, 15
        %s211 = scalar_select %p210, %s22, 15
        %p212 = scmp.lt.s32.totalorder %s209, 23
        %s213 = scalar_select %p212, %s209, 23
        %s214 = smul.addr %s211, 24
        %s215 = sadd.s32 %s213, %s214
        %s216 = smul.addr %s215, 8
        %s217 = scalar_lea.vmem %s0, %s216
        %p218 = pneg %p59
        %p219 = pneg %p56
        %s220 = smul.u32 5, %s24
        %p221 = scmp.lt.s32.totalorder %s22, 15
        %s222 = scalar_select %p221, %s22, 15
        %p223 = scmp.lt.s32.totalorder %s220, 4
        %s224 = scalar_select %p223, %s220, 4
        %s225 = smul.addr %s222, 5
        %s226 = sadd.s32 %s224, %s225
        %s227 = smul.addr %s226, 8
        %s228 = scalar_lea.vmem %s1, %s227
        %p229 = pneg %p87
        %p230 = pneg %p84
        %s231 = smul.u32 5, %s24
        %p232 = scmp.lt.s32.totalorder %s22, 15
        %s233 = scalar_select %p232, %s22, 15
        %p234 = scmp.lt.s32.totalorder %s231, 4
        %s235 = scalar_select %p234, %s231, 4
        %s236 = smul.addr %s235, 2
        %s237 = smul.addr %s233, 10
        %s238 = sadd.s32 %s236, %s237
        %s239 = smul.addr %s238, 8
        %s240 = scalar_lea.vmem %s2, %s239
        %p241 = pneg %p115
        %p242 = pneg %p112
        %p243 = pneg %p143
        %p244 = pneg %p140
        %s245 = sand.u32 %s130, 1
        %s246 = scalar_lea.sflag [#allocation6], %s245
        %s247 = sand.u32 %s130, 1
        %s248 = smul.addr %s247, 384
        %s249 = scalar_lea.vmem [#allocation5], %s248
        %s250 = smul.u32 24, %s23
        %p251 = scmp.lt.s32.totalorder %s22, 15
        %s252 = scalar_select %p251, %s22, 15
        %p253 = scmp.lt.s32.totalorder %s250, 23
        %s254 = scalar_select %p253, %s250, 23
        %s255 = smul.addr %s252, 24
        %s256 = sadd.s32 %s254, %s255
        %s257 = smul.addr %s256, 8
        %s258 = scalar_lea.vmem %s0, %s257
        %s259 = smul.u32 24, %s23
        %s260 = smul.u32 5, %s24
        %p261 = scmp.lt.s32.totalorder %s22, 15
        %s262 = scalar_select %p261, %s22, 15
        %p263 = scmp.lt.s32.totalorder %s260, 4
        %s264 = scalar_select %p263, %s260, 4
        %s265 = smul.addr %s262, 5
        %s266 = sadd.s32 %s264, %s265
        %s267 = smul.addr %s266, 8
        %s268 = scalar_lea.vmem %s1, %s267
        %s269 = smul.u32 5, %s24
        %s270 = smul.u32 5, %s24
        %p271 = scmp.lt.s32.totalorder %s22, 15
        %s272 = scalar_select %p271, %s22, 15
        %p273 = scmp.lt.s32.totalorder %s270, 4
        %s274 = scalar_select %p273, %s270, 4
        %s275 = smul.addr %s274, 2
        %s276 = smul.addr %s272, 10
        %s277 = sadd.s32 %s275, %s276
        %s278 = smul.addr %s277, 8
        %s279 = scalar_lea.vmem %s2, %s278
        %s280 = smul.u32 5, %s24
        %s281 = smul.u32 24, %s23
        %p282 = scmp.eq.s32.totalorder %s24, 0
        // Predicated region
        $region33: #{cross_attention.7} parent=31 // pred_check
          %p283 = pneg %p282
        $region34: #{cross_attention.7} parent=31 // pred_check_branch
          %285 = sbr.rel (%p283) target = $region36
        $region35: #{cross_attention.7} parent=31 // pred_region
          %vm286 = vcmask 7168
          %287 = vst.msk [vmem:[#allocation2] sm:$0xff] %vm286, -1e+30
          %288 = vst.msk [vmem:[#allocation2 + $0x8] sm:$0xff] %vm286, -1e+30
          %289 = vst.msk [vmem:[#allocation2 + $0x10] sm:$0xff] %vm286, -1e+30
          %290 = vst.msk [vmem:[#allocation2 + $0x18] sm:$0xff] %vm286, -1e+30
          %291 = vst.msk [vmem:[#allocation2 + $0x20] sm:$0xff] %vm286, -1e+30
          %292 = vst.msk [vmem:[#allocation2 + $0x28] sm:$0xff] %vm286, -1e+30
          %293 = vst.msk [vmem:[#allocation2 + $0x30] sm:$0xff] %vm286, -1e+30
          %294 = vst.msk [vmem:[#allocation2 + $0x38] sm:$0xff] %vm286, -1e+30
          %295 = vst.msk [vmem:[#allocation2 + $0x40] sm:$0xff] %vm286, -1e+30
          %296 = vst.msk [vmem:[#allocation2 + $0x48] sm:$0xff] %vm286, -1e+30
          %297 = vst.msk [vmem:[#allocation2 + $0x50] sm:$0xff] %vm286, -1e+30
          %298 = vst.msk [vmem:[#allocation2 + $0x58] sm:$0xff] %vm286, -1e+30
          %299 = vst.msk [vmem:[#allocation2 + $0x60] sm:$0xff] %vm286, -1e+30
          %300 = vst.msk [vmem:[#allocation2 + $0x68] sm:$0xff] %vm286, -1e+30
          %301 = vst.msk [vmem:[#allocation2 + $0x70] sm:$0xff] %vm286, -1e+30
          %302 = vst.msk [vmem:[#allocation2 + $0x78] sm:$0xff] %vm286, -1e+30
          %303 = vst.msk [vmem:[#allocation2 + $0x80] sm:$0xff] %vm286, -1e+30
          %304 = vst.msk [vmem:[#allocation2 + $0x88] sm:$0xff] %vm286, -1e+30
          %305 = vst.msk [vmem:[#allocation2 + $0x90] sm:$0xff] %vm286, -1e+30
          %306 = vst.msk [vmem:[#allocation2 + $0x98] sm:$0xff] %vm286, -1e+30
          %307 = vst.msk [vmem:[#allocation2 + $0xa0] sm:$0xff] %vm286, -1e+30
          %308 = vst.msk [vmem:[#allocation2 + $0xa8] sm:$0xff] %vm286, -1e+30
          %309 = vst.msk [vmem:[#allocation2 + $0xb0] sm:$0xff] %vm286, -1e+30
          %310 = vst.msk [vmem:[#allocation2 + $0xb8] sm:$0xff] %vm286, -1e+30
          %311 = vst.msk [vmem:[#allocation3] sm:$0xff] %vm286, 0.0
          %312 = vst.msk [vmem:[#allocation3 + $0x8] sm:$0xff] %vm286, 0.0
          %313 = vst.msk [vmem:[#allocation3 + $0x10] sm:$0xff] %vm286, 0.0
          %314 = vst.msk [vmem:[#allocation3 + $0x18] sm:$0xff] %vm286, 0.0
          %315 = vst.msk [vmem:[#allocation3 + $0x20] sm:$0xff] %vm286, 0.0
          %316 = vst.msk [vmem:[#allocation3 + $0x28] sm:$0xff] %vm286, 0.0
          %317 = vst.msk [vmem:[#allocation3 + $0x30] sm:$0xff] %vm286, 0.0
          %318 = vst.msk [vmem:[#allocation3 + $0x38] sm:$0xff] %vm286, 0.0
          %319 = vst.msk [vmem:[#allocation3 + $0x40] sm:$0xff] %vm286, 0.0
          %320 = vst.msk [vmem:[#allocation3 + $0x48] sm:$0xff] %vm286, 0.0
          %321 = vst.msk [vmem:[#allocation3 + $0x50] sm:$0xff] %vm286, 0.0
          %322 = vst.msk [vmem:[#allocation3 + $0x58] sm:$0xff] %vm286, 0.0
          %323 = vst.msk [vmem:[#allocation3 + $0x60] sm:$0xff] %vm286, 0.0
          %324 = vst.msk [vmem:[#allocation3 + $0x68] sm:$0xff] %vm286, 0.0
          %325 = vst.msk [vmem:[#allocation3 + $0x70] sm:$0xff] %vm286, 0.0
          %326 = vst.msk [vmem:[#allocation3 + $0x78] sm:$0xff] %vm286, 0.0
          %327 = vst.msk [vmem:[#allocation3 + $0x80] sm:$0xff] %vm286, 0.0
          %328 = vst.msk [vmem:[#allocation3 + $0x88] sm:$0xff] %vm286, 0.0
          %329 = vst.msk [vmem:[#allocation3 + $0x90] sm:$0xff] %vm286, 0.0
          %330 = vst.msk [vmem:[#allocation3 + $0x98] sm:$0xff] %vm286, 0.0
          %331 = vst.msk [vmem:[#allocation3 + $0xa0] sm:$0xff] %vm286, 0.0
          %332 = vst.msk [vmem:[#allocation3 + $0xa8] sm:$0xff] %vm286, 0.0
          %333 = vst.msk [vmem:[#allocation3 + $0xb0] sm:$0xff] %vm286, 0.0
          %334 = vst.msk [vmem:[#allocation3 + $0xb8] sm:$0xff] %vm286, 0.0
          %335 = vst [vmem:[#allocation4] sm:$0xff] 0.0
          %336 = vst [vmem:[#allocation4 + $0x8] sm:$0xff] 0.0
          %337 = vst [vmem:[#allocation4 + $0x10] sm:$0xff] 0.0
          %338 = vst [vmem:[#allocation4 + $0x18] sm:$0xff] 0.0
          %339 = vst [vmem:[#allocation4 + $0x20] sm:$0xff] 0.0
          %340 = vst [vmem:[#allocation4 + $0x28] sm:$0xff] 0.0
          %341 = vst [vmem:[#allocation4 + $0x30] sm:$0xff] 0.0
          %342 = vst [vmem:[#allocation4 + $0x38] sm:$0xff] 0.0
          %343 = vst [vmem:[#allocation4 + $0x40] sm:$0xff] 0.0
          %344 = vst [vmem:[#allocation4 + $0x48] sm:$0xff] 0.0
          %345 = vst [vmem:[#allocation4 + $0x50] sm:$0xff] 0.0
          %346 = vst [vmem:[#allocation4 + $0x58] sm:$0xff] 0.0
          %347 = vst [vmem:[#allocation4 + $0x60] sm:$0xff] 0.0
          %348 = vst [vmem:[#allocation4 + $0x68] sm:$0xff] 0.0
          %349 = vst [vmem:[#allocation4 + $0x70] sm:$0xff] 0.0
          %350 = vst [vmem:[#allocation4 + $0x78] sm:$0xff] 0.0
          %351 = vst [vmem:[#allocation4 + $0x80] sm:$0xff] 0.0
          %352 = vst [vmem:[#allocation4 + $0x88] sm:$0xff] 0.0
          %353 = vst [vmem:[#allocation4 + $0x90] sm:$0xff] 0.0
          %354 = vst [vmem:[#allocation4 + $0x98] sm:$0xff] 0.0
          %355 = vst [vmem:[#allocation4 + $0xa0] sm:$0xff] 0.0
          %356 = vst [vmem:[#allocation4 + $0xa8] sm:$0xff] 0.0
          %357 = vst [vmem:[#allocation4 + $0xb0] sm:$0xff] 0.0
          %358 = vst [vmem:[#allocation4 + $0xb8] sm:$0xff] 0.0
          %359 = vst [vmem:[#allocation4 + $0xc0] sm:$0xff] 0.0
          %360 = vst [vmem:[#allocation4 + $0xc8] sm:$0xff] 0.0
          %361 = vst [vmem:[#allocation4 + $0xd0] sm:$0xff] 0.0
          %362 = vst [vmem:[#allocation4 + $0xd8] sm:$0xff] 0.0
          %363 = vst [vmem:[#allocation4 + $0xe0] sm:$0xff] 0.0
          %364 = vst [vmem:[#allocation4 + $0xe8] sm:$0xff] 0.0
          %365 = vst [vmem:[#allocation4 + $0xf0] sm:$0xff] 0.0
          %366 = vst [vmem:[#allocation4 + $0xf8] sm:$0xff] 0.0
          %367 = vst [vmem:[#allocation4 + $0x100] sm:$0xff] 0.0
          %368 = vst [vmem:[#allocation4 + $0x108] sm:$0xff] 0.0
          %369 = vst [vmem:[#allocation4 + $0x110] sm:$0xff] 0.0
          %370 = vst [vmem:[#allocation4 + $0x118] sm:$0xff] 0.0
          %371 = vst [vmem:[#allocation4 + $0x120] sm:$0xff] 0.0
          %372 = vst [vmem:[#allocation4 + $0x128] sm:$0xff] 0.0
          %373 = vst [vmem:[#allocation4 + $0x130] sm:$0xff] 0.0
          %374 = vst [vmem:[#allocation4 + $0x138] sm:$0xff] 0.0
          %375 = vst [vmem:[#allocation4 + $0x140] sm:$0xff] 0.0
          %376 = vst [vmem:[#allocation4 + $0x148] sm:$0xff] 0.0
          %377 = vst [vmem:[#allocation4 + $0x150] sm:$0xff] 0.0
          %378 = vst [vmem:[#allocation4 + $0x158] sm:$0xff] 0.0
          %379 = vst [vmem:[#allocation4 + $0x160] sm:$0xff] 0.0
          %380 = vst [vmem:[#allocation4 + $0x168] sm:$0xff] 0.0
          %381 = vst [vmem:[#allocation4 + $0x170] sm:$0xff] 0.0
          %382 = vst [vmem:[#allocation4 + $0x178] sm:$0xff] 0.0
        $region36: #{cross_attention.7} parent=31 // pred_fallthru
          _
        %v383 = vld [vmem:[%s258] sm:$0xff]
        %v384 = vld [vmem:[%s258 + $0x8] sm:$0xff]
        %v385 = vld [vmem:[%s258 + $0x10] sm:$0xff]
        %v386 = vld [vmem:[%s258 + $0x18] sm:$0xff]
        %v387 = vld [vmem:[%s258 + $0x20] sm:$0xff]
        %v388 = vld [vmem:[%s258 + $0x28] sm:$0xff]
        %v389 = vld [vmem:[%s258 + $0x30] sm:$0xff]
        %v390 = vld [vmem:[%s258 + $0x38] sm:$0xff]
        %v391 = vld [vmem:[%s258 + $0x40] sm:$0xff]
        %v392 = vld [vmem:[%s258 + $0x48] sm:$0xff]
        %v393 = vld [vmem:[%s258 + $0x50] sm:$0xff]
        %v394 = vld [vmem:[%s258 + $0x58] sm:$0xff]
        %v395 = vld [vmem:[%s258 + $0x60] sm:$0xff]
        %v396 = vld [vmem:[%s258 + $0x68] sm:$0xff]
        %v397 = vld [vmem:[%s258 + $0x70] sm:$0xff]
        %v398 = vld [vmem:[%s258 + $0x78] sm:$0xff]
        %v399 = vld [vmem:[%s258 + $0x80] sm:$0xff]
        %v400 = vld [vmem:[%s258 + $0x88] sm:$0xff]
        %v401 = vld [vmem:[%s258 + $0x90] sm:$0xff]
        %v402 = vld [vmem:[%s258 + $0x98] sm:$0xff]
        %v403 = vld [vmem:[%s258 + $0xa0] sm:$0xff]
        %v404 = vld [vmem:[%s258 + $0xa8] sm:$0xff]
        %v405 = vld [vmem:[%s258 + $0xb0] sm:$0xff]
        %v406 = vld [vmem:[%s258 + $0xb8] sm:$0xff]
        %v407 = vld [vmem:[%s268] sm:$0xff]
        %v408 = vld [vmem:[%s268 + $0x8] sm:$0xff]
        %v409 = vld [vmem:[%s268 + $0x10] sm:$0xff]
        %v410 = vld [vmem:[%s268 + $0x18] sm:$0xff]
        %v411 = vld [vmem:[%s268 + $0x20] sm:$0xff]
        %412 = vmatprep.subr.mxu0 0.0
        %413 = vmatpush1.xpose.msra.mxu0 %v407
        %414 = vmatprep.subr.mxu0 0.0
        %415 = vmatpush1.xpose.msra.mxu0 %v408
        %416 = vmatprep.subr.mxu0 0.0
        %417 = vmatpush1.xpose.msra.mxu0 %v409
        %418 = vmatprep.subr.mxu0 0.0
        %419 = vmatpush1.xpose.msra.mxu0 %v410
        %420 = vmatprep.subr.mxu0 0.0
        %421 = vmatpush1.xpose.msra.mxu0 %v411
        %422 = vmatprep.subr.mxu0 0.0
        %423 = vmatpush1.xpose.msra.mxu0 0.0
        %424 = vmatprep.subr.mxu0 0.0
        %425 = vmatpush1.xpose.msra.mxu0 0.0
        %426 = vmatprep.subr.mxu0 0.0
        %427 = vmatpush1.xpose.msra.mxu0 0.0
        %428 = vmatprep.subr.mxu0 0.0
        %429 = vmatpush1.xpose.msra.mxu0 0.0
        %430 = vmatprep.subr.mxu0 0.0
        %431 = vmatpush1.xpose.msra.mxu0 0.0
        %432 = vmatprep.subr.mxu0 0.0
        %433 = vmatpush1.xpose.msra.mxu0 0.0
        %434 = vmatprep.subr.mxu0 0.0
        %435 = vmatpush1.xpose.msra.mxu0 0.0
        %436 = vmatprep.subr.mxu0 0.0
        %437 = vmatpush1.xpose.msra.mxu0 0.0
        %438 = vmatprep.subr.mxu0 0.0
        %439 = vmatpush1.xpose.msra.mxu0 0.0
        %440 = vmatprep.subr.mxu0 0.0
        %441 = vmatpush1.xpose.msra.mxu0 0.0
        %442 = vmatprep.subr.mxu0 0.0
        %443 = vmatpush1.xpose.msra.mxu0 0.0
        %444 = vmatprep.subr.mxu0 0.0
        %445 = vmatpush1.xpose.msra.mxu0 0.0
        %446 = vmatprep.subr.mxu0 0.0
        %447 = vmatpush1.xpose.msra.mxu0 0.0
        %448 = vmatprep.subr.mxu0 0.0
        %449 = vmatpush1.xpose.msra.mxu0 0.0
        %450 = vmatprep.subr.mxu0 0.0
        %451 = vmatpush1.xpose.msra.mxu0 0.0
        %452 = vmatprep.subr.mxu0 0.0
        %453 = vmatpush1.xpose.msra.mxu0 0.0
        %454 = vmatprep.subr.mxu0 0.0
        %455 = vmatpush1.xpose.msra.mxu0 0.0
        %456 = vmatprep.subr.mxu0 0.0
        %457 = vmatpush1.xpose.msra.mxu0 0.0
        %458 = vmatprep.subr.mxu0 0.0
        %459 = vmatpush1.xpose.msra.mxu0 0.0
        %460 = vmatprep.subr.mxu0 0.0
        %461 = vmatpush1.xpose.msra.mxu0 0.0
        %462 = vmatprep.subr.mxu0 0.0
        %463 = vmatpush1.xpose.msra.mxu0 0.0
        %464 = vmatprep.subr.mxu0 0.0
        %465 = vmatpush1.xpose.msra.mxu0 0.0
        %466 = vmatprep.subr.mxu0 0.0
        %467 = vmatpush1.xpose.msra.mxu0 0.0
        %468 = vmatprep.subr.mxu0 0.0
        %469 = vmatpush1.xpose.msra.mxu0 0.0
        %470 = vmatprep.subr.mxu0 0.0
        %471 = vmatpush1.xpose.msra.mxu0 0.0
        %472 = vmatprep.subr.mxu0 0.0
        %473 = vmatpush1.xpose.msra.mxu0 0.0
        %474 = vmatprep.subr.mxu0 0.0
        %475 = vmatpush1.xpose.msra.mxu0 0.0
        %476 = vmatprep.mubr.f32.mxu0 0.0
        %477 = vmatmul.mubr.f32.gmra.mrb[0].mxu0 %v383
        %v478 = vpop.f32.mrb[0].mxu0
        %v479 = vadd.f32 0.0, %v478
        %v480 = vpop.f32.mrb[0].mxu0
        %481 = vmatprep.mubr.f32.mxu0 0.0
        %482 = vmatmul.mubr.f32.gmra.mrb[0].mxu0 %v384
        %v483 = vpop.f32.mrb[0].mxu0
        %v484 = vadd.f32 0.0, %v483
        %v485 = vpop.f32.mrb[0].mxu0
        %486 = vmatprep.mubr.f32.mxu0 0.0
        %487 = vmatmul.mubr.f32.gmra.mrb[0].mxu0 %v385
        %v488 = vpop.f32.mrb[0].mxu0
        %v489 = vadd.f32 0.0, %v488
        %v490 = vpop.f32.mrb[0].mxu0
        %491 = vmatprep.mubr.f32.mxu0 0.0
        %492 = vmatmul.mubr.f32.gmra.mrb[0].mxu0 %v386
        %v493 = vpop.f32.mrb[0].mxu0
        %v494 = vadd.f32 0.0, %v493
        %v495 = vpop.f32.mrb[0].mxu0
        %496 = vmatprep.mubr.f32.mxu0 0.0
        %497 = vmatmul.mubr.f32.gmra.mrb[0].mxu0 %v387
        %v498 = vpop.f32.mrb[0].mxu0
        %v499 = vadd.f32 0.0, %v498
        %v500 = vpop.f32.mrb[0].mxu0
        %501 = vmatprep.mubr.f32.mxu0 0.0
        %502 = vmatmul.mubr.f32.gmra.mrb[0].mxu0 %v388
        %v503 = vpop.f32.mrb[0].mxu0
        %v504 = vadd.f32 0.0, %v503
        %v505 = vpop.f32.mrb[0].mxu0
        %506 = vmatprep.mubr.f32.mxu0 0.0
        %507 = vmatmul.mubr.f32.gmra.mrb[0].mxu0 %v389
        %v508 = vpop.f32.mrb[0].mxu0
        %v509 = vadd.f32 0.0, %v508
        %v510 = vpop.f32.mrb[0].mxu0
        %511 = vmatprep.mubr.f32.mxu0 0.0
        %512 = vmatmul.mubr.f32.gmra.mrb[0].mxu0 %v390
        %v513 = vpop.f32.mrb[0].mxu0
        %v514 = vadd.f32 0.0, %v513
        %v515 = vpop.f32.mrb[0].mxu0
        %516 = vmatprep.mubr.f32.mxu0 0.0
        %517 = vmatmul.mubr.f32.gmra.mrb[0].mxu0 %v391
        %v518 = vpop.f32.mrb[0].mxu0
        %v519 = vadd.f32 0.0, %v518
        %v520 = vpop.f32.mrb[0].mxu0
        %521 = vmatprep.mubr.f32.mxu0 0.0
        %522 = vmatmul.mubr.f32.gmra.mrb[0].mxu0 %v392
        %v523 = vpop.f32.mrb[0].mxu0
        %v524 = vadd.f32 0.0, %v523
        %v525 = vpop.f32.mrb[0].mxu0
        %526 = vmatprep.mubr.f32.mxu0 0.0
        %527 = vmatmul.mubr.f32.gmra.mrb[0].mxu0 %v393
        %v528 = vpop.f32.mrb[0].mxu0
        %v529 = vadd.f32 0.0, %v528
        %v530 = vpop.f32.mrb[0].mxu0
        %531 = vmatprep.mubr.f32.mxu0 0.0
        %532 = vmatmul.mubr.f32.gmra.mrb[0].mxu0 %v394
        %v533 = vpop.f32.mrb[0].mxu0
        %v534 = vadd.f32 0.0, %v533
        %v535 = vpop.f32.mrb[0].mxu0
        %536 = vmatprep.mubr.f32.mxu0 0.0
        %537 = vmatmul.mubr.f32.gmra.mrb[0].mxu0 %v395
        %v538 = vpop.f32.mrb[0].mxu0
        %v539 = vadd.f32 0.0, %v538
        %v540 = vpop.f32.mrb[0].mxu0
        %541 = vmatprep.mubr.f32.mxu0 0.0
        %542 = vmatmul.mubr.f32.gmra.mrb[0].mxu0 %v396
        %v543 = vpop.f32.mrb[0].mxu0
        %v544 = vadd.f32 0.0, %v543
        %v545 = vpop.f32.mrb[0].mxu0
        %546 = vmatprep.mubr.f32.mxu0 0.0
        %547 = vmatmul.mubr.f32.gmra.mrb[0].mxu0 %v397
        %v548 = vpop.f32.mrb[0].mxu0
        %v549 = vadd.f32 0.0, %v548
        %v550 = vpop.f32.mrb[0].mxu0
        %551 = vmatprep.mubr.f32.mxu0 0.0
        %552 = vmatmul.mubr.f32.gmra.mrb[0].mxu0 %v398
        %v553 = vpop.f32.mrb[0].mxu0
        %v554 = vadd.f32 0.0, %v553
        %v555 = vpop.f32.mrb[0].mxu0
        %556 = vmatprep.mubr.f32.mxu0 0.0
        %557 = vmatmul.mubr.f32.gmra.mrb[0].mxu0 %v399
        %v558 = vpop.f32.mrb[0].mxu0
        %v559 = vadd.f32 0.0, %v558
        %v560 = vpop.f32.mrb[0].mxu0
        %561 = vmatprep.mubr.f32.mxu0 0.0
        %562 = vmatmul.mubr.f32.gmra.mrb[0].mxu0 %v400
        %v563 = vpop.f32.mrb[0].mxu0
        %v564 = vadd.f32 0.0, %v563
        %v565 = vpop.f32.mrb[0].mxu0
        %566 = vmatprep.mubr.f32.mxu0 0.0
        %567 = vmatmul.mubr.f32.gmra.mrb[0].mxu0 %v401
        %v568 = vpop.f32.mrb[0].mxu0
        %v569 = vadd.f32 0.0, %v568
        %v570 = vpop.f32.mrb[0].mxu0
        %571 = vmatprep.mubr.f32.mxu0 0.0
        %572 = vmatmul.mubr.f32.gmra.mrb[0].mxu0 %v402
        %v573 = vpop.f32.mrb[0].mxu0
        %v574 = vadd.f32 0.0, %v573
        %v575 = vpop.f32.mrb[0].mxu0
        %576 = vmatprep.mubr.f32.mxu0 0.0
        %577 = vmatmul.mubr.f32.gmra.mrb[0].mxu0 %v403
        %v578 = vpop.f32.mrb[0].mxu0
        %v579 = vadd.f32 0.0, %v578
        %v580 = vpop.f32.mrb[0].mxu0
        %581 = vmatprep.mubr.f32.mxu0 0.0
        %582 = vmatmul.mubr.f32.gmra.mrb[0].mxu0 %v404
        %v583 = vpop.f32.mrb[0].mxu0
        %v584 = vadd.f32 0.0, %v583
        %v585 = vpop.f32.mrb[0].mxu0
        %586 = vmatprep.mubr.f32.mxu0 0.0
        %587 = vmatmul.mubr.f32.gmra.mrb[0].mxu0 %v405
        %v588 = vpop.f32.mrb[0].mxu0
        %v589 = vadd.f32 0.0, %v588
        %v590 = vpop.f32.mrb[0].mxu0
        %591 = vmatprep.mubr.f32.mxu0 0.0
        %592 = vmatmul.mubr.f32.gmra.mrb[0].mxu0 %v406
        %v593 = vpop.f32.mrb[0].mxu0
        %v594 = vadd.f32 0.0, %v593
        %v595 = vpop.f32.mrb[0].mxu0
        %596 = vdwg.mxu0
        %s597 = smul.u32 %s24, 40
        %v598 = vlaneseq
        %v599 = vand.u32 %v598, 127
        %v600 = vstv %s597
        %v601 = vadd.s32 %v600, %v599
        %vm602 = vcmp.lt.s32.totalorder %v601, 36
        %v603 = vsel %vm602, %v479, -1e+30
        %v604 = vsel %vm602, %v484, -1e+30
        %v605 = vsel %vm602, %v489, -1e+30
        %v606 = vsel %vm602, %v494, -1e+30
        %v607 = vsel %vm602, %v499, -1e+30
        %v608 = vsel %vm602, %v504, -1e+30
        %v609 = vsel %vm602, %v509, -1e+30
        %v610 = vsel %vm602, %v514, -1e+30
        %v611 = vsel %vm602, %v519, -1e+30
        %v612 = vsel %vm602, %v524, -1e+30
        %v613 = vsel %vm602, %v529, -1e+30
        %v614 = vsel %vm602, %v534, -1e+30
        %v615 = vsel %vm602, %v539, -1e+30
        %v616 = vsel %vm602, %v544, -1e+30
        %v617 = vsel %vm602, %v549, -1e+30
        %v618 = vsel %vm602, %v554, -1e+30
        %v619 = vsel %vm602, %v559, -1e+30
        %v620 = vsel %vm602, %v564, -1e+30
        %v621 = vsel %vm602, %v569, -1e+30
        %v622 = vsel %vm602, %v574, -1e+30
        %v623 = vsel %vm602, %v579, -1e+30
        %v624 = vsel %vm602, %v584, -1e+30
        %v625 = vsel %vm602, %v589, -1e+30
        %v626 = vsel %vm602, %v594, -1e+30
        %v627 = vld [vmem:[#allocation2] sm:$0xff]
        %v628 = vld [vmem:[#allocation2 + $0x8] sm:$0xff]
        %v629 = vld [vmem:[#allocation2 + $0x10] sm:$0xff]
        %v630 = vld [vmem:[#allocation2 + $0x18] sm:$0xff]
        %v631 = vld [vmem:[#allocation2 + $0x20] sm:$0xff]
        %v632 = vld [vmem:[#allocation2 + $0x28] sm:$0xff]
        %v633 = vld [vmem:[#allocation2 + $0x30] sm:$0xff]
        %v634 = vld [vmem:[#allocation2 + $0x38] sm:$0xff]
        %v635 = vld [vmem:[#allocation2 + $0x40] sm:$0xff]
        %v636 = vld [vmem:[#allocation2 + $0x48] sm:$0xff]
        %v637 = vld [vmem:[#allocation2 + $0x50] sm:$0xff]
        %v638 = vld [vmem:[#allocation2 + $0x58] sm:$0xff]
        %v639 = vld [vmem:[#allocation2 + $0x60] sm:$0xff]
        %v640 = vld [vmem:[#allocation2 + $0x68] sm:$0xff]
        %v641 = vld [vmem:[#allocation2 + $0x70] sm:$0xff]
        %v642 = vld [vmem:[#allocation2 + $0x78] sm:$0xff]
        %v643 = vld [vmem:[#allocation2 + $0x80] sm:$0xff]
        %v644 = vld [vmem:[#allocation2 + $0x88] sm:$0xff]
        %v645 = vld [vmem:[#allocation2 + $0x90] sm:$0xff]
        %v646 = vld [vmem:[#allocation2 + $0x98] sm:$0xff]
        %v647 = vld [vmem:[#allocation2 + $0xa0] sm:$0xff]
        %v648 = vld [vmem:[#allocation2 + $0xa8] sm:$0xff]
        %v649 = vld [vmem:[#allocation2 + $0xb0] sm:$0xff]
        %v650 = vld [vmem:[#allocation2 + $0xb8] sm:$0xff]
        %vm651 = vcmask 326656
        %v652 = vsel %vm651, %v603, -inf
        %653 = vmax.xlane.f32.xlu0 %v652
        %v654 = vpop.xlane.xlu0 %653
        %v655 = vsel %vm651, %v604, -inf
        %656 = vmax.xlane.f32.xlu0 %v655
        %v657 = vpop.xlane.xlu0 %656
        %v658 = vsel %vm651, %v605, -inf
        %659 = vmax.xlane.f32.xlu0 %v658
        %v660 = vpop.xlane.xlu0 %659
        %v661 = vsel %vm651, %v606, -inf
        %662 = vmax.xlane.f32.xlu0 %v661
        %v663 = vpop.xlane.xlu0 %662
        %v664 = vsel %vm651, %v607, -inf
        %665 = vmax.xlane.f32.xlu0 %v664
        %v666 = vpop.xlane.xlu0 %665
        %v667 = vsel %vm651, %v608, -inf
        %668 = vmax.xlane.f32.xlu0 %v667
        %v669 = vpop.xlane.xlu0 %668
        %v670 = vsel %vm651, %v609, -inf
        %671 = vmax.xlane.f32.xlu0 %v670
        %v672 = vpop.xlane.xlu0 %671
        %v673 = vsel %vm651, %v610, -inf
        %674 = vmax.xlane.f32.xlu0 %v673
        %v675 = vpop.xlane.xlu0 %674
        %v676 = vsel %vm651, %v611, -inf
        %677 = vmax.xlane.f32.xlu0 %v676
        %v678 = vpop.xlane.xlu0 %677
        %v679 = vsel %vm651, %v612, -inf
        %680 = vmax.xlane.f32.xlu0 %v679
        %v681 = vpop.xlane.xlu0 %680
        %v682 = vsel %vm651, %v613, -inf
        %683 = vmax.xlane.f32.xlu0 %v682
        %v684 = vpop.xlane.xlu0 %683
        %v685 = vsel %vm651, %v614, -inf
        %686 = vmax.xlane.f32.xlu0 %v685
        %v687 = vpop.xlane.xlu0 %686
        %v688 = vsel %vm651, %v615, -inf
        %689 = vmax.xlane.f32.xlu0 %v688
        %v690 = vpop.xlane.xlu0 %689
        %v691 = vsel %vm651, %v616, -inf
        %692 = vmax.xlane.f32.xlu0 %v691
        %v693 = vpop.xlane.xlu0 %692
        %v694 = vsel %vm651, %v617, -inf
        %695 = vmax.xlane.f32.xlu0 %v694
        %v696 = vpop.xlane.xlu0 %695
        %v697 = vsel %vm651, %v618, -inf
        %698 = vmax.xlane.f32.xlu0 %v697
        %v699 = vpop.xlane.xlu0 %698
        %v700 = vsel %vm651, %v619, -inf
        %701 = vmax.xlane.f32.xlu0 %v700
        %v702 = vpop.xlane.xlu0 %701
        %v703 = vsel %vm651, %v620, -inf
        %704 = vmax.xlane.f32.xlu0 %v703
        %v705 = vpop.xlane.xlu0 %704
        %v706 = vsel %vm651, %v621, -inf
        %707 = vmax.xlane.f32.xlu0 %v706
        %v708 = vpop.xlane.xlu0 %707
        %v709 = vsel %vm651, %v622, -inf
        %710 = vmax.xlane.f32.xlu0 %v709
        %v711 = vpop.xlane.xlu0 %710
        %v712 = vsel %vm651, %v623, -inf
        %713 = vmax.xlane.f32.xlu0 %v712
        %v714 = vpop.xlane.xlu0 %713
        %v715 = vsel %vm651, %v624, -inf
        %716 = vmax.xlane.f32.xlu0 %v715
        %v717 = vpop.xlane.xlu0 %716
        %v718 = vsel %vm651, %v625, -inf
        %719 = vmax.xlane.f32.xlu0 %v718
        %v720 = vpop.xlane.xlu0 %719
        %v721 = vsel %vm651, %v626, -inf
        %722 = vmax.xlane.f32.xlu0 %v721
        %v723 = vpop.xlane.xlu0 %722
        %v724 = vmax.f32 %v627, %v654
        %v725 = vmax.f32 %v628, %v657
        %v726 = vmax.f32 %v629, %v660
        %v727 = vmax.f32 %v630, %v663
        %v728 = vmax.f32 %v631, %v666
        %v729 = vmax.f32 %v632, %v669
        %v730 = vmax.f32 %v633, %v672
        %v731 = vmax.f32 %v634, %v675
        %v732 = vmax.f32 %v635, %v678
        %v733 = vmax.f32 %v636, %v681
        %v734 = vmax.f32 %v637, %v684
        %v735 = vmax.f32 %v638, %v687
        %v736 = vmax.f32 %v639, %v690
        %v737 = vmax.f32 %v640, %v693
        %v738 = vmax.f32 %v641, %v696
        %v739 = vmax.f32 %v642, %v699
        %v740 = vmax.f32 %v643, %v702
        %v741 = vmax.f32 %v644, %v705
        %v742 = vmax.f32 %v645, %v708
        %v743 = vmax.f32 %v646, %v711
        %v744 = vmax.f32 %v647, %v714
        %v745 = vmax.f32 %v648, %v717
        %v746 = vmax.f32 %v649, %v720
        %v747 = vmax.f32 %v650, %v723
        %v748 = vsub.f32 %v627, %v724
        %v749 = vsub.f32 %v628, %v725
        %v750 = vsub.f32 %v629, %v726
        %v751 = vsub.f32 %v630, %v727
        %v752 = vsub.f32 %v631, %v728
        %v753 = vsub.f32 %v632, %v729
        %v754 = vsub.f32 %v633, %v730
        %v755 = vsub.f32 %v634, %v731
        %v756 = vsub.f32 %v635, %v732
        %v757 = vsub.f32 %v636, %v733
        %v758 = vsub.f32 %v637, %v734
        %v759 = vsub.f32 %v638, %v735
        %v760 = vsub.f32 %v639, %v736
        %v761 = vsub.f32 %v640, %v737
        %v762 = vsub.f32 %v641, %v738
        %v763 = vsub.f32 %v642, %v739
        %v764 = vsub.f32 %v643, %v740
        %v765 = vsub.f32 %v644, %v741
        %v766 = vsub.f32 %v645, %v742
        %v767 = vsub.f32 %v646, %v743
        %v768 = vsub.f32 %v647, %v744
        %v769 = vsub.f32 %v648, %v745
        %v770 = vsub.f32 %v649, %v746
        %v771 = vsub.f32 %v650, %v747
        %v772 = vmul.f32 %v748, 1.442695
        %v773 = vpow.pop %v772
        %v774 = vmul.f32 %v749, 1.442695
        %v775 = vpow.pop %v774
        %v776 = vmul.f32 %v750, 1.442695
        %v777 = vpow.pop %v776
        %v778 = vmul.f32 %v751, 1.442695
        %v779 = vpow.pop %v778
        %v780 = vmul.f32 %v752, 1.442695
        %v781 = vpow.pop %v780
        %v782 = vmul.f32 %v753, 1.442695
        %v783 = vpow.pop %v782
        %v784 = vmul.f32 %v754, 1.442695
        %v785 = vpow.pop %v784
        %v786 = vmul.f32 %v755, 1.442695
        %v787 = vpow.pop %v786
        %v788 = vmul.f32 %v756, 1.442695
        %v789 = vpow.pop %v788
        %v790 = vmul.f32 %v757, 1.442695
        %v791 = vpow.pop %v790
        %v792 = vmul.f32 %v758, 1.442695
        %v793 = vpow.pop %v792
        %v794 = vmul.f32 %v759, 1.442695
        %v795 = vpow.pop %v794
        %v796 = vmul.f32 %v760, 1.442695
        %v797 = vpow.pop %v796
        %v798 = vmul.f32 %v761, 1.442695
        %v799 = vpow.pop %v798
        %v800 = vmul.f32 %v762, 1.442695
        %v801 = vpow.pop %v800
        %v802 = vmul.f32 %v763, 1.442695
        %v803 = vpow.pop %v802
        %v804 = vmul.f32 %v764, 1.442695
        %v805 = vpow.pop %v804
        %v806 = vmul.f32 %v765, 1.442695
        %v807 = vpow.pop %v806
        %v808 = vmul.f32 %v766, 1.442695
        %v809 = vpow.pop %v808
        %v810 = vmul.f32 %v767, 1.442695
        %v811 = vpow.pop %v810
        %v812 = vmul.f32 %v768, 1.442695
        %v813 = vpow.pop %v812
        %v814 = vmul.f32 %v769, 1.442695
        %v815 = vpow.pop %v814
        %v816 = vmul.f32 %v770, 1.442695
        %v817 = vpow.pop %v816
        %v818 = vmul.f32 %v771, 1.442695
        %v819 = vpow.pop %v818
        %821 = vset.pattern.permute.xlu0 0
        %822 = vperm.xlu0 %821, %v724
        %v823 = vpop.permute.xlu0 %822
        %826 = vset.pattern.permute.xlu0 0
        %827 = vperm.xlu0 %826, %v725
        %v828 = vpop.permute.xlu0 %827
        %831 = vset.pattern.permute.xlu0 0
        %832 = vperm.xlu0 %831, %v726
        %v833 = vpop.permute.xlu0 %832
        %836 = vset.pattern.permute.xlu0 0
        %837 = vperm.xlu0 %836, %v727
        %v838 = vpop.permute.xlu0 %837
        %841 = vset.pattern.permute.xlu0 0
        %842 = vperm.xlu0 %841, %v728
        %v843 = vpop.permute.xlu0 %842
        %846 = vset.pattern.permute.xlu0 0
        %847 = vperm.xlu0 %846, %v729
        %v848 = vpop.permute.xlu0 %847
        %851 = vset.pattern.permute.xlu0 0
        %852 = vperm.xlu0 %851, %v730
        %v853 = vpop.permute.xlu0 %852
        %856 = vset.pattern.permute.xlu0 0
        %857 = vperm.xlu0 %856, %v731
        %v858 = vpop.permute.xlu0 %857
        %861 = vset.pattern.permute.xlu0 0
        %862 = vperm.xlu0 %861, %v732
        %v863 = vpop.permute.xlu0 %862
        %866 = vset.pattern.permute.xlu0 0
        %867 = vperm.xlu0 %866, %v733
        %v868 = vpop.permute.xlu0 %867
        %871 = vset.pattern.permute.xlu0 0
        %872 = vperm.xlu0 %871, %v734
        %v873 = vpop.permute.xlu0 %872
        %876 = vset.pattern.permute.xlu0 0
        %877 = vperm.xlu0 %876, %v735
        %v878 = vpop.permute.xlu0 %877
        %881 = vset.pattern.permute.xlu0 0
        %882 = vperm.xlu0 %881, %v736
        %v883 = vpop.permute.xlu0 %882
        %886 = vset.pattern.permute.xlu0 0
        %887 = vperm.xlu0 %886, %v737
        %v888 = vpop.permute.xlu0 %887
        %891 = vset.pattern.permute.xlu0 0
        %892 = vperm.xlu0 %891, %v738
        %v893 = vpop.permute.xlu0 %892
        %896 = vset.pattern.permute.xlu0 0
        %897 = vperm.xlu0 %896, %v739
        %v898 = vpop.permute.xlu0 %897
        %901 = vset.pattern.permute.xlu0 0
        %902 = vperm.xlu0 %901, %v740
        %v903 = vpop.permute.xlu0 %902
        %906 = vset.pattern.permute.xlu0 0
        %907 = vperm.xlu0 %906, %v741
        %v908 = vpop.permute.xlu0 %907
        %911 = vset.pattern.permute.xlu0 0
        %912 = vperm.xlu0 %911, %v742
        %v913 = vpop.permute.xlu0 %912
        %916 = vset.pattern.permute.xlu0 0
        %917 = vperm.xlu0 %916, %v743
        %v918 = vpop.permute.xlu0 %917
        %921 = vset.pattern.permute.xlu0 0
        %922 = vperm.xlu0 %921, %v744
        %v923 = vpop.permute.xlu0 %922
        %926 = vset.pattern.permute.xlu0 0
        %927 = vperm.xlu0 %926, %v745
        %v928 = vpop.permute.xlu0 %927
        %931 = vset.pattern.permute.xlu0 0
        %932 = vperm.xlu0 %931, %v746
        %v933 = vpop.permute.xlu0 %932
        %936 = vset.pattern.permute.xlu0 0
        %937 = vperm.xlu0 %936, %v747
        %v938 = vpop.permute.xlu0 %937
        %v940 = vsub.f32 %v603, %v823
        %v941 = vsub.f32 %v604, %v828
        %v942 = vsub.f32 %v605, %v833
        %v943 = vsub.f32 %v606, %v838
        %v944 = vsub.f32 %v607, %v843
        %v945 = vsub.f32 %v608, %v848
        %v946 = vsub.f32 %v609, %v853
        %v947 = vsub.f32 %v610, %v858
        %v948 = vsub.f32 %v611, %v863
        %v949 = vsub.f32 %v612, %v868
        %v950 = vsub.f32 %v613, %v873
        %v951 = vsub.f32 %v614, %v878
        %v952 = vsub.f32 %v615, %v883
        %v953 = vsub.f32 %v616, %v888
        %v954 = vsub.f32 %v617, %v893
        %v955 = vsub.f32 %v618, %v898
        %v956 = vsub.f32 %v619, %v903
        %v957 = vsub.f32 %v620, %v908
        %v958 = vsub.f32 %v621, %v913
        %v959 = vsub.f32 %v622, %v918
        %v960 = vsub.f32 %v623, %v923
        %v961 = vsub.f32 %v624, %v928
        %v962 = vsub.f32 %v625, %v933
        %v963 = vsub.f32 %v626, %v938
        %v964 = vmul.f32 %v940, 1.442695
        %v965 = vpow.pop %v964
        %v966 = vmul.f32 %v941, 1.442695
        %v967 = vpow.pop %v966
        %v968 = vmul.f32 %v942, 1.442695
        %v969 = vpow.pop %v968
        %v970 = vmul.f32 %v943, 1.442695
        %v971 = vpow.pop %v970
        %v972 = vmul.f32 %v944, 1.442695
        %v973 = vpow.pop %v972
        %v974 = vmul.f32 %v945, 1.442695
        %v975 = vpow.pop %v974
        %v976 = vmul.f32 %v946, 1.442695
        %v977 = vpow.pop %v976
        %v978 = vmul.f32 %v947, 1.442695
        %v979 = vpow.pop %v978
        %v980 = vmul.f32 %v948, 1.442695
        %v981 = vpow.pop %v980
        %v982 = vmul.f32 %v949, 1.442695
        %v983 = vpow.pop %v982
        %v984 = vmul.f32 %v950, 1.442695
        %v985 = vpow.pop %v984
        %v986 = vmul.f32 %v951, 1.442695
        %v987 = vpow.pop %v986
        %v988 = vmul.f32 %v952, 1.442695
        %v989 = vpow.pop %v988
        %v990 = vmul.f32 %v953, 1.442695
        %v991 = vpow.pop %v990
        %v992 = vmul.f32 %v954, 1.442695
        %v993 = vpow.pop %v992
        %v994 = vmul.f32 %v955, 1.442695
        %v995 = vpow.pop %v994
        %v996 = vmul.f32 %v956, 1.442695
        %v997 = vpow.pop %v996
        %v998 = vmul.f32 %v957, 1.442695
        %v999 = vpow.pop %v998
        %v1000 = vmul.f32 %v958, 1.442695
        %v1001 = vpow.pop %v1000
        %v1002 = vmul.f32 %v959, 1.442695
        %v1003 = vpow.pop %v1002
        %v1004 = vmul.f32 %v960, 1.442695
        %v1005 = vpow.pop %v1004
        %v1006 = vmul.f32 %v961, 1.442695
        %v1007 = vpow.pop %v1006
        %v1008 = vmul.f32 %v962, 1.442695
        %v1009 = vpow.pop %v1008
        %v1010 = vmul.f32 %v963, 1.442695
        %v1011 = vpow.pop %v1010
        %v1012 = vld [vmem:[#allocation3] sm:$0xff]
        %v1013 = vld [vmem:[#allocation3 + $0x8] sm:$0xff]
        %v1014 = vld [vmem:[#allocation3 + $0x10] sm:$0xff]
        %v1015 = vld [vmem:[#allocation3 + $0x18] sm:$0xff]
        %v1016 = vld [vmem:[#allocation3 + $0x20] sm:$0xff]
        %v1017 = vld [vmem:[#allocation3 + $0x28] sm:$0xff]
        %v1018 = vld [vmem:[#allocation3 + $0x30] sm:$0xff]
        %v1019 = vld [vmem:[#allocation3 + $0x38] sm:$0xff]
        %v1020 = vld [vmem:[#allocation3 + $0x40] sm:$0xff]
        %v1021 = vld [vmem:[#allocation3 + $0x48] sm:$0xff]
        %v1022 = vld [vmem:[#allocation3 + $0x50] sm:$0xff]
        %v1023 = vld [vmem:[#allocation3 + $0x58] sm:$0xff]
        %v1024 = vld [vmem:[#allocation3 + $0x60] sm:$0xff]
        %v1025 = vld [vmem:[#allocation3 + $0x68] sm:$0xff]
        %v1026 = vld [vmem:[#allocation3 + $0x70] sm:$0xff]
        %v1027 = vld [vmem:[#allocation3 + $0x78] sm:$0xff]
        %v1028 = vld [vmem:[#allocation3 + $0x80] sm:$0xff]
        %v1029 = vld [vmem:[#allocation3 + $0x88] sm:$0xff]
        %v1030 = vld [vmem:[#allocation3 + $0x90] sm:$0xff]
        %v1031 = vld [vmem:[#allocation3 + $0x98] sm:$0xff]
        %v1032 = vld [vmem:[#allocation3 + $0xa0] sm:$0xff]
        %v1033 = vld [vmem:[#allocation3 + $0xa8] sm:$0xff]
        %v1034 = vld [vmem:[#allocation3 + $0xb0] sm:$0xff]
        %v1035 = vld [vmem:[#allocation3 + $0xb8] sm:$0xff]
        %v1036 = vmul.f32 %v773, %v1012
        %v1037 = vmul.f32 %v775, %v1013
        %v1038 = vmul.f32 %v777, %v1014
        %v1039 = vmul.f32 %v779, %v1015
        %v1040 = vmul.f32 %v781, %v1016
        %v1041 = vmul.f32 %v783, %v1017
        %v1042 = vmul.f32 %v785, %v1018
        %v1043 = vmul.f32 %v787, %v1019
        %v1044 = vmul.f32 %v789, %v1020
        %v1045 = vmul.f32 %v791, %v1021
        %v1046 = vmul.f32 %v793, %v1022
        %v1047 = vmul.f32 %v795, %v1023
        %v1048 = vmul.f32 %v797, %v1024
        %v1049 = vmul.f32 %v799, %v1025
        %v1050 = vmul.f32 %v801, %v1026
        %v1051 = vmul.f32 %v803, %v1027
        %v1052 = vmul.f32 %v805, %v1028
        %v1053 = vmul.f32 %v807, %v1029
        %v1054 = vmul.f32 %v809, %v1030
        %v1055 = vmul.f32 %v811, %v1031
        %v1056 = vmul.f32 %v813, %v1032
        %v1057 = vmul.f32 %v815, %v1033
        %v1058 = vmul.f32 %v817, %v1034
        %v1059 = vmul.f32 %v819, %v1035
        %v1060 = vsel %vm651, %v965, 0.0
        %1061 = vadd.xlane.f32.xlu0 %v1060
        %v1062 = vpop.xlane.xlu0 %1061
        %v1063 = vsel %vm651, %v967, 0.0
        %1064 = vadd.xlane.f32.xlu0 %v1063
        %v1065 = vpop.xlane.xlu0 %1064
        %v1066 = vsel %vm651, %v969, 0.0
        %1067 = vadd.xlane.f32.xlu0 %v1066
        %v1068 = vpop.xlane.xlu0 %1067
        %v1069 = vsel %vm651, %v971, 0.0
        %1070 = vadd.xlane.f32.xlu0 %v1069
        %v1071 = vpop.xlane.xlu0 %1070
        %v1072 = vsel %vm651, %v973, 0.0
        %1073 = vadd.xlane.f32.xlu0 %v1072
        %v1074 = vpop.xlane.xlu0 %1073
        %v1075 = vsel %vm651, %v975, 0.0
        %1076 = vadd.xlane.f32.xlu0 %v1075
        %v1077 = vpop.xlane.xlu0 %1076
        %v1078 = vsel %vm651, %v977, 0.0
        %1079 = vadd.xlane.f32.xlu0 %v1078
        %v1080 = vpop.xlane.xlu0 %1079
        %v1081 = vsel %vm651, %v979, 0.0
        %1082 = vadd.xlane.f32.xlu0 %v1081
        %v1083 = vpop.xlane.xlu0 %1082
        %v1084 = vsel %vm651, %v981, 0.0
        %1085 = vadd.xlane.f32.xlu0 %v1084
        %v1086 = vpop.xlane.xlu0 %1085
        %v1087 = vsel %vm651, %v983, 0.0
        %1088 = vadd.xlane.f32.xlu0 %v1087
        %v1089 = vpop.xlane.xlu0 %1088
        %v1090 = vsel %vm651, %v985, 0.0
        %1091 = vadd.xlane.f32.xlu0 %v1090
        %v1092 = vpop.xlane.xlu0 %1091
        %v1093 = vsel %vm651, %v987, 0.0
        %1094 = vadd.xlane.f32.xlu0 %v1093
        %v1095 = vpop.xlane.xlu0 %1094
        %v1096 = vsel %vm651, %v989, 0.0
        %1097 = vadd.xlane.f32.xlu0 %v1096
        %v1098 = vpop.xlane.xlu0 %1097
        %v1099 = vsel %vm651, %v991, 0.0
        %1100 = vadd.xlane.f32.xlu0 %v1099
        %v1101 = vpop.xlane.xlu0 %1100
        %v1102 = vsel %vm651, %v993, 0.0
        %1103 = vadd.xlane.f32.xlu0 %v1102
        %v1104 = vpop.xlane.xlu0 %1103
        %v1105 = vsel %vm651, %v995, 0.0
        %1106 = vadd.xlane.f32.xlu0 %v1105
        %v1107 = vpop.xlane.xlu0 %1106
        %v1108 = vsel %vm651, %v997, 0.0
        %1109 = vadd.xlane.f32.xlu0 %v1108
        %v1110 = vpop.xlane.xlu0 %1109
        %v1111 = vsel %vm651, %v999, 0.0
        %1112 = vadd.xlane.f32.xlu0 %v1111
        %v1113 = vpop.xlane.xlu0 %1112
        %v1114 = vsel %vm651, %v1001, 0.0
        %1115 = vadd.xlane.f32.xlu0 %v1114
        %v1116 = vpop.xlane.xlu0 %1115
        %v1117 = vsel %vm651, %v1003, 0.0
        %1118 = vadd.xlane.f32.xlu0 %v1117
        %v1119 = vpop.xlane.xlu0 %1118
        %v1120 = vsel %vm651, %v1005, 0.0
        %1121 = vadd.xlane.f32.xlu0 %v1120
        %v1122 = vpop.xlane.xlu0 %1121
        %v1123 = vsel %vm651, %v1007, 0.0
        %1124 = vadd.xlane.f32.xlu0 %v1123
        %v1125 = vpop.xlane.xlu0 %1124
        %v1126 = vsel %vm651, %v1009, 0.0
        %1127 = vadd.xlane.f32.xlu0 %v1126
        %v1128 = vpop.xlane.xlu0 %1127
        %v1129 = vsel %vm651, %v1011, 0.0
        %1130 = vadd.xlane.f32.xlu0 %v1129
        %v1131 = vpop.xlane.xlu0 %1130
        %v1132 = vadd.f32 %v1036, %v1062
        %v1133 = vadd.f32 %v1037, %v1065
        %v1134 = vadd.f32 %v1038, %v1068
        %v1135 = vadd.f32 %v1039, %v1071
        %v1136 = vadd.f32 %v1040, %v1074
        %v1137 = vadd.f32 %v1041, %v1077
        %v1138 = vadd.f32 %v1042, %v1080
        %v1139 = vadd.f32 %v1043, %v1083
        %v1140 = vadd.f32 %v1044, %v1086
        %v1141 = vadd.f32 %v1045, %v1089
        %v1142 = vadd.f32 %v1046, %v1092
        %v1143 = vadd.f32 %v1047, %v1095
        %v1144 = vadd.f32 %v1048, %v1098
        %v1145 = vadd.f32 %v1049, %v1101
        %v1146 = vadd.f32 %v1050, %v1104
        %v1147 = vadd.f32 %v1051, %v1107
        %v1148 = vadd.f32 %v1052, %v1110
        %v1149 = vadd.f32 %v1053, %v1113
        %v1150 = vadd.f32 %v1054, %v1116
        %v1151 = vadd.f32 %v1055, %v1119
        %v1152 = vadd.f32 %v1056, %v1122
        %v1153 = vadd.f32 %v1057, %v1125
        %v1154 = vadd.f32 %v1058, %v1128
        %v1155 = vadd.f32 %v1059, %v1131
        %vm1156 = vcmask 7168
        %1157 = vst.msk [vmem:[#allocation3] sm:$0xff] %vm1156, %v1132
        %1158 = vst.msk [vmem:[#allocation3 + $0x8] sm:$0xff] %vm1156, %v1133
        %1159 = vst.msk [vmem:[#allocation3 + $0x10] sm:$0xff] %vm1156, %v1134
        %1160 = vst.msk [vmem:[#allocation3 + $0x18] sm:$0xff] %vm1156, %v1135
        %1161 = vst.msk [vmem:[#allocation3 + $0x20] sm:$0xff] %vm1156, %v1136
        %1162 = vst.msk [vmem:[#allocation3 + $0x28] sm:$0xff] %vm1156, %v1137
        %1163 = vst.msk [vmem:[#allocation3 + $0x30] sm:$0xff] %vm1156, %v1138
        %1164 = vst.msk [vmem:[#allocation3 + $0x38] sm:$0xff] %vm1156, %v1139
        %1165 = vst.msk [vmem:[#allocation3 + $0x40] sm:$0xff] %vm1156, %v1140
        %1166 = vst.msk [vmem:[#allocation3 + $0x48] sm:$0xff] %vm1156, %v1141
        %1167 = vst.msk [vmem:[#allocation3 + $0x50] sm:$0xff] %vm1156, %v1142
        %1168 = vst.msk [vmem:[#allocation3 + $0x58] sm:$0xff] %vm1156, %v1143
        %1169 = vst.msk [vmem:[#allocation3 + $0x60] sm:$0xff] %vm1156, %v1144
        %1170 = vst.msk [vmem:[#allocation3 + $0x68] sm:$0xff] %vm1156, %v1145
        %1171 = vst.msk [vmem:[#allocation3 + $0x70] sm:$0xff] %vm1156, %v1146
        %1172 = vst.msk [vmem:[#allocation3 + $0x78] sm:$0xff] %vm1156, %v1147
        %1173 = vst.msk [vmem:[#allocation3 + $0x80] sm:$0xff] %vm1156, %v1148
        %1174 = vst.msk [vmem:[#allocation3 + $0x88] sm:$0xff] %vm1156, %v1149
        %1175 = vst.msk [vmem:[#allocation3 + $0x90] sm:$0xff] %vm1156, %v1150
        %1176 = vst.msk [vmem:[#allocation3 + $0x98] sm:$0xff] %vm1156, %v1151
        %1177 = vst.msk [vmem:[#allocation3 + $0xa0] sm:$0xff] %vm1156, %v1152
        %1178 = vst.msk [vmem:[#allocation3 + $0xa8] sm:$0xff] %vm1156, %v1153
        %1179 = vst.msk [vmem:[#allocation3 + $0xb0] sm:$0xff] %vm1156, %v1154
        %1180 = vst.msk [vmem:[#allocation3 + $0xb8] sm:$0xff] %vm1156, %v1155
        %v1181 = vld [vmem:[#allocation4] sm:$0xff]
        %v1182 = vld [vmem:[#allocation4 + $0x8] sm:$0xff]
        %v1183 = vld [vmem:[#allocation4 + $0x10] sm:$0xff]
        %v1184 = vld [vmem:[#allocation4 + $0x18] sm:$0xff]
        %v1185 = vld [vmem:[#allocation4 + $0x20] sm:$0xff]
        %v1186 = vld [vmem:[#allocation4 + $0x28] sm:$0xff]
        %v1187 = vld [vmem:[#allocation4 + $0x30] sm:$0xff]
        %v1188 = vld [vmem:[#allocation4 + $0x38] sm:$0xff]
        %v1189 = vld [vmem:[#allocation4 + $0x40] sm:$0xff]
        %v1190 = vld [vmem:[#allocation4 + $0x48] sm:$0xff]
        %v1191 = vld [vmem:[#allocation4 + $0x50] sm:$0xff]
        %v1192 = vld [vmem:[#allocation4 + $0x58] sm:$0xff]
        %v1193 = vld [vmem:[#allocation4 + $0x60] sm:$0xff]
        %v1194 = vld [vmem:[#allocation4 + $0x68] sm:$0xff]
        %v1195 = vld [vmem:[#allocation4 + $0x70] sm:$0xff]
        %v1196 = vld [vmem:[#allocation4 + $0x78] sm:$0xff]
        %v1197 = vld [vmem:[#allocation4 + $0x80] sm:$0xff]
        %v1198 = vld [vmem:[#allocation4 + $0x88] sm:$0xff]
        %v1199 = vld [vmem:[#allocation4 + $0x90] sm:$0xff]
        %v1200 = vld [vmem:[#allocation4 + $0x98] sm:$0xff]
        %v1201 = vld [vmem:[#allocation4 + $0xa0] sm:$0xff]
        %v1202 = vld [vmem:[#allocation4 + $0xa8] sm:$0xff]
        %v1203 = vld [vmem:[#allocation4 + $0xb0] sm:$0xff]
        %v1204 = vld [vmem:[#allocation4 + $0xb8] sm:$0xff]
        %v1205 = vld [vmem:[#allocation4 + $0xc0] sm:$0xff]
        %v1206 = vld [vmem:[#allocation4 + $0xc8] sm:$0xff]
        %v1207 = vld [vmem:[#allocation4 + $0xd0] sm:$0xff]
        %v1208 = vld [vmem:[#allocation4 + $0xd8] sm:$0xff]
        %v1209 = vld [vmem:[#allocation4 + $0xe0] sm:$0xff]
        %v1210 = vld [vmem:[#allocation4 + $0xe8] sm:$0xff]
        %v1211 = vld [vmem:[#allocation4 + $0xf0] sm:$0xff]
        %v1212 = vld [vmem:[#allocation4 + $0xf8] sm:$0xff]
        %v1213 = vld [vmem:[#allocation4 + $0x100] sm:$0xff]
        %v1214 = vld [vmem:[#allocation4 + $0x108] sm:$0xff]
        %v1215 = vld [vmem:[#allocation4 + $0x110] sm:$0xff]
        %v1216 = vld [vmem:[#allocation4 + $0x118] sm:$0xff]
        %v1217 = vld [vmem:[#allocation4 + $0x120] sm:$0xff]
        %v1218 = vld [vmem:[#allocation4 + $0x128] sm:$0xff]
        %v1219 = vld [vmem:[#allocation4 + $0x130] sm:$0xff]
        %v1220 = vld [vmem:[#allocation4 + $0x138] sm:$0xff]
        %v1221 = vld [vmem:[#allocation4 + $0x140] sm:$0xff]
        %v1222 = vld [vmem:[#allocation4 + $0x148] sm:$0xff]
        %v1223 = vld [vmem:[#allocation4 + $0x150] sm:$0xff]
        %v1224 = vld [vmem:[#allocation4 + $0x158] sm:$0xff]
        %v1225 = vld [vmem:[#allocation4 + $0x160] sm:$0xff]
        %v1226 = vld [vmem:[#allocation4 + $0x168] sm:$0xff]
        %v1227 = vld [vmem:[#allocation4 + $0x170] sm:$0xff]
        %v1228 = vld [vmem:[#allocation4 + $0x178] sm:$0xff]
        %1230 = vset.pattern.permute.xlu0 0
        %1231 = vperm.xlu0 %1230, %v773
        %v1232 = vpop.permute.xlu0 %1231
        %1235 = vset.pattern.permute.xlu0 0
        %1236 = vperm.xlu0 %1235, %v775
        %v1237 = vpop.permute.xlu0 %1236
        %1240 = vset.pattern.permute.xlu0 0
        %1241 = vperm.xlu0 %1240, %v777
        %v1242 = vpop.permute.xlu0 %1241
        %1245 = vset.pattern.permute.xlu0 0
        %1246 = vperm.xlu0 %1245, %v779
        %v1247 = vpop.permute.xlu0 %1246
        %1250 = vset.pattern.permute.xlu0 0
        %1251 = vperm.xlu0 %1250, %v781
        %v1252 = vpop.permute.xlu0 %1251
        %1255 = vset.pattern.permute.xlu0 0
        %1256 = vperm.xlu0 %1255, %v783
        %v1257 = vpop.permute.xlu0 %1256
        %1260 = vset.pattern.permute.xlu0 0
        %1261 = vperm.xlu0 %1260, %v785
        %v1262 = vpop.permute.xlu0 %1261
        %1265 = vset.pattern.permute.xlu0 0
        %1266 = vperm.xlu0 %1265, %v787
        %v1267 = vpop.permute.xlu0 %1266
        %1270 = vset.pattern.permute.xlu0 0
        %1271 = vperm.xlu0 %1270, %v789
        %v1272 = vpop.permute.xlu0 %1271
        %1275 = vset.pattern.permute.xlu0 0
        %1276 = vperm.xlu0 %1275, %v791
        %v1277 = vpop.permute.xlu0 %1276
        %1280 = vset.pattern.permute.xlu0 0
        %1281 = vperm.xlu0 %1280, %v793
        %v1282 = vpop.permute.xlu0 %1281
        %1285 = vset.pattern.permute.xlu0 0
        %1286 = vperm.xlu0 %1285, %v795
        %v1287 = vpop.permute.xlu0 %1286
        %1290 = vset.pattern.permute.xlu0 0
        %1291 = vperm.xlu0 %1290, %v797
        %v1292 = vpop.permute.xlu0 %1291
        %1295 = vset.pattern.permute.xlu0 0
        %1296 = vperm.xlu0 %1295, %v799
        %v1297 = vpop.permute.xlu0 %1296
        %1300 = vset.pattern.permute.xlu0 0
        %1301 = vperm.xlu0 %1300, %v801
        %v1302 = vpop.permute.xlu0 %1301
        %1305 = vset.pattern.permute.xlu0 0
        %1306 = vperm.xlu0 %1305, %v803
        %v1307 = vpop.permute.xlu0 %1306
        %1310 = vset.pattern.permute.xlu0 0
        %1311 = vperm.xlu0 %1310, %v805
        %v1312 = vpop.permute.xlu0 %1311
        %1315 = vset.pattern.permute.xlu0 0
        %1316 = vperm.xlu0 %1315, %v807
        %v1317 = vpop.permute.xlu0 %1316
        %1320 = vset.pattern.permute.xlu0 0
        %1321 = vperm.xlu0 %1320, %v809
        %v1322 = vpop.permute.xlu0 %1321
        %1325 = vset.pattern.permute.xlu0 0
        %1326 = vperm.xlu0 %1325, %v811
        %v1327 = vpop.permute.xlu0 %1326
        %1330 = vset.pattern.permute.xlu0 0
        %1331 = vperm.xlu0 %1330, %v813
        %v1332 = vpop.permute.xlu0 %1331
        %1335 = vset.pattern.permute.xlu0 0
        %1336 = vperm.xlu0 %1335, %v815
        %v1337 = vpop.permute.xlu0 %1336
        %1340 = vset.pattern.permute.xlu0 0
        %1341 = vperm.xlu0 %1340, %v817
        %v1342 = vpop.permute.xlu0 %1341
        %1345 = vset.pattern.permute.xlu0 0
        %1346 = vperm.xlu0 %1345, %v819
        %v1347 = vpop.permute.xlu0 %1346
        %v1349 = vmul.f32 %v1232, %v1181
        %v1350 = vmul.f32 %v1232, %v1182
        %v1351 = vmul.f32 %v1237, %v1183
        %v1352 = vmul.f32 %v1237, %v1184
        %v1353 = vmul.f32 %v1242, %v1185
        %v1354 = vmul.f32 %v1242, %v1186
        %v1355 = vmul.f32 %v1247, %v1187
        %v1356 = vmul.f32 %v1247, %v1188
        %v1357 = vmul.f32 %v1252, %v1189
        %v1358 = vmul.f32 %v1252, %v1190
        %v1359 = vmul.f32 %v1257, %v1191
        %v1360 = vmul.f32 %v1257, %v1192
        %v1361 = vmul.f32 %v1262, %v1193
        %v1362 = vmul.f32 %v1262, %v1194
        %v1363 = vmul.f32 %v1267, %v1195
        %v1364 = vmul.f32 %v1267, %v1196
        %v1365 = vmul.f32 %v1272, %v1197
        %v1366 = vmul.f32 %v1272, %v1198
        %v1367 = vmul.f32 %v1277, %v1199
        %v1368 = vmul.f32 %v1277, %v1200
        %v1369 = vmul.f32 %v1282, %v1201
        %v1370 = vmul.f32 %v1282, %v1202
        %v1371 = vmul.f32 %v1287, %v1203
        %v1372 = vmul.f32 %v1287, %v1204
        %v1373 = vmul.f32 %v1292, %v1205
        %v1374 = vmul.f32 %v1292, %v1206
        %v1375 = vmul.f32 %v1297, %v1207
        %v1376 = vmul.f32 %v1297, %v1208
        %v1377 = vmul.f32 %v1302, %v1209
        %v1378 = vmul.f32 %v1302, %v1210
        %v1379 = vmul.f32 %v1307, %v1211
        %v1380 = vmul.f32 %v1307, %v1212
        %v1381 = vmul.f32 %v1312, %v1213
        %v1382 = vmul.f32 %v1312, %v1214
        %v1383 = vmul.f32 %v1317, %v1215
        %v1384 = vmul.f32 %v1317, %v1216
        %v1385 = vmul.f32 %v1322, %v1217
        %v1386 = vmul.f32 %v1322, %v1218
        %v1387 = vmul.f32 %v1327, %v1219
        %v1388 = vmul.f32 %v1327, %v1220
        %v1389 = vmul.f32 %v1332, %v1221
        %v1390 = vmul.f32 %v1332, %v1222
        %v1391 = vmul.f32 %v1337, %v1223
        %v1392 = vmul.f32 %v1337, %v1224
        %v1393 = vmul.f32 %v1342, %v1225
        %v1394 = vmul.f32 %v1342, %v1226
        %v1395 = vmul.f32 %v1347, %v1227
        %v1396 = vmul.f32 %v1347, %v1228
        %v1397 = vld [vmem:[%s279] sm:$0xff]
        %v1398 = vld [vmem:[%s279 + $0x8] sm:$0xff]
        %v1399 = vld [vmem:[%s279 + $0x10] sm:$0xff]
        %v1400 = vld [vmem:[%s279 + $0x18] sm:$0xff]
        %v1401 = vld [vmem:[%s279 + $0x20] sm:$0xff]
        %v1402 = vld [vmem:[%s279 + $0x28] sm:$0xff]
        %v1403 = vld [vmem:[%s279 + $0x30] sm:$0xff]
        %v1404 = vld [vmem:[%s279 + $0x38] sm:$0xff]
        %v1405 = vld [vmem:[%s279 + $0x40] sm:$0xff]
        %v1406 = vld [vmem:[%s279 + $0x48] sm:$0xff]
        %v1408 = vsel %vm651, %v965, 0
        %v1411 = vsel %vm651, %v967, 0
        %v1414 = vsel %vm651, %v969, 0
        %v1417 = vsel %vm651, %v971, 0
        %v1420 = vsel %vm651, %v973, 0
        %v1423 = vsel %vm651, %v975, 0
        %v1426 = vsel %vm651, %v977, 0
        %v1429 = vsel %vm651, %v979, 0
        %v1432 = vsel %vm651, %v981, 0
        %v1435 = vsel %vm651, %v983, 0
        %v1438 = vsel %vm651, %v985, 0
        %v1441 = vsel %vm651, %v987, 0
        %v1444 = vsel %vm651, %v989, 0
        %v1447 = vsel %vm651, %v991, 0
        %v1450 = vsel %vm651, %v993, 0
        %v1453 = vsel %vm651, %v995, 0
        %v1456 = vsel %vm651, %v997, 0
        %v1459 = vsel %vm651, %v999, 0
        %v1462 = vsel %vm651, %v1001, 0
        %v1465 = vsel %vm651, %v1003, 0
        %v1468 = vsel %vm651, %v1005, 0
        %v1471 = vsel %vm651, %v1007, 0
        %v1474 = vsel %vm651, %v1009, 0
        %v1477 = vsel %vm651, %v1011, 0
        %1479 = vmatprep.subr.mxu0 %v1398
        %1480 = vmatpush1.msra.mxu0 %v1397
        %1481 = vmatprep.subr.mxu0 %v1400
        %1482 = vmatpush1.msra.mxu0 %v1399
        %1483 = vmatprep.subr.mxu0 %v1402
        %1484 = vmatpush1.msra.mxu0 %v1401
        %1485 = vmatprep.subr.mxu0 %v1404
        %1486 = vmatpush1.msra.mxu0 %v1403
        %1487 = vmatprep.subr.mxu0 %v1406
        %1488 = vmatpush1.msra.mxu0 %v1405
        %1489 = vmatprep.subr.mxu0 0.0
        %1490 = vmatpush1.msra.mxu0 0.0
        %1491 = vmatprep.subr.mxu0 0.0
        %1492 = vmatpush1.msra.mxu0 0.0
        %1493 = vmatprep.subr.mxu0 0.0
        %1494 = vmatpush1.msra.mxu0 0.0
        %1495 = vmatprep.subr.mxu0 0.0
        %1496 = vmatpush1.msra.mxu0 0.0
        %1497 = vmatprep.subr.mxu0 0.0
        %1498 = vmatpush1.msra.mxu0 0.0
        %1499 = vmatprep.subr.mxu0 0.0
        %1500 = vmatpush1.msra.mxu0 0.0
        %1501 = vmatprep.subr.mxu0 0.0
        %1502 = vmatpush1.msra.mxu0 0.0
        %1503 = vmatprep.subr.mxu0 0.0
        %1504 = vmatpush1.msra.mxu0 0.0
        %1505 = vmatprep.subr.mxu0 0.0
        %1506 = vmatpush1.msra.mxu0 0.0
        %1507 = vmatprep.subr.mxu0 0.0
        %1508 = vmatpush1.msra.mxu0 0.0
        %1509 = vmatprep.subr.mxu0 0.0
        %1510 = vmatpush1.msra.mxu0 0.0
        %1511 = vmatprep.subr.mxu0 0.0
        %1512 = vmatpush1.msra.mxu0 0.0
        %1513 = vmatprep.subr.mxu0 0.0
        %1514 = vmatpush1.msra.mxu0 0.0
        %1515 = vmatprep.subr.mxu0 0.0
        %1516 = vmatpush1.msra.mxu0 0.0
        %1517 = vmatprep.subr.mxu0 0.0
        %1518 = vmatpush1.msra.mxu0 0.0
        %1519 = vmatprep.subr.mxu0 0.0
        %1520 = vmatpush1.msra.mxu0 0.0
        %1521 = vmatprep.subr.mxu0 0.0
        %1522 = vmatpush1.msra.mxu0 0.0
        %1523 = vmatprep.subr.mxu0 0.0
        %1524 = vmatpush1.msra.mxu0 0.0
        %1525 = vmatprep.subr.mxu0 0.0
        %1526 = vmatpush1.msra.mxu0 0.0
        %1527 = vmatprep.subr.mxu0 0.0
        %1528 = vmatpush1.msra.mxu0 0.0
        %1529 = vmatprep.subr.mxu0 0.0
        %1530 = vmatpush1.msra.mxu0 0.0
        %1531 = vmatprep.subr.mxu0 0.0
        %1532 = vmatpush1.msra.mxu0 0.0
        %1533 = vmatprep.subr.mxu0 0.0
        %1534 = vmatpush1.msra.mxu0 0.0
        %1535 = vmatprep.subr.mxu0 0.0
        %1536 = vmatpush1.msra.mxu0 0.0
        %1537 = vmatprep.subr.mxu0 0.0
        %1538 = vmatpush1.msra.mxu0 0.0
        %1539 = vmatprep.subr.mxu0 0.0
        %1540 = vmatpush1.msra.mxu0 0.0
        %1541 = vmatprep.subr.mxu0 0.0
        %1542 = vmatpush1.msra.mxu0 0.0
        %1543 = vmatprep.mubr.f32.mxu0 0.0
        %1544 = vmatmul.mubr.f32.gmra.mrb[0].mxu0 %v1408
        %v1545 = vpop.f32.mrb[0].mxu0
        %v1546 = vadd.f32 0.0, %v1545
        %v1547 = vpop.f32.mrb[0].mxu0
        %v1548 = vadd.f32 0.0, %v1547
        %1549 = vmatprep.mubr.f32.mxu0 0.0
        %1550 = vmatmul.mubr.f32.gmra.mrb[0].mxu0 %v1411
        %v1551 = vpop.f32.mrb[0].mxu0
        %v1552 = vadd.f32 0.0, %v1551
        %v1553 = vpop.f32.mrb[0].mxu0
        %v1554 = vadd.f32 0.0, %v1553
        %1555 = vmatprep.mubr.f32.mxu0 0.0
        %1556 = vmatmul.mubr.f32.gmra.mrb[0].mxu0 %v1414
        %v1557 = vpop.f32.mrb[0].mxu0
        %v1558 = vadd.f32 0.0, %v1557
        %v1559 = vpop.f32.mrb[0].mxu0
        %v1560 = vadd.f32 0.0, %v1559
        %1561 = vmatprep.mubr.f32.mxu0 0.0
        %1562 = vmatmul.mubr.f32.gmra.mrb[0].mxu0 %v1417
        %v1563 = vpop.f32.mrb[0].mxu0
        %v1564 = vadd.f32 0.0, %v1563
        %v1565 = vpop.f32.mrb[0].mxu0
        %v1566 = vadd.f32 0.0, %v1565
        %1567 = vmatprep.mubr.f32.mxu0 0.0
        %1568 = vmatmul.mubr.f32.gmra.mrb[0].mxu0 %v1420
        %v1569 = vpop.f32.mrb[0].mxu0
        %v1570 = vadd.f32 0.0, %v1569
        %v1571 = vpop.f32.mrb[0].mxu0
        %v1572 = vadd.f32 0.0, %v1571
        %1573 = vmatprep.mubr.f32.mxu0 0.0
        %1574 = vmatmul.mubr.f32.gmra.mrb[0].mxu0 %v1423
        %v1575 = vpop.f32.mrb[0].mxu0
        %v1576 = vadd.f32 0.0, %v1575
        %v1577 = vpop.f32.mrb[0].mxu0
        %v1578 = vadd.f32 0.0, %v1577
        %1579 = vmatprep.mubr.f32.mxu0 0.0
        %1580 = vmatmul.mubr.f32.gmra.mrb[0].mxu0 %v1426
        %v1581 = vpop.f32.mrb[0].mxu0
        %v1582 = vadd.f32 0.0, %v1581
        %v1583 = vpop.f32.mrb[0].mxu0
        %v1584 = vadd.f32 0.0, %v1583
        %1585 = vmatprep.mubr.f32.mxu0 0.0
        %1586 = vmatmul.mubr.f32.gmra.mrb[0].mxu0 %v1429
        %v1587 = vpop.f32.mrb[0].mxu0
        %v1588 = vadd.f32 0.0, %v1587
        %v1589 = vpop.f32.mrb[0].mxu0
        %v1590 = vadd.f32 0.0, %v1589
        %1591 = vmatprep.mubr.f32.mxu0 0.0
        %1592 = vmatmul.mubr.f32.gmra.mrb[0].mxu0 %v1432
        %v1593 = vpop.f32.mrb[0].mxu0
        %v1594 = vadd.f32 0.0, %v1593
        %v1595 = vpop.f32.mrb[0].mxu0
        %v1596 = vadd.f32 0.0, %v1595
        %1597 = vmatprep.mubr.f32.mxu0 0.0
        %1598 = vmatmul.mubr.f32.gmra.mrb[0].mxu0 %v1435
        %v1599 = vpop.f32.mrb[0].mxu0
        %v1600 = vadd.f32 0.0, %v1599
        %v1601 = vpop.f32.mrb[0].mxu0
        %v1602 = vadd.f32 0.0, %v1601
        %1603 = vmatprep.mubr.f32.mxu0 0.0
        %1604 = vmatmul.mubr.f32.gmra.mrb[0].mxu0 %v1438
        %v1605 = vpop.f32.mrb[0].mxu0
        %v1606 = vadd.f32 0.0, %v1605
        %v1607 = vpop.f32.mrb[0].mxu0
        %v1608 = vadd.f32 0.0, %v1607
        %1609 = vmatprep.mubr.f32.mxu0 0.0
        %1610 = vmatmul.mubr.f32.gmra.mrb[0].mxu0 %v1441
        %v1611 = vpop.f32.mrb[0].mxu0
        %v1612 = vadd.f32 0.0, %v1611
        %v1613 = vpop.f32.mrb[0].mxu0
        %v1614 = vadd.f32 0.0, %v1613
        %1615 = vmatprep.mubr.f32.mxu0 0.0
        %1616 = vmatmul.mubr.f32.gmra.mrb[0].mxu0 %v1444
        %v1617 = vpop.f32.mrb[0].mxu0
        %v1618 = vadd.f32 0.0, %v1617
        %v1619 = vpop.f32.mrb[0].mxu0
        %v1620 = vadd.f32 0.0, %v1619
        %1621 = vmatprep.mubr.f32.mxu0 0.0
        %1622 = vmatmul.mubr.f32.gmra.mrb[0].mxu0 %v1447
        %v1623 = vpop.f32.mrb[0].mxu0
        %v1624 = vadd.f32 0.0, %v1623
        %v1625 = vpop.f32.mrb[0].mxu0
        %v1626 = vadd.f32 0.0, %v1625
        %1627 = vmatprep.mubr.f32.mxu0 0.0
        %1628 = vmatmul.mubr.f32.gmra.mrb[0].mxu0 %v1450
        %v1629 = vpop.f32.mrb[0].mxu0
        %v1630 = vadd.f32 0.0, %v1629
        %v1631 = vpop.f32.mrb[0].mxu0
        %v1632 = vadd.f32 0.0, %v1631
        %1633 = vmatprep.mubr.f32.mxu0 0.0
        %1634 = vmatmul.mubr.f32.gmra.mrb[0].mxu0 %v1453
        %v1635 = vpop.f32.mrb[0].mxu0
        %v1636 = vadd.f32 0.0, %v1635
        %v1637 = vpop.f32.mrb[0].mxu0
        %v1638 = vadd.f32 0.0, %v1637
        %1639 = vmatprep.mubr.f32.mxu0 0.0
        %1640 = vmatmul.mubr.f32.gmra.mrb[0].mxu0 %v1456
        %v1641 = vpop.f32.mrb[0].mxu0
        %v1642 = vadd.f32 0.0, %v1641
        %v1643 = vpop.f32.mrb[0].mxu0
        %v1644 = vadd.f32 0.0, %v1643
        %1645 = vmatprep.mubr.f32.mxu0 0.0
        %1646 = vmatmul.mubr.f32.gmra.mrb[0].mxu0 %v1459
        %v1647 = vpop.f32.mrb[0].mxu0
        %v1648 = vadd.f32 0.0, %v1647
        %v1649 = vpop.f32.mrb[0].mxu0
        %v1650 = vadd.f32 0.0, %v1649
        %1651 = vmatprep.mubr.f32.mxu0 0.0
        %1652 = vmatmul.mubr.f32.gmra.mrb[0].mxu0 %v1462
        %v1653 = vpop.f32.mrb[0].mxu0
        %v1654 = vadd.f32 0.0, %v1653
        %v1655 = vpop.f32.mrb[0].mxu0
        %v1656 = vadd.f32 0.0, %v1655
        %1657 = vmatprep.mubr.f32.mxu0 0.0
        %1658 = vmatmul.mubr.f32.gmra.mrb[0].mxu0 %v1465
        %v1659 = vpop.f32.mrb[0].mxu0
        %v1660 = vadd.f32 0.0, %v1659
        %v1661 = vpop.f32.mrb[0].mxu0
        %v1662 = vadd.f32 0.0, %v1661
        %1663 = vmatprep.mubr.f32.mxu0 0.0
        %1664 = vmatmul.mubr.f32.gmra.mrb[0].mxu0 %v1468
        %v1665 = vpop.f32.mrb[0].mxu0
        %v1666 = vadd.f32 0.0, %v1665
        %v1667 = vpop.f32.mrb[0].mxu0
        %v1668 = vadd.f32 0.0, %v1667
        %1669 = vmatprep.mubr.f32.mxu0 0.0
        %1670 = vmatmul.mubr.f32.gmra.mrb[0].mxu0 %v1471
        %v1671 = vpop.f32.mrb[0].mxu0
        %v1672 = vadd.f32 0.0, %v1671
        %v1673 = vpop.f32.mrb[0].mxu0
        %v1674 = vadd.f32 0.0, %v1673
        %1675 = vmatprep.mubr.f32.mxu0 0.0
        %1676 = vmatmul.mubr.f32.gmra.mrb[0].mxu0 %v1474
        %v1677 = vpop.f32.mrb[0].mxu0
        %v1678 = vadd.f32 0.0, %v1677
        %v1679 = vpop.f32.mrb[0].mxu0
        %v1680 = vadd.f32 0.0, %v1679
        %1681 = vmatprep.mubr.f32.mxu0 0.0
        %1682 = vmatmul.mubr.f32.gmra.mrb[0].mxu0 %v1477
        %v1683 = vpop.f32.mrb[0].mxu0
        %v1684 = vadd.f32 0.0, %v1683
        %v1685 = vpop.f32.mrb[0].mxu0
        %v1686 = vadd.f32 0.0, %v1685
        %1687 = vdwg.mxu0
        %v1688 = vadd.f32 %v1349, %v1546
        %v1689 = vadd.f32 %v1350, %v1548
        %v1690 = vadd.f32 %v1351, %v1552
        %v1691 = vadd.f32 %v1352, %v1554
        %v1692 = vadd.f32 %v1353, %v1558
        %v1693 = vadd.f32 %v1354, %v1560
        %v1694 = vadd.f32 %v1355, %v1564
        %v1695 = vadd.f32 %v1356, %v1566
        %v1696 = vadd.f32 %v1357, %v1570
        %v1697 = vadd.f32 %v1358, %v1572
        %v1698 = vadd.f32 %v1359, %v1576
        %v1699 = vadd.f32 %v1360, %v1578
        %v1700 = vadd.f32 %v1361, %v1582
        %v1701 = vadd.f32 %v1362, %v1584
        %v1702 = vadd.f32 %v1363, %v1588
        %v1703 = vadd.f32 %v1364, %v1590
        %v1704 = vadd.f32 %v1365, %v1594
        %v1705 = vadd.f32 %v1366, %v1596
        %v1706 = vadd.f32 %v1367, %v1600
        %v1707 = vadd.f32 %v1368, %v1602
        %v1708 = vadd.f32 %v1369, %v1606
        %v1709 = vadd.f32 %v1370, %v1608
        %v1710 = vadd.f32 %v1371, %v1612
        %v1711 = vadd.f32 %v1372, %v1614
        %v1712 = vadd.f32 %v1373, %v1618
        %v1713 = vadd.f32 %v1374, %v1620
        %v1714 = vadd.f32 %v1375, %v1624
        %v1715 = vadd.f32 %v1376, %v1626
        %v1716 = vadd.f32 %v1377, %v1630
        %v1717 = vadd.f32 %v1378, %v1632
        %v1718 = vadd.f32 %v1379, %v1636
        %v1719 = vadd.f32 %v1380, %v1638
        %v1720 = vadd.f32 %v1381, %v1642
        %v1721 = vadd.f32 %v1382, %v1644
        %v1722 = vadd.f32 %v1383, %v1648
        %v1723 = vadd.f32 %v1384, %v1650
        %v1724 = vadd.f32 %v1385, %v1654
        %v1725 = vadd.f32 %v1386, %v1656
        %v1726 = vadd.f32 %v1387, %v1660
        %v1727 = vadd.f32 %v1388, %v1662
        %v1728 = vadd.f32 %v1389, %v1666
        %v1729 = vadd.f32 %v1390, %v1668
        %v1730 = vadd.f32 %v1391, %v1672
        %v1731 = vadd.f32 %v1392, %v1674
        %v1732 = vadd.f32 %v1393, %v1678
        %v1733 = vadd.f32 %v1394, %v1680
        %v1734 = vadd.f32 %v1395, %v1684
        %v1735 = vadd.f32 %v1396, %v1686
        %1736 = vst [vmem:[#allocation4] sm:$0xff] %v1688
        %1737 = vst [vmem:[#allocation4 + $0x8] sm:$0xff] %v1689
        %1738 = vst [vmem:[#allocation4 + $0x10] sm:$0xff] %v1690
        %1739 = vst [vmem:[#allocation4 + $0x18] sm:$0xff] %v1691
        %1740 = vst [vmem:[#allocation4 + $0x20] sm:$0xff] %v1692
        %1741 = vst [vmem:[#allocation4 + $0x28] sm:$0xff] %v1693
        %1742 = vst [vmem:[#allocation4 + $0x30] sm:$0xff] %v1694
        %1743 = vst [vmem:[#allocation4 + $0x38] sm:$0xff] %v1695
        %1744 = vst [vmem:[#allocation4 + $0x40] sm:$0xff] %v1696
        %1745 = vst [vmem:[#allocation4 + $0x48] sm:$0xff] %v1697
        %1746 = vst [vmem:[#allocation4 + $0x50] sm:$0xff] %v1698
        %1747 = vst [vmem:[#allocation4 + $0x58] sm:$0xff] %v1699
        %1748 = vst [vmem:[#allocation4 + $0x60] sm:$0xff] %v1700
        %1749 = vst [vmem:[#allocation4 + $0x68] sm:$0xff] %v1701
        %1750 = vst [vmem:[#allocation4 + $0x70] sm:$0xff] %v1702
        %1751 = vst [vmem:[#allocation4 + $0x78] sm:$0xff] %v1703
        %1752 = vst [vmem:[#allocation4 + $0x80] sm:$0xff] %v1704
        %1753 = vst [vmem:[#allocation4 + $0x88] sm:$0xff] %v1705
        %1754 = vst [vmem:[#allocation4 + $0x90] sm:$0xff] %v1706
        %1755 = vst [vmem:[#allocation4 + $0x98] sm:$0xff] %v1707
        %1756 = vst [vmem:[#allocation4 + $0xa0] sm:$0xff] %v1708
        %1757 = vst [vmem:[#allocation4 + $0xa8] sm:$0xff] %v1709
        %1758 = vst [vmem:[#allocation4 + $0xb0] sm:$0xff] %v1710
        %1759 = vst [vmem:[#allocation4 + $0xb8] sm:$0xff] %v1711
        %1760 = vst [vmem:[#allocation4 + $0xc0] sm:$0xff] %v1712
        %1761 = vst [vmem:[#allocation4 + $0xc8] sm:$0xff] %v1713
        %1762 = vst [vmem:[#allocation4 + $0xd0] sm:$0xff] %v1714
        %1763 = vst [vmem:[#allocation4 + $0xd8] sm:$0xff] %v1715
        %1764 = vst [vmem:[#allocation4 + $0xe0] sm:$0xff] %v1716
        %1765 = vst [vmem:[#allocation4 + $0xe8] sm:$0xff] %v1717
        %1766 = vst [vmem:[#allocation4 + $0xf0] sm:$0xff] %v1718
        %1767 = vst [vmem:[#allocation4 + $0xf8] sm:$0xff] %v1719
        %1768 = vst [vmem:[#allocation4 + $0x100] sm:$0xff] %v1720
        %1769 = vst [vmem:[#allocation4 + $0x108] sm:$0xff] %v1721
        %1770 = vst [vmem:[#allocation4 + $0x110] sm:$0xff] %v1722
        %1771 = vst [vmem:[#allocation4 + $0x118] sm:$0xff] %v1723
        %1772 = vst [vmem:[#allocation4 + $0x120] sm:$0xff] %v1724
        %1773 = vst [vmem:[#allocation4 + $0x128] sm:$0xff] %v1725
        %1774 = vst [vmem:[#allocation4 + $0x130] sm:$0xff] %v1726
        %1775 = vst [vmem:[#allocation4 + $0x138] sm:$0xff] %v1727
        %1776 = vst [vmem:[#allocation4 + $0x140] sm:$0xff] %v1728
        %1777 = vst [vmem:[#allocation4 + $0x148] sm:$0xff] %v1729
        %1778 = vst [vmem:[#allocation4 + $0x150] sm:$0xff] %v1730
        %1779 = vst [vmem:[#allocation4 + $0x158] sm:$0xff] %v1731
        %1780 = vst [vmem:[#allocation4 + $0x160] sm:$0xff] %v1732
        %1781 = vst [vmem:[#allocation4 + $0x168] sm:$0xff] %v1733
        %1782 = vst [vmem:[#allocation4 + $0x170] sm:$0xff] %v1734
        %1783 = vst [vmem:[#allocation4 + $0x178] sm:$0xff] %v1735
        %1784 = vst.msk [vmem:[#allocation2] sm:$0xff] %vm1156, %v724
        %1785 = vst.msk [vmem:[#allocation2 + $0x8] sm:$0xff] %vm1156, %v725
        %1786 = vst.msk [vmem:[#allocation2 + $0x10] sm:$0xff] %vm1156, %v726
        %1787 = vst.msk [vmem:[#allocation2 + $0x18] sm:$0xff] %vm1156, %v727
        %1788 = vst.msk [vmem:[#allocation2 + $0x20] sm:$0xff] %vm1156, %v728
        %1789 = vst.msk [vmem:[#allocation2 + $0x28] sm:$0xff] %vm1156, %v729
        %1790 = vst.msk [vmem:[#allocation2 + $0x30] sm:$0xff] %vm1156, %v730
        %1791 = vst.msk [vmem:[#allocation2 + $0x38] sm:$0xff] %vm1156, %v731
        %1792 = vst.msk [vmem:[#allocation2 + $0x40] sm:$0xff] %vm1156, %v732
        %1793 = vst.msk [vmem:[#allocation2 + $0x48] sm:$0xff] %vm1156, %v733
        %1794 = vst.msk [vmem:[#allocation2 + $0x50] sm:$0xff] %vm1156, %v734
        %1795 = vst.msk [vmem:[#allocation2 + $0x58] sm:$0xff] %vm1156, %v735
        %1796 = vst.msk [vmem:[#allocation2 + $0x60] sm:$0xff] %vm1156, %v736
        %1797 = vst.msk [vmem:[#allocation2 + $0x68] sm:$0xff] %vm1156, %v737
        %1798 = vst.msk [vmem:[#allocation2 + $0x70] sm:$0xff] %vm1156, %v738
        %1799 = vst.msk [vmem:[#allocation2 + $0x78] sm:$0xff] %vm1156, %v739
        %1800 = vst.msk [vmem:[#allocation2 + $0x80] sm:$0xff] %vm1156, %v740
        %1801 = vst.msk [vmem:[#allocation2 + $0x88] sm:$0xff] %vm1156, %v741
        %1802 = vst.msk [vmem:[#allocation2 + $0x90] sm:$0xff] %vm1156, %v742
        %1803 = vst.msk [vmem:[#allocation2 + $0x98] sm:$0xff] %vm1156, %v743
        %1804 = vst.msk [vmem:[#allocation2 + $0xa0] sm:$0xff] %vm1156, %v744
        %1805 = vst.msk [vmem:[#allocation2 + $0xa8] sm:$0xff] %vm1156, %v745
        %1806 = vst.msk [vmem:[#allocation2 + $0xb0] sm:$0xff] %vm1156, %v746
        %1807 = vst.msk [vmem:[#allocation2 + $0xb8] sm:$0xff] %vm1156, %v747
        // Predicated region
        $region37: #{cross_attention.7} parent=31 // pred_check
          %p1808 = pneg %p282
        $region38: #{cross_attention.7} parent=31 // pred_check_branch
          %1810 = sbr.rel (%p1808) target = $region40
        $region39: #{cross_attention.7} parent=31 // pred_region
          %v1811 = vld [vmem:[#allocation3] sm:$0xff]
          %v1812 = vld [vmem:[#allocation3 + $0x8] sm:$0xff]
          %v1813 = vld [vmem:[#allocation3 + $0x10] sm:$0xff]
          %v1814 = vld [vmem:[#allocation3 + $0x18] sm:$0xff]
          %v1815 = vld [vmem:[#allocation3 + $0x20] sm:$0xff]
          %v1816 = vld [vmem:[#allocation3 + $0x28] sm:$0xff]
          %v1817 = vld [vmem:[#allocation3 + $0x30] sm:$0xff]
          %v1818 = vld [vmem:[#allocation3 + $0x38] sm:$0xff]
          %v1819 = vld [vmem:[#allocation3 + $0x40] sm:$0xff]
          %v1820 = vld [vmem:[#allocation3 + $0x48] sm:$0xff]
          %v1821 = vld [vmem:[#allocation3 + $0x50] sm:$0xff]
          %v1822 = vld [vmem:[#allocation3 + $0x58] sm:$0xff]
          %v1823 = vld [vmem:[#allocation3 + $0x60] sm:$0xff]
          %v1824 = vld [vmem:[#allocation3 + $0x68] sm:$0xff]
          %v1825 = vld [vmem:[#allocation3 + $0x70] sm:$0xff]
          %v1826 = vld [vmem:[#allocation3 + $0x78] sm:$0xff]
          %v1827 = vld [vmem:[#allocation3 + $0x80] sm:$0xff]
          %v1828 = vld [vmem:[#allocation3 + $0x88] sm:$0xff]
          %v1829 = vld [vmem:[#allocation3 + $0x90] sm:$0xff]
          %v1830 = vld [vmem:[#allocation3 + $0x98] sm:$0xff]
          %v1831 = vld [vmem:[#allocation3 + $0xa0] sm:$0xff]
          %v1832 = vld [vmem:[#allocation3 + $0xa8] sm:$0xff]
          %v1833 = vld [vmem:[#allocation3 + $0xb0] sm:$0xff]
          %v1834 = vld [vmem:[#allocation3 + $0xb8] sm:$0xff]
          %v1835 = vrcp.pop %v1811
          %v1836 = vrcp.pop %v1812
          %v1837 = vrcp.pop %v1813
          %v1838 = vrcp.pop %v1814
          %v1839 = vrcp.pop %v1815
          %v1840 = vrcp.pop %v1816
          %v1841 = vrcp.pop %v1817
          %v1842 = vrcp.pop %v1818
          %v1843 = vrcp.pop %v1819
          %v1844 = vrcp.pop %v1820
          %v1845 = vrcp.pop %v1821
          %v1846 = vrcp.pop %v1822
          %v1847 = vrcp.pop %v1823
          %v1848 = vrcp.pop %v1824
          %v1849 = vrcp.pop %v1825
          %v1850 = vrcp.pop %v1826
          %v1851 = vrcp.pop %v1827
          %v1852 = vrcp.pop %v1828
          %v1853 = vrcp.pop %v1829
          %v1854 = vrcp.pop %v1830
          %v1855 = vrcp.pop %v1831
          %v1856 = vrcp.pop %v1832
          %v1857 = vrcp.pop %v1833
          %v1858 = vrcp.pop %v1834
          %v1859 = vmul.f32 %v1811, %v1835
          %v1860 = vmul.f32 %v1812, %v1836
          %v1861 = vmul.f32 %v1813, %v1837
          %v1862 = vmul.f32 %v1814, %v1838
          %v1863 = vmul.f32 %v1815, %v1839
          %v1864 = vmul.f32 %v1816, %v1840
          %v1865 = vmul.f32 %v1817, %v1841
          %v1866 = vmul.f32 %v1818, %v1842
          %v1867 = vmul.f32 %v1819, %v1843
          %v1868 = vmul.f32 %v1820, %v1844
          %v1869 = vmul.f32 %v1821, %v1845
          %v1870 = vmul.f32 %v1822, %v1846
          %v1871 = vmul.f32 %v1823, %v1847
          %v1872 = vmul.f32 %v1824, %v1848
          %v1873 = vmul.f32 %v1825, %v1849
          %v1874 = vmul.f32 %v1826, %v1850
          %v1875 = vmul.f32 %v1827, %v1851
          %v1876 = vmul.f32 %v1828, %v1852
          %v1877 = vmul.f32 %v1829, %v1853
          %v1878 = vmul.f32 %v1830, %v1854
          %v1879 = vmul.f32 %v1831, %v1855
          %v1880 = vmul.f32 %v1832, %v1856
          %v1881 = vmul.f32 %v1833, %v1857
          %v1882 = vmul.f32 %v1834, %v1858
          %v1883 = vsub.f32 2.0, %v1859
          %v1884 = vsub.f32 2.0, %v1860
          %v1885 = vsub.f32 2.0, %v1861
          %v1886 = vsub.f32 2.0, %v1862
          %v1887 = vsub.f32 2.0, %v1863
          %v1888 = vsub.f32 2.0, %v1864
          %v1889 = vsub.f32 2.0, %v1865
          %v1890 = vsub.f32 2.0, %v1866
          %v1891 = vsub.f32 2.0, %v1867
          %v1892 = vsub.f32 2.0, %v1868
          %v1893 = vsub.f32 2.0, %v1869
          %v1894 = vsub.f32 2.0, %v1870
          %v1895 = vsub.f32 2.0, %v1871
          %v1896 = vsub.f32 2.0, %v1872
          %v1897 = vsub.f32 2.0, %v1873
          %v1898 = vsub.f32 2.0, %v1874
          %v1899 = vsub.f32 2.0, %v1875
          %v1900 = vsub.f32 2.0, %v1876
          %v1901 = vsub.f32 2.0, %v1877
          %v1902 = vsub.f32 2.0, %v1878
          %v1903 = vsub.f32 2.0, %v1879
          %v1904 = vsub.f32 2.0, %v1880
          %v1905 = vsub.f32 2.0, %v1881
          %v1906 = vsub.f32 2.0, %v1882
          %v1907 = vmul.f32 %v1835, %v1883
          %v1908 = vmul.f32 %v1836, %v1884
          %v1909 = vmul.f32 %v1837, %v1885
          %v1910 = vmul.f32 %v1838, %v1886
          %v1911 = vmul.f32 %v1839, %v1887
          %v1912 = vmul.f32 %v1840, %v1888
          %v1913 = vmul.f32 %v1841, %v1889
          %v1914 = vmul.f32 %v1842, %v1890
          %v1915 = vmul.f32 %v1843, %v1891
          %v1916 = vmul.f32 %v1844, %v1892
          %v1917 = vmul.f32 %v1845, %v1893
          %v1918 = vmul.f32 %v1846, %v1894
          %v1919 = vmul.f32 %v1847, %v1895
          %v1920 = vmul.f32 %v1848, %v1896
          %v1921 = vmul.f32 %v1849, %v1897
          %v1922 = vmul.f32 %v1850, %v1898
          %v1923 = vmul.f32 %v1851, %v1899
          %v1924 = vmul.f32 %v1852, %v1900
          %v1925 = vmul.f32 %v1853, %v1901
          %v1926 = vmul.f32 %v1854, %v1902
          %v1927 = vmul.f32 %v1855, %v1903
          %v1928 = vmul.f32 %v1856, %v1904
          %v1929 = vmul.f32 %v1857, %v1905
          %v1930 = vmul.f32 %v1858, %v1906
          %v1931 = vld [vmem:[#allocation4] sm:$0xff]
          %v1932 = vld [vmem:[#allocation4 + $0x8] sm:$0xff]
          %v1933 = vld [vmem:[#allocation4 + $0x10] sm:$0xff]
          %v1934 = vld [vmem:[#allocation4 + $0x18] sm:$0xff]
          %v1935 = vld [vmem:[#allocation4 + $0x20] sm:$0xff]
          %v1936 = vld [vmem:[#allocation4 + $0x28] sm:$0xff]
          %v1937 = vld [vmem:[#allocation4 + $0x30] sm:$0xff]
          %v1938 = vld [vmem:[#allocation4 + $0x38] sm:$0xff]
          %v1939 = vld [vmem:[#allocation4 + $0x40] sm:$0xff]
          %v1940 = vld [vmem:[#allocation4 + $0x48] sm:$0xff]
          %v1941 = vld [vmem:[#allocation4 + $0x50] sm:$0xff]
          %v1942 = vld [vmem:[#allocation4 + $0x58] sm:$0xff]
          %v1943 = vld [vmem:[#allocation4 + $0x60] sm:$0xff]
          %v1944 = vld [vmem:[#allocation4 + $0x68] sm:$0xff]
          %v1945 = vld [vmem:[#allocation4 + $0x70] sm:$0xff]
          %v1946 = vld [vmem:[#allocation4 + $0x78] sm:$0xff]
          %v1947 = vld [vmem:[#allocation4 + $0x80] sm:$0xff]
          %v1948 = vld [vmem:[#allocation4 + $0x88] sm:$0xff]
          %v1949 = vld [vmem:[#allocation4 + $0x90] sm:$0xff]
          %v1950 = vld [vmem:[#allocation4 + $0x98] sm:$0xff]
          %v1951 = vld [vmem:[#allocation4 + $0xa0] sm:$0xff]
          %v1952 = vld [vmem:[#allocation4 + $0xa8] sm:$0xff]
          %v1953 = vld [vmem:[#allocation4 + $0xb0] sm:$0xff]
          %v1954 = vld [vmem:[#allocation4 + $0xb8] sm:$0xff]
          %v1955 = vld [vmem:[#allocation4 + $0xc0] sm:$0xff]
          %v1956 = vld [vmem:[#allocation4 + $0xc8] sm:$0xff]
          %v1957 = vld [vmem:[#allocation4 + $0xd0] sm:$0xff]
          %v1958 = vld [vmem:[#allocation4 + $0xd8] sm:$0xff]
          %v1959 = vld [vmem:[#allocation4 + $0xe0] sm:$0xff]
          %v1960 = vld [vmem:[#allocation4 + $0xe8] sm:$0xff]
          %v1961 = vld [vmem:[#allocation4 + $0xf0] sm:$0xff]
          %v1962 = vld [vmem:[#allocation4 + $0xf8] sm:$0xff]
          %v1963 = vld [vmem:[#allocation4 + $0x100] sm:$0xff]
          %v1964 = vld [vmem:[#allocation4 + $0x108] sm:$0xff]
          %v1965 = vld [vmem:[#allocation4 + $0x110] sm:$0xff]
          %v1966 = vld [vmem:[#allocation4 + $0x118] sm:$0xff]
          %v1967 = vld [vmem:[#allocation4 + $0x120] sm:$0xff]
          %v1968 = vld [vmem:[#allocation4 + $0x128] sm:$0xff]
          %v1969 = vld [vmem:[#allocation4 + $0x130] sm:$0xff]
          %v1970 = vld [vmem:[#allocation4 + $0x138] sm:$0xff]
          %v1971 = vld [vmem:[#allocation4 + $0x140] sm:$0xff]
          %v1972 = vld [vmem:[#allocation4 + $0x148] sm:$0xff]
          %v1973 = vld [vmem:[#allocation4 + $0x150] sm:$0xff]
          %v1974 = vld [vmem:[#allocation4 + $0x158] sm:$0xff]
          %v1975 = vld [vmem:[#allocation4 + $0x160] sm:$0xff]
          %v1976 = vld [vmem:[#allocation4 + $0x168] sm:$0xff]
          %v1977 = vld [vmem:[#allocation4 + $0x170] sm:$0xff]
          %v1978 = vld [vmem:[#allocation4 + $0x178] sm:$0xff]
          %1980 = vset.pattern.permute.xlu0 0
          %1981 = vperm.xlu0 %1980, %v1907
          %v1982 = vpop.permute.xlu0 %1981
          %1985 = vset.pattern.permute.xlu0 0
          %1986 = vperm.xlu0 %1985, %v1908
          %v1987 = vpop.permute.xlu0 %1986
          %1990 = vset.pattern.permute.xlu0 0
          %1991 = vperm.xlu0 %1990, %v1909
          %v1992 = vpop.permute.xlu0 %1991
          %1995 = vset.pattern.permute.xlu0 0
          %1996 = vperm.xlu0 %1995, %v1910
          %v1997 = vpop.permute.xlu0 %1996
          %2000 = vset.pattern.permute.xlu0 0
          %2001 = vperm.xlu0 %2000, %v1911
          %v2002 = vpop.permute.xlu0 %2001
          %2005 = vset.pattern.permute.xlu0 0
          %2006 = vperm.xlu0 %2005, %v1912
          %v2007 = vpop.permute.xlu0 %2006
          %2010 = vset.pattern.permute.xlu0 0
          %2011 = vperm.xlu0 %2010, %v1913
          %v2012 = vpop.permute.xlu0 %2011
          %2015 = vset.pattern.permute.xlu0 0
          %2016 = vperm.xlu0 %2015, %v1914
          %v2017 = vpop.permute.xlu0 %2016
          %2020 = vset.pattern.permute.xlu0 0
          %2021 = vperm.xlu0 %2020, %v1915
          %v2022 = vpop.permute.xlu0 %2021
          %2025 = vset.pattern.permute.xlu0 0
          %2026 = vperm.xlu0 %2025, %v1916
          %v2027 = vpop.permute.xlu0 %2026
          %2030 = vset.pattern.permute.xlu0 0
          %2031 = vperm.xlu0 %2030, %v1917
          %v2032 = vpop.permute.xlu0 %2031
          %2035 = vset.pattern.permute.xlu0 0
          %2036 = vperm.xlu0 %2035, %v1918
          %v2037 = vpop.permute.xlu0 %2036
          %2040 = vset.pattern.permute.xlu0 0
          %2041 = vperm.xlu0 %2040, %v1919
          %v2042 = vpop.permute.xlu0 %2041
          %2045 = vset.pattern.permute.xlu0 0
          %2046 = vperm.xlu0 %2045, %v1920
          %v2047 = vpop.permute.xlu0 %2046
          %2050 = vset.pattern.permute.xlu0 0
          %2051 = vperm.xlu0 %2050, %v1921
          %v2052 = vpop.permute.xlu0 %2051
          %2055 = vset.pattern.permute.xlu0 0
          %2056 = vperm.xlu0 %2055, %v1922
          %v2057 = vpop.permute.xlu0 %2056
          %2060 = vset.pattern.permute.xlu0 0
          %2061 = vperm.xlu0 %2060, %v1923
          %v2062 = vpop.permute.xlu0 %2061
          %2065 = vset.pattern.permute.xlu0 0
          %2066 = vperm.xlu0 %2065, %v1924
          %v2067 = vpop.permute.xlu0 %2066
          %2070 = vset.pattern.permute.xlu0 0
          %2071 = vperm.xlu0 %2070, %v1925
          %v2072 = vpop.permute.xlu0 %2071
          %2075 = vset.pattern.permute.xlu0 0
          %2076 = vperm.xlu0 %2075, %v1926
          %v2077 = vpop.permute.xlu0 %2076
          %2080 = vset.pattern.permute.xlu0 0
          %2081 = vperm.xlu0 %2080, %v1927
          %v2082 = vpop.permute.xlu0 %2081
          %2085 = vset.pattern.permute.xlu0 0
          %2086 = vperm.xlu0 %2085, %v1928
          %v2087 = vpop.permute.xlu0 %2086
          %2090 = vset.pattern.permute.xlu0 0
          %2091 = vperm.xlu0 %2090, %v1929
          %v2092 = vpop.permute.xlu0 %2091
          %2095 = vset.pattern.permute.xlu0 0
          %2096 = vperm.xlu0 %2095, %v1930
          %v2097 = vpop.permute.xlu0 %2096
          %v2099 = vmul.f32 %v1931, %v1982
          %v2100 = vmul.f32 %v1932, %v1982
          %v2101 = vmul.f32 %v1933, %v1987
          %v2102 = vmul.f32 %v1934, %v1987
          %v2103 = vmul.f32 %v1935, %v1992
          %v2104 = vmul.f32 %v1936, %v1992
          %v2105 = vmul.f32 %v1937, %v1997
          %v2106 = vmul.f32 %v1938, %v1997
          %v2107 = vmul.f32 %v1939, %v2002
          %v2108 = vmul.f32 %v1940, %v2002
          %v2109 = vmul.f32 %v1941, %v2007
          %v2110 = vmul.f32 %v1942, %v2007
          %v2111 = vmul.f32 %v1943, %v2012
          %v2112 = vmul.f32 %v1944, %v2012
          %v2113 = vmul.f32 %v1945, %v2017
          %v2114 = vmul.f32 %v1946, %v2017
          %v2115 = vmul.f32 %v1947, %v2022
          %v2116 = vmul.f32 %v1948, %v2022
          %v2117 = vmul.f32 %v1949, %v2027
          %v2118 = vmul.f32 %v1950, %v2027
          %v2119 = vmul.f32 %v1951, %v2032
          %v2120 = vmul.f32 %v1952, %v2032
          %v2121 = vmul.f32 %v1953, %v2037
          %v2122 = vmul.f32 %v1954, %v2037
          %v2123 = vmul.f32 %v1955, %v2042
          %v2124 = vmul.f32 %v1956, %v2042
          %v2125 = vmul.f32 %v1957, %v2047
          %v2126 = vmul.f32 %v1958, %v2047
          %v2127 = vmul.f32 %v1959, %v2052
          %v2128 = vmul.f32 %v1960, %v2052
          %v2129 = vmul.f32 %v1961, %v2057
          %v2130 = vmul.f32 %v1962, %v2057
          %v2131 = vmul.f32 %v1963, %v2062
          %v2132 = vmul.f32 %v1964, %v2062
          %v2133 = vmul.f32 %v1965, %v2067
          %v2134 = vmul.f32 %v1966, %v2067
          %v2135 = vmul.f32 %v1967, %v2072
          %v2136 = vmul.f32 %v1968, %v2072
          %v2137 = vmul.f32 %v1969, %v2077
          %v2138 = vmul.f32 %v1970, %v2077
          %v2139 = vmul.f32 %v1971, %v2082
          %v2140 = vmul.f32 %v1972, %v2082
          %v2141 = vmul.f32 %v1973, %v2087
          %v2142 = vmul.f32 %v1974, %v2087
          %v2143 = vmul.f32 %v1975, %v2092
          %v2144 = vmul.f32 %v1976, %v2092
          %v2145 = vmul.f32 %v1977, %v2097
          %v2146 = vmul.f32 %v1978, %v2097
          %2147 = vst [vmem:[%s249] sm:$0xff] %v2099
          %2148 = vst [vmem:[%s249 + $0x8] sm:$0xff] %v2100
          %2149 = vst [vmem:[%s249 + $0x10] sm:$0xff] %v2101
          %2150 = vst [vmem:[%s249 + $0x18] sm:$0xff] %v2102
          %2151 = vst [vmem:[%s249 + $0x20] sm:$0xff] %v2103
          %2152 = vst [vmem:[%s249 + $0x28] sm:$0xff] %v2104
          %2153 = vst [vmem:[%s249 + $0x30] sm:$0xff] %v2105
          %2154 = vst [vmem:[%s249 + $0x38] sm:$0xff] %v2106
          %2155 = vst [vmem:[%s249 + $0x40] sm:$0xff] %v2107
          %2156 = vst [vmem:[%s249 + $0x48] sm:$0xff] %v2108
          %2157 = vst [vmem:[%s249 + $0x50] sm:$0xff] %v2109
          %2158 = vst [vmem:[%s249 + $0x58] sm:$0xff] %v2110
          %2159 = vst [vmem:[%s249 + $0x60] sm:$0xff] %v2111
          %2160 = vst [vmem:[%s249 + $0x68] sm:$0xff] %v2112
          %2161 = vst [vmem:[%s249 + $0x70] sm:$0xff] %v2113
          %2162 = vst [vmem:[%s249 + $0x78] sm:$0xff] %v2114
          %2163 = vst [vmem:[%s249 + $0x80] sm:$0xff] %v2115
          %2164 = vst [vmem:[%s249 + $0x88] sm:$0xff] %v2116
          %2165 = vst [vmem:[%s249 + $0x90] sm:$0xff] %v2117
          %2166 = vst [vmem:[%s249 + $0x98] sm:$0xff] %v2118
          %2167 = vst [vmem:[%s249 + $0xa0] sm:$0xff] %v2119
          %2168 = vst [vmem:[%s249 + $0xa8] sm:$0xff] %v2120
          %2169 = vst [vmem:[%s249 + $0xb0] sm:$0xff] %v2121
          %2170 = vst [vmem:[%s249 + $0xb8] sm:$0xff] %v2122
          %2171 = vst [vmem:[%s249 + $0xc0] sm:$0xff] %v2123
          %2172 = vst [vmem:[%s249 + $0xc8] sm:$0xff] %v2124
          %2173 = vst [vmem:[%s249 + $0xd0] sm:$0xff] %v2125
          %2174 = vst [vmem:[%s249 + $0xd8] sm:$0xff] %v2126
          %2175 = vst [vmem:[%s249 + $0xe0] sm:$0xff] %v2127
          %2176 = vst [vmem:[%s249 + $0xe8] sm:$0xff] %v2128
          %2177 = vst [vmem:[%s249 + $0xf0] sm:$0xff] %v2129
          %2178 = vst [vmem:[%s249 + $0xf8] sm:$0xff] %v2130
          %2179 = vst [vmem:[%s249 + $0x100] sm:$0xff] %v2131
          %2180 = vst [vmem:[%s249 + $0x108] sm:$0xff] %v2132
          %2181 = vst [vmem:[%s249 + $0x110] sm:$0xff] %v2133
          %2182 = vst [vmem:[%s249 + $0x118] sm:$0xff] %v2134
          %2183 = vst [vmem:[%s249 + $0x120] sm:$0xff] %v2135
          %2184 = vst [vmem:[%s249 + $0x128] sm:$0xff] %v2136
          %2185 = vst [vmem:[%s249 + $0x130] sm:$0xff] %v2137
          %2186 = vst [vmem:[%s249 + $0x138] sm:$0xff] %v2138
          %2187 = vst [vmem:[%s249 + $0x140] sm:$0xff] %v2139
          %2188 = vst [vmem:[%s249 + $0x148] sm:$0xff] %v2140
          %2189 = vst [vmem:[%s249 + $0x150] sm:$0xff] %v2141
          %2190 = vst [vmem:[%s249 + $0x158] sm:$0xff] %v2142
          %2191 = vst [vmem:[%s249 + $0x160] sm:$0xff] %v2143
          %2192 = vst [vmem:[%s249 + $0x168] sm:$0xff] %v2144
          %2193 = vst [vmem:[%s249 + $0x170] sm:$0xff] %v2145
          %2194 = vst [vmem:[%s249 + $0x178] sm:$0xff] %v2146
        $region40: #{cross_attention.7} parent=31 // pred_fallthru
          _
        %s2195 = sand.u32 %s130, 1
        %s2196 = scalar_lea.sflag [#allocation6], %s2195
        %s2197 = sand.u32 %s130, 1
        %s2198 = smul.addr %s2197, 384
        %s2199 = scalar_lea.vmem [#allocation5], %s2198
        // Predicated region
        $region41: #{cross_attention.7} parent=31 // pred_check
          %p2200 = pneg %p140
        $region42: #{cross_attention.7} parent=31 // pred_check_branch
          %2202 = sbr.rel (%p2200) target = $region44
        $region43: #{cross_attention.7} parent=31 // pred_region
          %s2203 = smul.u32 24, %s23
          %s2205 = ssub.s32 6144, 6144
          %2206 = vsyncadd %s2196, %s2205
          %s2207 = smul.addr %s2203, 2
          %s2208 = smul.addr %s22, 48
          %s2209 = sadd.s32 %s2207, %s2208
          %s2210 = smul.addr %s2209, 128
          %s2211 = scalar_lea.hbm %s3, %s2210
          %s2212 = sshll.u32 %s2199, 4
          %s2213 = int_to_ptr.vmem [resolvable:$true] %s2212
          %2218 = dma.vmem_to_hbm [thread:$0]  %s2213, 6144, %s2211, %s2196, 256, 256, 16
        $region44: #{cross_attention.7} parent=31 // pred_fallthru
          _
      $region32: #{cross_attention.7} parent=5 // pred_fallthru
        _
      %p2219 = scmp.le.s32.totalorder 2, %s12
      // Predicated region
      $region45: #{cross_attention.7} parent=5 // pred_check
        %p2220 = pneg %p2219
      $region46: #{cross_attention.7} parent=5 // pred_check_branch
        %2222 = sbr.rel (%p2220) target = $region48
      $region47: #{cross_attention.7} parent=5 // pred_region
        %s2223 = ssub.s32 %s12, 2
        // Predicated region
        $region49: #{cross_attention.7} parent=47 // pred_check
          %p2224 = pneg %p146
        $region50: #{cross_attention.7} parent=47 // pred_check_branch
          %2226 = sbr.rel (%p2224) target = $region52
        $region51: #{cross_attention.7} parent=47 // pred_region
          %s2227 = sand.u32 %s131, 1
          %s2228 = scalar_lea.sflag [#allocation6], %s2227
          %s2229 = sand.u32 %s131, 1
          %s2230 = smul.addr %s2229, 384
          %s2231 = scalar_lea.vmem [#allocation5], %s2230
          %2232 = dma.done %s2228, 6144
        $region52: #{cross_attention.7} parent=47 // pred_fallthru
          _
      $region48: #{cross_attention.7} parent=5 // pred_fallthru
        _
    $region6: #{cross_attention.7} parent=1 // loop_footer
      %s16 = sadd.s32 1, %s12
    $region7: #{cross_attention.7} parent=1 // loop_footer_branch
      %11 = sbr.rel target = $region3
    $region8: #{cross_attention.7} parent=1 // loop_exit
      _
    %2233 = vsyncpa [#allocation6], 1
    %s2234 = scalar_lea.sflag [#allocation6], 1
    %2235 = vsyncpa %s2234, 1

</llo_original>
